<compile_context>
chip_gen: v7x
topology: tpu7x:2x2x1
jax: 0.10.0
libtpu: 0.0.40
codegen_flags: <defaults>
</compile_context>

<pallas_src>
import functools

import jax
import jax.numpy as jnp
import numpy as np
from jax.experimental import pallas as pl
from jax.experimental.pallas import tpu as pltpu

LANES = 128  # lane width == padded channel count


def _round_up(x, m):
    return ((x + m - 1) // m) * m


# ------------------------------ Pallas kernel ------------------------------- #
def _fused_backbone_kernel(P, n_out, NE,
                           x1_ref, w1_ref, w2_ref, b2_ref, o_ref, e_ref):
    """Two fused 3x3 SAME conv + bias + ReLU layers for one image.

    Band grid: padded pixel (i, j), i in [0, H+2), j in [0, P), lives at flat
    row i*P + j.  Rows outside the interior (and the right halo columns
    j >= W+1) are exact zeros by construction of the host-side im2col, so they
    double as the spatial zero padding of layer 2.

    x1_ref : (1, N2, 128) bf16  layer-1 im2col on the band grid
                                 (9 taps * cin + bias indicator, zero padded)
    w1_ref : (128, 128)   bf16  layer-1 taps + bias row, channel-padded
    w2_ref : (1152, 128)  bf16  layer-2 taps, [dy][dx][cin] stacked row-wise
    b2_ref : (1, 128)     f32   layer-2 bias
    o_ref  : (1, n_out, 128) f32 layer-2 output on the band grid (halo cols
                                 hold garbage and are dropped host-side)
    e_ref  : (NE, 384) bf16 VMEM scratch: dx-expanded layer-1 band
                                 e[m, dx*128 + c] = h1[m + dx, c]
    """
    # -------- layer 1: one K=128 bf16 matmul; bias rides in the matmul via
    # the indicator column, so padding rows stay exactly zero after ReLU. ----
    h1 = jnp.maximum(
        jnp.dot(x1_ref[0], w1_ref[...], preferred_element_type=jnp.float32),
        0.0)                                              # (N2, 128) f32

    # -------- stage the dx-expanded operand: three column-shifted copies of
    # the band concatenated along lanes.  After this, every layer-2 slab read
    # starts at a multiple-of-8 sublane and a multiple-of-128 lane. ----------
    e_ref[:, 0 * LANES:1 * LANES] = h1[0:NE, :].astype(jnp.bfloat16)
    e_ref[:, 1 * LANES:2 * LANES] = h1[1:NE + 1, :].astype(jnp.bfloat16)
    e_ref[:, 2 * LANES:3 * LANES] = h1[2:NE + 2, :].astype(jnp.bfloat16)

    # -------- layer 2: three K=384 bf16 matmuls, one per dy (row pitch P is a
    # multiple of 8, so dy*P slab starts are sublane-aligned). ---------------
    acc = jnp.dot(e_ref[0:n_out, :], w2_ref[0 * 3 * LANES:1 * 3 * LANES, :],
                  preferred_element_type=jnp.float32)
    acc += jnp.dot(e_ref[P:P + n_out, :], w2_ref[1 * 3 * LANES:2 * 3 * LANES, :],
                   preferred_element_type=jnp.float32)
    acc += jnp.dot(e_ref[2 * P:2 * P + n_out, :], w2_ref[2 * 3 * LANES:3 * 3 * LANES, :],
                   preferred_element_type=jnp.float32)
    o_ref[0] = jnp.maximum(acc + b2_ref[...], 0.0)


# ------------------------------- host wrapper ------------------------------- #
def ava_backbone_forward(x_nchw, w1, b1, w2, b2):
    """Fused two-layer conv backbone. x: [B, Cin, H, W] -> [B, C2, H, W]."""
    B, cin, H, W = x_nchw.shape
    c1, c2 = w1.shape[0], w2.shape[0]
    assert c1 <= LANES and c2 <= LANES

    P = _round_up(W + 2, 8)          # 8-aligned row pitch of the band grid
    n_out = H * P                    # output anchor rows per image
    NE = 2 * P + n_out               # rows of the dx-expanded operand (= (H+2)*P)
    N2 = _round_up(NE + 2, 8)        # rows of the layer-1 band (max read NE+1)
    K1 = 9 * cin + 1                 # 9 taps * cin + bias indicator
    assert K1 <= LANES

    # ---- layer-1 im2col on the band grid (host-side; ~100 KB/image) --------
    x_nhwc = jnp.transpose(x_nchw.astype(jnp.float32), (0, 2, 3, 1))
    xpad = jnp.pad(x_nhwc, ((0, 0), (1, 1), (1, 1), (0, 0)))      # (B,H+2,W+2,cin)
    taps = [xpad[:, dy:dy + H, dx:dx + W, :]
            for dy in range(3) for dx in range(3)]
    taps.append(jnp.ones((B, H, W, 1), jnp.float32))              # bias indicator
    patches = jnp.concatenate(taps, axis=-1)                      # (B,H,W,K1)

    x1 = jnp.zeros((B, H + 2, P, LANES), jnp.float32)
    x1 = x1.at[:, 1:H + 1, 1:W + 1, :K1].set(patches)
    x1 = x1.reshape(B, (H + 2) * P, LANES)
    x1 = jnp.pad(x1, ((0, 0), (0, N2 - (H + 2) * P), (0, 0)))
    x1 = x1.astype(jnp.bfloat16)                                  # (B, N2, 128)

    # ---- weights packed for the lane-dense bf16 kernel ---------------------
    w1k = jnp.transpose(w1, (2, 3, 1, 0)).reshape(9 * cin, c1)    # [9*cin, c1]
    w1k = jnp.concatenate([w1k, b1.reshape(1, c1)], axis=0)       # bias row
    w1_mat = jnp.zeros((LANES, LANES), jnp.float32)
    w1_mat = w1_mat.at[:K1, :c1].set(w1k).astype(jnp.bfloat16)    # (128,128)

    w2k = jnp.transpose(w2, (2, 3, 1, 0))                         # (3,3,c1,c2)
    w2_mat = jnp.zeros((3, 3, LANES, LANES), jnp.float32)
    w2_mat = w2_mat.at[:, :, :c1, :c2].set(w2k)
    w2_mat = w2_mat.reshape(9 * LANES, LANES).astype(jnp.bfloat16)  # (1152,128)

    b2_row = jnp.zeros((1, LANES), jnp.float32).at[0, :c2].set(b2)

    kernel = functools.partial(_fused_backbone_kernel, P, n_out, NE)
    # TODO(synk): for large B, fold several images into the matmul M dimension
    # per grid step (keep >=2 parallel steps for v7x); for large H/W add a
    # row-tile grid axis and set vmem_limit_bytes / pl.Buffered(1) on the
    # constant-index weight specs.  Unnecessary at these shapes (<2 MB VMEM).
    out = pl.pallas_call(
        kernel,
        out_shape=jax.ShapeDtypeStruct((B, n_out, LANES), jnp.float32),
        grid_spec=pltpu.PrefetchScalarGridSpec(
            num_scalar_prefetch=0,
            grid=(B,),                                  # >= 2 parallel steps
            in_specs=[
                pl.BlockSpec((1, N2, LANES), lambda b: (b, 0, 0)),
                pl.BlockSpec((LANES, LANES), lambda b: (0, 0)),
                pl.BlockSpec((9 * LANES, LANES), lambda b: (0, 0)),
                pl.BlockSpec((1, LANES), lambda b: (0, 0)),
            ],
            out_specs=pl.BlockSpec((1, n_out, LANES), lambda b: (b, 0, 0)),
            scratch_shapes=[pltpu.VMEM((NE, 3 * LANES), jnp.bfloat16)],
        ),
        compiler_params=pltpu.CompilerParams(
            dimension_semantics=("parallel",)),
    )(x1, w1_mat, w2_mat, b2_row)

    # Drop halo columns / padded channels, back to NCHW features.
    out = out.reshape(B, H, P, LANES)[:, :, :W, :c2]
    return jnp.transpose(out, (0, 3, 1, 2))


_jit_forward = jax.jit(ava_backbone_forward)


# ---------------------------- AVA_backbone module ---------------------------- #
class AVABackbonePallas:
    """JAX/Pallas equivalent of AVA_backbone with a small conv backbone."""

    def __init__(self, in_channels=4, hidden=32, key=jax.random.PRNGKey(0)):
        k1, k2, k3, k4 = jax.random.split(key, 4)
        s1 = 1.0 / np.sqrt(in_channels * 9)
        s2 = 1.0 / np.sqrt(hidden * 9)
        self.w1 = jax.random.uniform(k1, (hidden, in_channels, 3, 3),
                                     jnp.float32, -s1, s1)
        self.b1 = jax.random.uniform(k2, (hidden,), jnp.float32, -s1, s1)
        self.w2 = jax.random.uniform(k3, (hidden, hidden, 3, 3),
                                     jnp.float32, -s2, s2)
        self.b2 = jax.random.uniform(k4, (hidden,), jnp.float32, -s2, s2)

    def forward(self, data_nchw):
        # forward(data): inputs -> backbone module -> features
        return _jit_forward(data_nchw, self.w1, self.b1, self.w2, self.b2)

    __call__ = forward


# --------------------------------- reference --------------------------------- #
def _reference_forward(model, x_nchw):
    """Pure-JAX reference (lax.conv, f32) for correctness checking."""
    def conv(x, w, b):
        y = jax.lax.conv_general_dilated(
            x, w, window_strides=(1, 1), padding="SAME",
            dimension_numbers=("NCHW", "OIHW", "NCHW"))
        return jnp.maximum(y + b[None, :, None, None], 0.0)
    y = conv(x_nchw, model.w1, model.b1)
    y = conv(y, model.w2, model.b2)
    return y


if __name__ == "__main__":
    key = jax.random.PRNGKey(0)
    k_in, k_par = jax.random.split(key)

    B, C, H, W = 2, 4, 16, 16
    x = jax.random.normal(k_in, (B, C, H, W), jnp.float32)

    model = AVABackbonePallas(in_channels=C, hidden=32, key=k_par)

    features = jax.block_until_ready(model(x))
    ref = jax.block_until_ready(_reference_forward(model, x))

    assert features.shape == (B, 32, H, W)
    # bf16 matmul operands (f32 accumulation) -> relaxed tolerance vs f32 ref.
    np.testing.assert_allclose(np.asarray(features), np.asarray(ref),
                               rtol=2e-2, atol=2e-2)

    # TODO(synk): pretrain-checkpoint loading / requires_grad_(False) /
    # .cuda() device transfer have no kernel-level equivalent; parameters are
    # deterministic synthetic inits.
    print("KERNEL_OK")
</pallas_src>

<mosaic_0001>
module attributes {stable_mosaic.version = 11 : i64} {
  func.func @_fused_backbone_kernel(%arg0: i32, %arg1: memref<1x440x128xbf16, #tpu.memory_space<vmem>>, %arg2: memref<128x128xbf16, #tpu.memory_space<vmem>>, %arg3: memref<1152x128xbf16, #tpu.memory_space<vmem>>, %arg4: memref<1x128xf32, #tpu.memory_space<vmem>>, %arg5: memref<1x384x128xf32, #tpu.memory_space<vmem>>, %arg6: memref<432x384xbf16, #tpu.memory_space<vmem>>) attributes {dimension_semantics = [#tpu.dimension_semantics<parallel>], iteration_bounds = array<i64: 2>, scalar_prefetch = 0 : i64, scratch_operands = 1 : i64, tpu.core_type = #tpu.core_type<tc>, window_params = [{transform_indices = @transform_0, window_bounds = array<i64: 1, 440, 128>}, {pipeline_mode = #tpu.pipeline_mode<synchronous>, transform_indices = @transform_1, window_bounds = array<i64: 128, 128>}, {pipeline_mode = #tpu.pipeline_mode<synchronous>, transform_indices = @transform_2, window_bounds = array<i64: 1152, 128>}, {pipeline_mode = #tpu.pipeline_mode<synchronous>, transform_indices = @transform_3, window_bounds = array<i64: 1, 128>}, {transform_indices = @transform_4, window_bounds = array<i64: 1, 384, 128>}]} {
    %c0 = arith.constant 0 : index
    %c0_0 = arith.constant 0 : index
    %c0_1 = arith.constant 0 : index
    %0 = vector.load %arg1[%c0, %c0_0, %c0_1] : memref<1x440x128xbf16, #tpu.memory_space<vmem>>, vector<1x440x128xbf16>
    %1 = vector.shape_cast %0 : vector<1x440x128xbf16> to vector<440x128xbf16>
    %c0_2 = arith.constant 0 : index
    %c0_3 = arith.constant 0 : index
    %2 = vector.load %arg2[%c0_2, %c0_3] : memref<128x128xbf16, #tpu.memory_space<vmem>>, vector<128x128xbf16>
    %cst = arith.constant dense<0.000000e+00> : vector<440x128xf32>
    %3 = tpu.matmul %1, %2, %cst {dimension_numbers = #tpu.dot_dimension_numbers<[1], [0], [0], [1], [0, 0, 1, 1], [], []>} : vector<440x128xbf16>, vector<128x128xbf16>, vector<440x128xf32> -> vector<440x128xf32>
    %cst_4 = arith.constant 0.000000e+00 : f32
    %4 = vector.broadcast %cst_4 : f32 to vector<440x128xf32>
    %5 = arith.maximumf %3, %4 : vector<440x128xf32>
    %6 = vector.extract_strided_slice %5 {offsets = [0, 0], sizes = [432, 128], strides = [1, 1]} : vector<440x128xf32> to vector<432x128xf32>
    %7 = arith.truncf %6 : vector<432x128xf32> to vector<432x128xbf16>
    %c0_5 = arith.constant 0 : index
    %c0_6 = arith.constant 0 : index
    %8 = vector.load %arg6[%c0_5, %c0_6] : memref<432x384xbf16, #tpu.memory_space<vmem>>, vector<432x128xbf16>
    tpu.vector_store %arg6[%c0_5, %c0_6], %7 {strides = array<i32>} : memref<432x384xbf16, #tpu.memory_space<vmem>>, vector<432x128xbf16>,
    %9 = vector.extract_strided_slice %5 {offsets = [1, 0], sizes = [432, 128], strides = [1, 1]} : vector<440x128xf32> to vector<432x128xf32>
    %10 = arith.truncf %9 : vector<432x128xf32> to vector<432x128xbf16>
    %c0_7 = arith.constant 0 : index
    %c128 = arith.constant 128 : index
    %11 = vector.load %arg6[%c0_7, %c128] : memref<432x384xbf16, #tpu.memory_space<vmem>>, vector<432x128xbf16>
    tpu.vector_store %arg6[%c0_7, %c128], %10 {strides = array<i32>} : memref<432x384xbf16, #tpu.memory_space<vmem>>, vector<432x128xbf16>,
    %12 = vector.extract_strided_slice %5 {offsets = [2, 0], sizes = [432, 128], strides = [1, 1]} : vector<440x128xf32> to vector<432x128xf32>
    %13 = arith.truncf %12 : vector<432x128xf32> to vector<432x128xbf16>
    %c0_8 = arith.constant 0 : index
    %c256 = arith.constant 256 : index
    %14 = vector.load %arg6[%c0_8, %c256] : memref<432x384xbf16, #tpu.memory_space<vmem>>, vector<432x128xbf16>
    tpu.vector_store %arg6[%c0_8, %c256], %13 {strides = array<i32>} : memref<432x384xbf16, #tpu.memory_space<vmem>>, vector<432x128xbf16>,
    %c0_9 = arith.constant 0 : index
    %c0_10 = arith.constant 0 : index
    %15 = vector.load %arg6[%c0_9, %c0_10] : memref<432x384xbf16, #tpu.memory_space<vmem>>, vector<384x384xbf16>
    %c0_11 = arith.constant 0 : index
    %c0_12 = arith.constant 0 : index
    %16 = vector.load %arg3[%c0_11, %c0_12] : memref<1152x128xbf16, #tpu.memory_space<vmem>>, vector<384x128xbf16>
    %cst_13 = arith.constant dense<0.000000e+00> : vector<384x128xf32>
    %17 = tpu.matmul %15, %16, %cst_13 {dimension_numbers = #tpu.dot_dimension_numbers<[1], [0], [0], [1], [0, 0, 1, 1], [], []>} : vector<384x384xbf16>, vector<384x128xbf16>, vector<384x128xf32> -> vector<384x128xf32>
    %c24 = arith.constant 24 : index
    %c0_14 = arith.constant 0 : index
    %18 = vector.load %arg6[%c24, %c0_14] : memref<432x384xbf16, #tpu.memory_space<vmem>>, vector<384x384xbf16>
    %c384 = arith.constant 384 : index
    %c0_15 = arith.constant 0 : index
    %19 = vector.load %arg3[%c384, %c0_15] : memref<1152x128xbf16, #tpu.memory_space<vmem>>, vector<384x128xbf16>
    %cst_16 = arith.constant dense<0.000000e+00> : vector<384x128xf32>
    %20 = tpu.matmul %18, %19, %cst_16 {dimension_numbers = #tpu.dot_dimension_numbers<[1], [0], [0], [1], [0, 0, 1, 1], [], []>} : vector<384x384xbf16>, vector<384x128xbf16>, vector<384x128xf32> -> vector<384x128xf32>
    %21 = arith.addf %17, %20 : vector<384x128xf32>
    %c48 = arith.constant 48 : index
    %c0_17 = arith.constant 0 : index
    %22 = vector.load %arg6[%c48, %c0_17] : memref<432x384xbf16, #tpu.memory_space<vmem>>, vector<384x384xbf16>
    %c768 = arith.constant 768 : index
    %c0_18 = arith.constant 0 : index
    %23 = vector.load %arg3[%c768, %c0_18] : memref<1152x128xbf16, #tpu.memory_space<vmem>>, vector<384x128xbf16>
    %cst_19 = arith.constant dense<0.000000e+00> : vector<384x128xf32>
    %24 = tpu.matmul %22, %23, %cst_19 {dimension_numbers = #tpu.dot_dimension_numbers<[1], [0], [0], [1], [0, 0, 1, 1], [], []>} : vector<384x384xbf16>, vector<384x128xbf16>, vector<384x128xf32> -> vector<384x128xf32>
    %25 = arith.addf %21, %24 : vector<384x128xf32>
    %c0_20 = arith.constant 0 : index
    %c0_21 = arith.constant 0 : index
    %26 = vector.load %arg4[%c0_20, %c0_21] : memref<1x128xf32, #tpu.memory_space<vmem>>, vector<1x128xf32>
    %27 = vector.broadcast %26 : vector<1x128xf32> to vector<384x128xf32>
    %28 = arith.addf %25, %27 : vector<384x128xf32>
    %cst_22 = arith.constant 0.000000e+00 : f32
    %29 = vector.broadcast %cst_22 : f32 to vector<384x128xf32>
    %30 = arith.maximumf %28, %29 : vector<384x128xf32>
    %c0_23 = arith.constant 0 : index
    %c0_24 = arith.constant 0 : index
    %c0_25 = arith.constant 0 : index
    %31 = vector.load %arg5[%c0_23, %c0_24, %c0_25] : memref<1x384x128xf32, #tpu.memory_space<vmem>>, vector<1x384x128xf32>
    %32 = vector.shape_cast %31 : vector<1x384x128xf32> to vector<384x128xf32>
    %33 = vector.shape_cast %30 : vector<384x128xf32> to vector<1x384x128xf32>
    tpu.vector_store %arg5[%c0_23, %c0_24, %c0_25], %33 {strides = array<i32>} : memref<1x384x128xf32, #tpu.memory_space<vmem>>, vector<1x384x128xf32>,
    return
  }
  func.func @transform_0(%arg0: i32) -> (i32, i32, i32) {
    %c0_i32 = arith.constant 0 : i32
    %c0_i32_0 = arith.constant 0 : i32
    %c0_i32_1 = arith.constant 0 : i32
    return %arg0, %c0_i32, %c0_i32_0 : i32, i32, i32
  }
  func.func @transform_1(%arg0: i32) -> (i32, i32) {
    %c0_i32 = arith.constant 0 : i32
    %c0_i32_0 = arith.constant 0 : i32
    %c0_i32_1 = arith.constant 0 : i32
    return %c0_i32, %c0_i32_0 : i32, i32
  }
  func.func @transform_2(%arg0: i32) -> (i32, i32) {
    %c0_i32 = arith.constant 0 : i32
    %c0_i32_0 = arith.constant 0 : i32
    %c0_i32_1 = arith.constant 0 : i32
    return %c0_i32, %c0_i32_0 : i32, i32
  }
  func.func @transform_3(%arg0: i32) -> (i32, i32) {
    %c0_i32 = arith.constant 0 : i32
    %c0_i32_0 = arith.constant 0 : i32
    %c0_i32_1 = arith.constant 0 : i32
    return %c0_i32, %c0_i32_0 : i32, i32
  }
  func.func @transform_4(%arg0: i32) -> (i32, i32, i32) {
    %c0_i32 = arith.constant 0 : i32
    %c0_i32_0 = arith.constant 0 : i32
    %c0_i32_1 = arith.constant 0 : i32
    return %arg0, %c0_i32, %c0_i32_0 : i32, i32, i32
  }
}

</mosaic_0001>

<llo_original>
// kernel: ava_backbone_forward.1
$region0: #{ava_backbone_forward.1}
  #allocation0 [shape = 'u32[]', space=smem, size = 0x4, offset = 0x4, fixed_abs, tag = 'smem constant byte address 0x4 - core index']
  #allocation1 [shape = 'u32[144,128]{1,0:T(1,128)}', space=vmem, size = 0x12000, scoped, tag = 'internal scratch']
  #allocation2 [shape = 'bf16[432,384]{1,0:T(16,128)(2,1)}', space=vmem, size = 0x51000, scoped, tag = 'scratch operand']
  %s0 = inlined_call_operand.vmem [shape: bf16[2,440,128], index: 0, kind: input, shape index: {}]
  %s1 = inlined_call_operand.vmem [shape: bf16[128,128], index: 1, kind: input, shape index: {}]
  %s2 = inlined_call_operand.vmem [shape: bf16[1152,128], index: 2, kind: input, shape index: {}]
  %s3 = inlined_call_operand.vmem [shape: f32[1,128], index: 3, kind: input, shape index: {}]
  %s4 = inlined_call_operand.vmem [shape: f32[2,384,128], index: 4, kind: output, shape index: {}]
  %s5 = sld [smem:[#allocation0]]
  $region49: #{ava_backbone_forward.1} parent=0
    _
  %s7 = ssub.s32 1, %s5
  %s8 = scalar_select 0, %s7, %s5
  loop: start=0, step=1, limit=4
  $region2: #{ava_backbone_forward.1} parent=0 // loop_pre_header
    _
  $region3: #{ava_backbone_forward.1} parent=0 // loop_header
    %s10 = sphi 0, %s14
    %p11 = scmp.ge.s32.totalorder %s10, 4
    %s20 = sphi 0, %s22
    %s23 = sphi 0, %s20
    %s24 = sphi 0, %s23
    %s40 = sphi 0, %s24
    %s44 = sphi 0, %s44
    %s46 = sphi 0, %s44
    %s47 = sphi 0, %s46
    %s61 = sphi 0, %s47
    %s65 = sphi 0, %s65
    %s67 = sphi 0, %s65
    %s68 = sphi 0, %s67
    %s82 = sphi 0, %s68
    %s86 = sphi 0, %s86
    %s88 = sphi 0, %s86
    %s89 = sphi 0, %s88
    %s103 = sphi 0, %s89
    %s109 = sphi 0, %s111
    %s112 = sphi 0, %s109
    %s113 = sphi 0, %s112
    %s129 = sphi 0, %s113
  $region4: #{ava_backbone_forward.1} parent=0 // loop_header_branch
    %13 = sbr.rel (%p11) target = $region8
  $region5: #{ava_backbone_forward.1} parent=0 // loop_body
    %s15 = ssub.s32 %s10, 1
    %s16 = ssub.s32 %s10, 2
    %s17 = sadd.s32 %s10, 1
    %s18 = ssub.s32 %s10, %s17
    %p19 = scmp.eq.s32.totalorder %s18, 0
    %s21 = sadd.s32 %s20, 1
    %s22 = scalar_select %p19, %s20, %s21
    %p25 = pneg %p19
    %p26 = scmp.eq.s32.totalorder %s10, 1
    %p27 = por %p25, %p26
    %p28 = scmp.ne.s32.totalorder %s20, %s23
    %p29 = scmp.eq.s32.totalorder %s10, 0
    %p30 = por %p28, %p29
    %p31 = scmp.ne.s32.totalorder %s20, %s23
    %p32 = scmp.eq.s32.totalorder %s15, 1
    %p33 = por %p31, %p32
    %p34 = scmp.ne.s32.totalorder %s23, %s24
    %p35 = scmp.eq.s32.totalorder %s15, 0
    %p36 = por %p34, %p35
    %p37 = scmp.ne.s32.totalorder %s23, %s24
    %p38 = scmp.eq.s32.totalorder %s16, 1
    %p39 = por %p37, %p38
    %p41 = scmp.ne.s32.totalorder %s24, %s40
    %p42 = scmp.eq.s32.totalorder %s16, 0
    %p43 = por %p41, %p42
    %s45 = sadd.s32 %s44, 1
    %p48 = scmp.eq.s32.totalorder %s10, 1
    %p49 = scmp.ne.s32.totalorder %s44, %s46
    %p50 = scmp.eq.s32.totalorder %s10, 0
    %p51 = por %p49, %p50
    %p52 = scmp.ne.s32.totalorder %s44, %s46
    %p53 = scmp.eq.s32.totalorder %s15, 1
    %p54 = por %p52, %p53
    %p55 = scmp.ne.s32.totalorder %s46, %s47
    %p56 = scmp.eq.s32.totalorder %s15, 0
    %p57 = por %p55, %p56
    %p58 = scmp.ne.s32.totalorder %s46, %s47
    %p59 = scmp.eq.s32.totalorder %s16, 1
    %p60 = por %p58, %p59
    %p62 = scmp.ne.s32.totalorder %s47, %s61
    %p63 = scmp.eq.s32.totalorder %s16, 0
    %p64 = por %p62, %p63
    %s66 = sadd.s32 %s65, 1
    %p69 = scmp.eq.s32.totalorder %s10, 1
    %p70 = scmp.ne.s32.totalorder %s65, %s67
    %p71 = scmp.eq.s32.totalorder %s10, 0
    %p72 = por %p70, %p71
    %p73 = scmp.ne.s32.totalorder %s65, %s67
    %p74 = scmp.eq.s32.totalorder %s15, 1
    %p75 = por %p73, %p74
    %p76 = scmp.ne.s32.totalorder %s67, %s68
    %p77 = scmp.eq.s32.totalorder %s15, 0
    %p78 = por %p76, %p77
    %p79 = scmp.ne.s32.totalorder %s67, %s68
    %p80 = scmp.eq.s32.totalorder %s16, 1
    %p81 = por %p79, %p80
    %p83 = scmp.ne.s32.totalorder %s68, %s82
    %p84 = scmp.eq.s32.totalorder %s16, 0
    %p85 = por %p83, %p84
    %s87 = sadd.s32 %s86, 1
    %p90 = scmp.eq.s32.totalorder %s10, 1
    %p91 = scmp.ne.s32.totalorder %s86, %s88
    %p92 = scmp.eq.s32.totalorder %s10, 0
    %p93 = por %p91, %p92
    %p94 = scmp.ne.s32.totalorder %s86, %s88
    %p95 = scmp.eq.s32.totalorder %s15, 1
    %p96 = por %p94, %p95
    %p97 = scmp.ne.s32.totalorder %s88, %s89
    %p98 = scmp.eq.s32.totalorder %s15, 0
    %p99 = por %p97, %p98
    %p100 = scmp.ne.s32.totalorder %s88, %s89
    %p101 = scmp.eq.s32.totalorder %s16, 1
    %p102 = por %p100, %p101
    %p104 = scmp.ne.s32.totalorder %s89, %s103
    %p105 = scmp.eq.s32.totalorder %s16, 0
    %p106 = por %p104, %p105
    %s107 = ssub.s32 %s10, %s17
    %p108 = scmp.eq.s32.totalorder %s107, 0
    %s110 = sadd.s32 %s109, 1
    %s111 = scalar_select %p108, %s109, %s110
    %p114 = pneg %p108
    %p115 = scmp.eq.s32.totalorder %s10, 1
    %p116 = por %p114, %p115
    %p117 = scmp.ne.s32.totalorder %s109, %s112
    %p118 = scmp.eq.s32.totalorder %s10, 0
    %p119 = por %p117, %p118
    %p120 = scmp.ne.s32.totalorder %s109, %s112
    %p121 = scmp.eq.s32.totalorder %s15, 1
    %p122 = por %p120, %p121
    %p123 = scmp.ne.s32.totalorder %s112, %s113
    %p124 = scmp.eq.s32.totalorder %s15, 0
    %p125 = por %p123, %p124
    %p126 = scmp.ne.s32.totalorder %s112, %s113
    %p127 = scmp.eq.s32.totalorder %s16, 1
    %p128 = por %p126, %p127
    %p130 = scmp.ne.s32.totalorder %s113, %s129
    %p131 = scmp.eq.s32.totalorder %s16, 0
    %p132 = por %p130, %p131
    %p133 = scmp.le.s32.totalorder 1, %s10
    %p134 = scmp.lt.s32.totalorder %s10, 3
    %p135 = pnand %p133, %p134
    %p136 = pneg %p135
    // Predicated region
    $region9: #{ava_backbone_forward.1} parent=5 // pred_check
      _
    $region10: #{ava_backbone_forward.1} parent=5 // pred_check_branch
      %138 = sbr.rel (%p135) target = $region12
    $region11: #{ava_backbone_forward.1} parent=5 // pred_region
      %s139 = ssub.s32 %s10, 1
      // Predicated region
      $region13: #{ava_backbone_forward.1} parent=11 // pred_check
        %p140 = pneg %p57
      $region14: #{ava_backbone_forward.1} parent=11 // pred_check_branch
        %142 = sbr.rel (%p140) target = $region16
      $region15: #{ava_backbone_forward.1} parent=11 // pred_region
        _
      $region16: #{ava_backbone_forward.1} parent=11 // pred_fallthru
        _
      // Predicated region
      $region17: #{ava_backbone_forward.1} parent=11 // pred_check
        %p143 = pneg %p78
      $region18: #{ava_backbone_forward.1} parent=11 // pred_check_branch
        %145 = sbr.rel (%p143) target = $region20
      $region19: #{ava_backbone_forward.1} parent=11 // pred_region
        _
      $region20: #{ava_backbone_forward.1} parent=11 // pred_fallthru
        _
      // Predicated region
      $region21: #{ava_backbone_forward.1} parent=11 // pred_check
        %p146 = pneg %p99
      $region22: #{ava_backbone_forward.1} parent=11 // pred_check_branch
        %148 = sbr.rel (%p146) target = $region24
      $region23: #{ava_backbone_forward.1} parent=11 // pred_region
        _
      $region24: #{ava_backbone_forward.1} parent=11 // pred_fallthru
        _
    $region12: #{ava_backbone_forward.1} parent=5 // pred_fallthru
      _
    %p149 = scmp.lt.s32.totalorder %s10, 2
    // Predicated region
    $region25: #{ava_backbone_forward.1} parent=5 // pred_check
      %p150 = pneg %p149
    $region26: #{ava_backbone_forward.1} parent=5 // pred_check_branch
      %152 = sbr.rel (%p150) target = $region28
    $region27: #{ava_backbone_forward.1} parent=5 // pred_region
      // Predicated region
      $region29: #{ava_backbone_forward.1} parent=27 // pred_check
        %p153 = pneg %p30
      $region30: #{ava_backbone_forward.1} parent=27 // pred_check_branch
        %155 = sbr.rel (%p153) target = $region32
      $region31: #{ava_backbone_forward.1} parent=27 // pred_region
        %p156 = scmp.lt.s32.totalorder %s10, 1
        %s157 = scalar_select %p156, %s10, 1
        %s158 = smul.addr %s157, 55
        %s159 = smul.addr %s158, 4
        %s160 = scalar_lea.vmem %s0, %s159
      $region32: #{ava_backbone_forward.1} parent=27 // pred_fallthru
        _
    $region28: #{ava_backbone_forward.1} parent=5 // pred_fallthru
      _
    %p161 = scmp.le.s32.totalorder 1, %s10
    %p162 = scmp.lt.s32.totalorder %s10, 3
    %p163 = pnand %p161, %p162
    %p164 = pneg %p163
    // Predicated region
    $region33: #{ava_backbone_forward.1} parent=5 // pred_check
      _
    $region34: #{ava_backbone_forward.1} parent=5 // pred_check_branch
      %166 = sbr.rel (%p163) target = $region36
    $region35: #{ava_backbone_forward.1} parent=5 // pred_region
      %s167 = ssub.s32 %s10, 1
      %p168 = scmp.lt.s32.totalorder %s15, 1
      %s169 = scalar_select %p168, %s15, 1
      %s170 = smul.addr %s169, 55
      %s171 = smul.addr %s170, 4
      %s172 = scalar_lea.vmem %s0, %s171
      %p173 = pneg %p36
      %p174 = pneg %p33
      %p175 = pneg %p57
      %p176 = pneg %p54
      %p177 = pneg %p78
      %p178 = pneg %p75
      %p179 = pneg %p99
      %p180 = pneg %p96
      %p181 = pneg %p125
      %p182 = pneg %p122
      %p183 = scmp.lt.s32.totalorder %s15, 1
      %s184 = scalar_select %p183, %s15, 1
      %s185 = smul.addr %s184, 48
      %s186 = smul.addr %s185, 8
      %s187 = scalar_lea.vmem %s4, %s186
      %p188 = scmp.lt.s32.totalorder %s15, 1
      %s189 = scalar_select %p188, %s15, 1
      %s190 = smul.addr %s189, 55
      %s191 = smul.addr %s190, 4
      %s192 = scalar_lea.vmem %s0, %s191
      %p193 = scmp.lt.s32.totalorder %s15, 1
      %s194 = scalar_select %p193, %s15, 1
      %s195 = smul.addr %s194, 48
      %s196 = smul.addr %s195, 8
      %s197 = scalar_lea.vmem %s4, %s196
      %v199 = vld [vmem:[%s192] sm:$0xf]
      %v200 = vld [vmem:[%s192 + $0x4] sm:$0xf]
      %v201 = vld [vmem:[%s192 + $0x8] sm:$0xf]
      %v202 = vld [vmem:[%s192 + $0xc] sm:$0xf]
      %v203 = vld [vmem:[%s192 + $0x10] sm:$0xf]
      %v204 = vld [vmem:[%s192 + $0x14] sm:$0xf]
      %v205 = vld [vmem:[%s192 + $0x18] sm:$0xf]
      %v206 = vld [vmem:[%s192 + $0x1c] sm:$0xf]
      %v207 = vld [vmem:[%s192 + $0x20] sm:$0xf]
      %v208 = vld [vmem:[%s192 + $0x24] sm:$0xf]
      %v209 = vld [vmem:[%s192 + $0x28] sm:$0xf]
      %v210 = vld [vmem:[%s192 + $0x2c] sm:$0xf]
      %v211 = vld [vmem:[%s192 + $0x30] sm:$0xf]
      %v212 = vld [vmem:[%s192 + $0x34] sm:$0xf]
      %v213 = vld [vmem:[%s192 + $0x38] sm:$0xf]
      %v214 = vld [vmem:[%s192 + $0x3c] sm:$0xf]
      %v215 = vld [vmem:[%s192 + $0x40] sm:$0xf]
      %v216 = vld [vmem:[%s192 + $0x44] sm:$0xf]
      %v217 = vld [vmem:[%s192 + $0x48] sm:$0xf]
      %v218 = vld [vmem:[%s192 + $0x4c] sm:$0xf]
      %v219 = vld [vmem:[%s192 + $0x50] sm:$0xf]
      %v220 = vld [vmem:[%s192 + $0x54] sm:$0xf]
      %v221 = vld [vmem:[%s192 + $0x58] sm:$0xf]
      %v222 = vld [vmem:[%s192 + $0x5c] sm:$0xf]
      %v223 = vld [vmem:[%s192 + $0x60] sm:$0xf]
      %v224 = vld [vmem:[%s192 + $0x64] sm:$0xf]
      %v225 = vld [vmem:[%s192 + $0x68] sm:$0xf]
      %v226 = vld [vmem:[%s192 + $0x6c] sm:$0xf]
      %v227 = vld [vmem:[%s192 + $0x70] sm:$0xf]
      %v228 = vld [vmem:[%s192 + $0x74] sm:$0xf]
      %v229 = vld [vmem:[%s192 + $0x78] sm:$0xf]
      %v230 = vld [vmem:[%s192 + $0x7c] sm:$0xf]
      %v231 = vld [vmem:[%s192 + $0x80] sm:$0xf]
      %v232 = vld [vmem:[%s192 + $0x84] sm:$0xf]
      %v233 = vld [vmem:[%s192 + $0x88] sm:$0xf]
      %v234 = vld [vmem:[%s192 + $0x8c] sm:$0xf]
      %v235 = vld [vmem:[%s192 + $0x90] sm:$0xf]
      %v236 = vld [vmem:[%s192 + $0x94] sm:$0xf]
      %v237 = vld [vmem:[%s192 + $0x98] sm:$0xf]
      %v238 = vld [vmem:[%s192 + $0x9c] sm:$0xf]
      %v239 = vld [vmem:[%s192 + $0xa0] sm:$0xf]
      %v240 = vld [vmem:[%s192 + $0xa4] sm:$0xf]
      %v241 = vld [vmem:[%s192 + $0xa8] sm:$0xf]
      %v242 = vld [vmem:[%s192 + $0xac] sm:$0xf]
      %v243 = vld [vmem:[%s192 + $0xb0] sm:$0xf]
      %v244 = vld [vmem:[%s192 + $0xb4] sm:$0xf]
      %v245 = vld [vmem:[%s192 + $0xb8] sm:$0xf]
      %v246 = vld [vmem:[%s192 + $0xbc] sm:$0xf]
      %v247 = vld [vmem:[%s192 + $0xc0] sm:$0xf]
      %v248 = vld [vmem:[%s192 + $0xc4] sm:$0xf]
      %v249 = vld [vmem:[%s192 + $0xc8] sm:$0xf]
      %v250 = vld [vmem:[%s192 + $0xcc] sm:$0xf]
      %v251 = vld [vmem:[%s192 + $0xd0] sm:$0xf]
      %v252 = vld [vmem:[%s192 + $0xd4] sm:$0xf]
      %v253 = vld [vmem:[%s192 + $0xd8] sm:$0xf]
      %v254 = vld [vmem:[%s1] sm:$0xf]
      %v255 = vld [vmem:[%s1 + $0x4] sm:$0xf]
      %v256 = vld [vmem:[%s1 + $0x8] sm:$0xf]
      %v257 = vld [vmem:[%s1 + $0xc] sm:$0xf]
      %v258 = vld [vmem:[%s1 + $0x10] sm:$0xf]
      %v259 = vld [vmem:[%s1 + $0x14] sm:$0xf]
      %v260 = vld [vmem:[%s1 + $0x18] sm:$0xf]
      %v261 = vld [vmem:[%s1 + $0x1c] sm:$0xf]
      %v262 = vld [vmem:[%s1 + $0x20] sm:$0xf]
      %v263 = vld [vmem:[%s1 + $0x24] sm:$0xf]
      %v264 = vld [vmem:[%s1 + $0x28] sm:$0xf]
      %v265 = vld [vmem:[%s1 + $0x2c] sm:$0xf]
      %v266 = vld [vmem:[%s1 + $0x30] sm:$0xf]
      %v267 = vld [vmem:[%s1 + $0x34] sm:$0xf]
      %v268 = vld [vmem:[%s1 + $0x38] sm:$0xf]
      %v269 = vld [vmem:[%s1 + $0x3c] sm:$0xf]
      %v325 = vunpack.c.l.b16 %v199
      %v326 = vunpack.c.l.b16 %v200
      %v327 = vunpack.c.l.b16 %v201
      %v328 = vunpack.c.l.b16 %v202
      %v329 = vunpack.c.l.b16 %v203
      %v330 = vunpack.c.l.b16 %v204
      %v331 = vunpack.c.l.b16 %v205
      %v332 = vunpack.c.l.b16 %v206
      %v333 = vunpack.c.l.b16 %v207
      %v334 = vunpack.c.l.b16 %v208
      %v335 = vunpack.c.l.b16 %v209
      %v336 = vunpack.c.l.b16 %v210
      %v337 = vunpack.c.l.b16 %v211
      %v338 = vunpack.c.l.b16 %v212
      %v339 = vunpack.c.l.b16 %v213
      %v340 = vunpack.c.l.b16 %v214
      %v341 = vunpack.c.l.b16 %v215
      %v342 = vunpack.c.l.b16 %v216
      %v343 = vunpack.c.l.b16 %v217
      %v344 = vunpack.c.l.b16 %v218
      %v345 = vunpack.c.l.b16 %v219
      %v346 = vunpack.c.l.b16 %v220
      %v347 = vunpack.c.l.b16 %v221
      %v348 = vunpack.c.l.b16 %v222
      %v349 = vunpack.c.l.b16 %v223
      %v350 = vunpack.c.l.b16 %v224
      %v351 = vunpack.c.l.b16 %v225
      %v352 = vunpack.c.l.b16 %v226
      %v353 = vunpack.c.l.b16 %v227
      %v354 = vunpack.c.l.b16 %v228
      %v355 = vunpack.c.l.b16 %v229
      %v356 = vunpack.c.l.b16 %v230
      %v357 = vunpack.c.l.b16 %v231
      %v358 = vunpack.c.l.b16 %v232
      %v359 = vunpack.c.l.b16 %v233
      %v360 = vunpack.c.l.b16 %v234
      %v361 = vunpack.c.l.b16 %v235
      %v362 = vunpack.c.l.b16 %v236
      %v363 = vunpack.c.l.b16 %v237
      %v364 = vunpack.c.l.b16 %v238
      %v365 = vunpack.c.l.b16 %v239
      %v366 = vunpack.c.l.b16 %v240
      %v367 = vunpack.c.l.b16 %v241
      %v368 = vunpack.c.l.b16 %v242
      %v369 = vunpack.c.l.b16 %v243
      %v370 = vunpack.c.l.b16 %v244
      %v371 = vunpack.c.l.b16 %v245
      %v372 = vunpack.c.l.b16 %v246
      %v373 = vunpack.c.l.b16 %v247
      %v374 = vunpack.c.l.b16 %v248
      %v375 = vunpack.c.l.b16 %v249
      %v376 = vunpack.c.l.b16 %v250
      %v377 = vunpack.c.l.b16 %v251
      %v378 = vunpack.c.l.b16 %v252
      %v379 = vunpack.c.l.b16 %v253
      %v380 = vpack.c.b16 %v326, %v325
      %v381 = vpack.c.b16 %v328, %v327
      %v382 = vpack.c.b16 %v330, %v329
      %v383 = vpack.c.b16 %v332, %v331
      %v384 = vpack.c.b16 %v334, %v333
      %v385 = vpack.c.b16 %v336, %v335
      %v386 = vpack.c.b16 %v338, %v337
      %v387 = vpack.c.b16 %v340, %v339
      %v388 = vpack.c.b16 %v342, %v341
      %v389 = vpack.c.b16 %v344, %v343
      %v390 = vpack.c.b16 %v346, %v345
      %v391 = vpack.c.b16 %v348, %v347
      %v392 = vpack.c.b16 %v350, %v349
      %v393 = vpack.c.b16 %v352, %v351
      %v394 = vpack.c.b16 %v354, %v353
      %v395 = vpack.c.b16 %v356, %v355
      %v396 = vpack.c.b16 %v358, %v357
      %v397 = vpack.c.b16 %v360, %v359
      %v398 = vpack.c.b16 %v362, %v361
      %v399 = vpack.c.b16 %v364, %v363
      %v400 = vpack.c.b16 %v366, %v365
      %v401 = vpack.c.b16 %v368, %v367
      %v402 = vpack.c.b16 %v370, %v369
      %v403 = vpack.c.b16 %v372, %v371
      %v404 = vpack.c.b16 %v374, %v373
      %v405 = vpack.c.b16 %v376, %v375
      %v406 = vpack.c.b16 %v378, %v377
      %v407 = vpack.c.b16 %v379, %v379
      %v452 = vunpack.c.l.b16 %v254
      %v453 = vunpack.c.l.b16 %v255
      %v454 = vunpack.c.l.b16 %v256
      %v455 = vunpack.c.l.b16 %v257
      %v456 = vunpack.c.l.b16 %v258
      %v457 = vunpack.c.l.b16 %v259
      %v458 = vunpack.c.l.b16 %v260
      %v459 = vunpack.c.l.b16 %v261
      %v460 = vunpack.c.l.b16 %v262
      %v461 = vunpack.c.l.b16 %v263
      %v462 = vunpack.c.l.b16 %v264
      %v463 = vunpack.c.l.b16 %v265
      %v464 = vunpack.c.l.b16 %v266
      %v465 = vunpack.c.l.b16 %v267
      %v466 = vunpack.c.l.b16 %v268
      %v467 = vunpack.c.l.b16 %v269
      %v468 = vpack.c.b16 %v453, %v452
      %v469 = vpack.c.b16 %v455, %v454
      %v470 = vpack.c.b16 %v457, %v456
      %v471 = vpack.c.b16 %v459, %v458
      %v472 = vpack.c.b16 %v461, %v460
      %v473 = vpack.c.b16 %v463, %v462
      %v474 = vpack.c.b16 %v465, %v464
      %v475 = vpack.c.b16 %v467, %v466
      %484 = vmatprep.subr.bf16.mxu0 0
      %485 = vmatpush1.bf16.msra.mxu0 %v468
      %486 = vmatprep.subr.bf16.mxu0 0
      %487 = vmatpush1.bf16.msra.mxu0 %v469
      %488 = vmatprep.subr.bf16.mxu0 0
      %489 = vmatpush1.bf16.msra.mxu0 %v470
      %490 = vmatprep.subr.bf16.mxu0 0
      %491 = vmatpush1.bf16.msra.mxu0 %v471
      %492 = vmatprep.subr.bf16.mxu0 0
      %493 = vmatpush1.bf16.msra.mxu0 %v472
      %494 = vmatprep.subr.bf16.mxu0 0
      %495 = vmatpush1.bf16.msra.mxu0 %v473
      %496 = vmatprep.subr.bf16.mxu0 0
      %497 = vmatpush1.bf16.msra.mxu0 %v474
      %498 = vmatprep.subr.bf16.mxu0 0
      %499 = vmatpush1.bf16.msra.mxu0 %v475
      %500 = vmatprep.subr.bf16.mxu0 0
      %501 = vmatpush1.bf16.msra.mxu0 0
      %502 = vmatprep.subr.bf16.mxu0 0
      %503 = vmatpush1.bf16.msra.mxu0 0
      %504 = vmatprep.subr.bf16.mxu0 0
      %505 = vmatpush1.bf16.msra.mxu0 0
      %506 = vmatprep.subr.bf16.mxu0 0
      %507 = vmatpush1.bf16.msra.mxu0 0
      %508 = vmatprep.subr.bf16.mxu0 0
      %509 = vmatpush1.bf16.msra.mxu0 0
      %510 = vmatprep.subr.bf16.mxu0 0
      %511 = vmatpush1.bf16.msra.mxu0 0
      %512 = vmatprep.subr.bf16.mxu0 0
      %513 = vmatpush1.bf16.msra.mxu0 0
      %514 = vmatprep.subr.bf16.mxu0 0
      %515 = vmatpush1.bf16.msra.mxu0 0
      %516 = vmatprep.mubr.bf16.mxu0 0
      %517 = vmatmul.mubr.bf16.gmra.mrb[0].mxu0 %v380
      %v518 = vpop.f32.mrb[0].mxu0
      %v519 = vadd.f32 0.0, %v518
      %v520 = vpop.f32.mrb[0].mxu0
      %v521 = vpop.f32.mrb[0].mxu0
      %v522 = vadd.f32 0.0, %v521
      %v523 = vpop.f32.mrb[0].mxu0
      %524 = vmatprep.mubr.bf16.mxu0 0
      %525 = vmatmul.mubr.bf16.gmra.mrb[0].mxu0 %v381
      %v526 = vpop.f32.mrb[0].mxu0
      %v527 = vadd.f32 0.0, %v526
      %v528 = vpop.f32.mrb[0].mxu0
      %v529 = vpop.f32.mrb[0].mxu0
      %v530 = vadd.f32 0.0, %v529
      %v531 = vpop.f32.mrb[0].mxu0
      %532 = vmatprep.mubr.bf16.mxu0 0
      %533 = vmatmul.mubr.bf16.gmra.mrb[0].mxu0 %v382
      %v534 = vpop.f32.mrb[0].mxu0
      %v535 = vadd.f32 0.0, %v534
      %v536 = vpop.f32.mrb[0].mxu0
      %v537 = vpop.f32.mrb[0].mxu0
      %v538 = vadd.f32 0.0, %v537
      %v539 = vpop.f32.mrb[0].mxu0
      %540 = vmatprep.mubr.bf16.mxu0 0
      %541 = vmatmul.mubr.bf16.gmra.mrb[0].mxu0 %v383
      %v542 = vpop.f32.mrb[0].mxu0
      %v543 = vadd.f32 0.0, %v542
      %v544 = vpop.f32.mrb[0].mxu0
      %v545 = vpop.f32.mrb[0].mxu0
      %v546 = vadd.f32 0.0, %v545
      %v547 = vpop.f32.mrb[0].mxu0
      %548 = vmatprep.mubr.bf16.mxu0 0
      %549 = vmatmul.mubr.bf16.gmra.mrb[0].mxu0 %v384
      %v550 = vpop.f32.mrb[0].mxu0
      %v551 = vadd.f32 0.0, %v550
      %v552 = vpop.f32.mrb[0].mxu0
      %v553 = vpop.f32.mrb[0].mxu0
      %v554 = vadd.f32 0.0, %v553
      %v555 = vpop.f32.mrb[0].mxu0
      %556 = vmatprep.mubr.bf16.mxu0 0
      %557 = vmatmul.mubr.bf16.gmra.mrb[0].mxu0 %v385
      %v558 = vpop.f32.mrb[0].mxu0
      %v559 = vadd.f32 0.0, %v558
      %v560 = vpop.f32.mrb[0].mxu0
      %v561 = vpop.f32.mrb[0].mxu0
      %v562 = vadd.f32 0.0, %v561
      %v563 = vpop.f32.mrb[0].mxu0
      %564 = vmatprep.mubr.bf16.mxu0 0
      %565 = vmatmul.mubr.bf16.gmra.mrb[0].mxu0 %v386
      %v566 = vpop.f32.mrb[0].mxu0
      %v567 = vadd.f32 0.0, %v566
      %v568 = vpop.f32.mrb[0].mxu0
      %v569 = vpop.f32.mrb[0].mxu0
      %v570 = vadd.f32 0.0, %v569
      %v571 = vpop.f32.mrb[0].mxu0
      %572 = vmatprep.mubr.bf16.mxu0 0
      %573 = vmatmul.mubr.bf16.gmra.mrb[0].mxu0 %v387
      %v574 = vpop.f32.mrb[0].mxu0
      %v575 = vadd.f32 0.0, %v574
      %v576 = vpop.f32.mrb[0].mxu0
      %v577 = vpop.f32.mrb[0].mxu0
      %v578 = vadd.f32 0.0, %v577
      %v579 = vpop.f32.mrb[0].mxu0
      %580 = vmatprep.mubr.bf16.mxu0 0
      %581 = vmatmul.mubr.bf16.gmra.mrb[0].mxu0 %v388
      %v582 = vpop.f32.mrb[0].mxu0
      %v583 = vadd.f32 0.0, %v582
      %v584 = vpop.f32.mrb[0].mxu0
      %v585 = vpop.f32.mrb[0].mxu0
      %v586 = vadd.f32 0.0, %v585
      %v587 = vpop.f32.mrb[0].mxu0
      %588 = vmatprep.mubr.bf16.mxu0 0
      %589 = vmatmul.mubr.bf16.gmra.mrb[0].mxu0 %v389
      %v590 = vpop.f32.mrb[0].mxu0
      %v591 = vadd.f32 0.0, %v590
      %v592 = vpop.f32.mrb[0].mxu0
      %v593 = vpop.f32.mrb[0].mxu0
      %v594 = vadd.f32 0.0, %v593
      %v595 = vpop.f32.mrb[0].mxu0
      %596 = vmatprep.mubr.bf16.mxu0 0
      %597 = vmatmul.mubr.bf16.gmra.mrb[0].mxu0 %v390
      %v598 = vpop.f32.mrb[0].mxu0
      %v599 = vadd.f32 0.0, %v598
      %v600 = vpop.f32.mrb[0].mxu0
      %v601 = vpop.f32.mrb[0].mxu0
      %v602 = vadd.f32 0.0, %v601
      %v603 = vpop.f32.mrb[0].mxu0
      %604 = vmatprep.mubr.bf16.mxu0 0
      %605 = vmatmul.mubr.bf16.gmra.mrb[0].mxu0 %v391
      %v606 = vpop.f32.mrb[0].mxu0
      %v607 = vadd.f32 0.0, %v606
      %v608 = vpop.f32.mrb[0].mxu0
      %v609 = vpop.f32.mrb[0].mxu0
      %v610 = vadd.f32 0.0, %v609
      %v611 = vpop.f32.mrb[0].mxu0
      %612 = vmatprep.mubr.bf16.mxu0 0
      %613 = vmatmul.mubr.bf16.gmra.mrb[0].mxu0 %v392
      %v614 = vpop.f32.mrb[0].mxu0
      %v615 = vadd.f32 0.0, %v614
      %v616 = vpop.f32.mrb[0].mxu0
      %v617 = vpop.f32.mrb[0].mxu0
      %v618 = vadd.f32 0.0, %v617
      %v619 = vpop.f32.mrb[0].mxu0
      %620 = vmatprep.mubr.bf16.mxu0 0
      %621 = vmatmul.mubr.bf16.gmra.mrb[0].mxu0 %v393
      %v622 = vpop.f32.mrb[0].mxu0
      %v623 = vadd.f32 0.0, %v622
      %v624 = vpop.f32.mrb[0].mxu0
      %v625 = vpop.f32.mrb[0].mxu0
      %v626 = vadd.f32 0.0, %v625
      %v627 = vpop.f32.mrb[0].mxu0
      %628 = vmatprep.mubr.bf16.mxu0 0
      %629 = vmatmul.mubr.bf16.gmra.mrb[0].mxu0 %v394
      %v630 = vpop.f32.mrb[0].mxu0
      %v631 = vadd.f32 0.0, %v630
      %v632 = vpop.f32.mrb[0].mxu0
      %v633 = vpop.f32.mrb[0].mxu0
      %v634 = vadd.f32 0.0, %v633
      %v635 = vpop.f32.mrb[0].mxu0
      %636 = vmatprep.mubr.bf16.mxu0 0
      %637 = vmatmul.mubr.bf16.gmra.mrb[0].mxu0 %v395
      %v638 = vpop.f32.mrb[0].mxu0
      %v639 = vadd.f32 0.0, %v638
      %v640 = vpop.f32.mrb[0].mxu0
      %v641 = vpop.f32.mrb[0].mxu0
      %v642 = vadd.f32 0.0, %v641
      %v643 = vpop.f32.mrb[0].mxu0
      %644 = vmatprep.mubr.bf16.mxu0 0
      %645 = vmatmul.mubr.bf16.gmra.mrb[0].mxu0 %v396
      %v646 = vpop.f32.mrb[0].mxu0
      %v647 = vadd.f32 0.0, %v646
      %v648 = vpop.f32.mrb[0].mxu0
      %v649 = vpop.f32.mrb[0].mxu0
      %v650 = vadd.f32 0.0, %v649
      %v651 = vpop.f32.mrb[0].mxu0
      %652 = vmatprep.mubr.bf16.mxu0 0
      %653 = vmatmul.mubr.bf16.gmra.mrb[0].mxu0 %v397
      %v654 = vpop.f32.mrb[0].mxu0
      %v655 = vadd.f32 0.0, %v654
      %v656 = vpop.f32.mrb[0].mxu0
      %v657 = vpop.f32.mrb[0].mxu0
      %v658 = vadd.f32 0.0, %v657
      %v659 = vpop.f32.mrb[0].mxu0
      %660 = vmatprep.mubr.bf16.mxu0 0
      %661 = vmatmul.mubr.bf16.gmra.mrb[0].mxu0 %v398
      %v662 = vpop.f32.mrb[0].mxu0
      %v663 = vadd.f32 0.0, %v662
      %v664 = vpop.f32.mrb[0].mxu0
      %v665 = vpop.f32.mrb[0].mxu0
      %v666 = vadd.f32 0.0, %v665
      %v667 = vpop.f32.mrb[0].mxu0
      %668 = vmatprep.mubr.bf16.mxu0 0
      %669 = vmatmul.mubr.bf16.gmra.mrb[0].mxu0 %v399
      %v670 = vpop.f32.mrb[0].mxu0
      %v671 = vadd.f32 0.0, %v670
      %v672 = vpop.f32.mrb[0].mxu0
      %v673 = vpop.f32.mrb[0].mxu0
      %v674 = vadd.f32 0.0, %v673
      %v675 = vpop.f32.mrb[0].mxu0
      %676 = vmatprep.mubr.bf16.mxu0 0
      %677 = vmatmul.mubr.bf16.gmra.mrb[0].mxu0 %v400
      %v678 = vpop.f32.mrb[0].mxu0
      %v679 = vadd.f32 0.0, %v678
      %v680 = vpop.f32.mrb[0].mxu0
      %v681 = vpop.f32.mrb[0].mxu0
      %v682 = vadd.f32 0.0, %v681
      %v683 = vpop.f32.mrb[0].mxu0
      %684 = vmatprep.mubr.bf16.mxu0 0
      %685 = vmatmul.mubr.bf16.gmra.mrb[0].mxu0 %v401
      %v686 = vpop.f32.mrb[0].mxu0
      %v687 = vadd.f32 0.0, %v686
      %v688 = vpop.f32.mrb[0].mxu0
      %v689 = vpop.f32.mrb[0].mxu0
      %v690 = vadd.f32 0.0, %v689
      %v691 = vpop.f32.mrb[0].mxu0
      %692 = vmatprep.mubr.bf16.mxu0 0
      %693 = vmatmul.mubr.bf16.gmra.mrb[0].mxu0 %v402
      %v694 = vpop.f32.mrb[0].mxu0
      %v695 = vadd.f32 0.0, %v694
      %v696 = vpop.f32.mrb[0].mxu0
      %v697 = vpop.f32.mrb[0].mxu0
      %v698 = vadd.f32 0.0, %v697
      %v699 = vpop.f32.mrb[0].mxu0
      %700 = vmatprep.mubr.bf16.mxu0 0
      %701 = vmatmul.mubr.bf16.gmra.mrb[0].mxu0 %v403
      %v702 = vpop.f32.mrb[0].mxu0
      %v703 = vadd.f32 0.0, %v702
      %v704 = vpop.f32.mrb[0].mxu0
      %v705 = vpop.f32.mrb[0].mxu0
      %v706 = vadd.f32 0.0, %v705
      %v707 = vpop.f32.mrb[0].mxu0
      %708 = vmatprep.mubr.bf16.mxu0 0
      %709 = vmatmul.mubr.bf16.gmra.mrb[0].mxu0 %v404
      %v710 = vpop.f32.mrb[0].mxu0
      %v711 = vadd.f32 0.0, %v710
      %v712 = vpop.f32.mrb[0].mxu0
      %v713 = vpop.f32.mrb[0].mxu0
      %v714 = vadd.f32 0.0, %v713
      %v715 = vpop.f32.mrb[0].mxu0
      %716 = vmatprep.mubr.bf16.mxu0 0
      %717 = vmatmul.mubr.bf16.gmra.mrb[0].mxu0 %v405
      %v718 = vpop.f32.mrb[0].mxu0
      %v719 = vadd.f32 0.0, %v718
      %v720 = vpop.f32.mrb[0].mxu0
      %v721 = vpop.f32.mrb[0].mxu0
      %v722 = vadd.f32 0.0, %v721
      %v723 = vpop.f32.mrb[0].mxu0
      %724 = vmatprep.mubr.bf16.mxu0 0
      %725 = vmatmul.mubr.bf16.gmra.mrb[0].mxu0 %v406
      %v726 = vpop.f32.mrb[0].mxu0
      %v727 = vadd.f32 0.0, %v726
      %v728 = vpop.f32.mrb[0].mxu0
      %v729 = vpop.f32.mrb[0].mxu0
      %v730 = vadd.f32 0.0, %v729
      %v731 = vpop.f32.mrb[0].mxu0
      %732 = vmatprep.mubr.bf16.mxu0 0
      %733 = vmatmul.mubr.bf16.gmra.mrb[0].mxu0 %v407
      %v734 = vpop.f32.mrb[0].mxu0
      %v735 = vadd.f32 0.0, %v734
      %v736 = vpop.f32.mrb[0].mxu0
      %v737 = vpop.f32.mrb[0].mxu0
      %v738 = vpop.f32.mrb[0].mxu0
      %739 = vdwg.mxu0
      %v740 = vmax.f32 %v519, 0.0
      %v741 = vmax.f32 %v522, 0.0
      %v742 = vmax.f32 %v527, 0.0
      %v743 = vmax.f32 %v530, 0.0
      %v744 = vmax.f32 %v535, 0.0
      %v745 = vmax.f32 %v538, 0.0
      %v746 = vmax.f32 %v543, 0.0
      %v747 = vmax.f32 %v546, 0.0
      %v748 = vmax.f32 %v551, 0.0
      %v749 = vmax.f32 %v554, 0.0
      %v750 = vmax.f32 %v559, 0.0
      %v751 = vmax.f32 %v562, 0.0
      %v752 = vmax.f32 %v567, 0.0
      %v753 = vmax.f32 %v570, 0.0
      %v754 = vmax.f32 %v575, 0.0
      %v755 = vmax.f32 %v578, 0.0
      %v756 = vmax.f32 %v583, 0.0
      %v757 = vmax.f32 %v586, 0.0
      %v758 = vmax.f32 %v591, 0.0
      %v759 = vmax.f32 %v594, 0.0
      %v760 = vmax.f32 %v599, 0.0
      %v761 = vmax.f32 %v602, 0.0
      %v762 = vmax.f32 %v607, 0.0
      %v763 = vmax.f32 %v610, 0.0
      %v764 = vmax.f32 %v615, 0.0
      %v765 = vmax.f32 %v618, 0.0
      %v766 = vmax.f32 %v623, 0.0
      %v767 = vmax.f32 %v626, 0.0
      %v768 = vmax.f32 %v631, 0.0
      %v769 = vmax.f32 %v634, 0.0
      %v770 = vmax.f32 %v639, 0.0
      %v771 = vmax.f32 %v642, 0.0
      %v772 = vmax.f32 %v647, 0.0
      %v773 = vmax.f32 %v650, 0.0
      %v774 = vmax.f32 %v655, 0.0
      %v775 = vmax.f32 %v658, 0.0
      %v776 = vmax.f32 %v663, 0.0
      %v777 = vmax.f32 %v666, 0.0
      %v778 = vmax.f32 %v671, 0.0
      %v779 = vmax.f32 %v674, 0.0
      %v780 = vmax.f32 %v679, 0.0
      %v781 = vmax.f32 %v682, 0.0
      %v782 = vmax.f32 %v687, 0.0
      %v783 = vmax.f32 %v690, 0.0
      %v784 = vmax.f32 %v695, 0.0
      %v785 = vmax.f32 %v698, 0.0
      %v786 = vmax.f32 %v703, 0.0
      %v787 = vmax.f32 %v706, 0.0
      %v788 = vmax.f32 %v711, 0.0
      %v789 = vmax.f32 %v714, 0.0
      %v790 = vmax.f32 %v719, 0.0
      %v791 = vmax.f32 %v722, 0.0
      %v792 = vmax.f32 %v727, 0.0
      %v793 = vmax.f32 %v730, 0.0
      %v794 = vmax.f32 %v735, 0.0
      %v795 = vpack.c.bf16 %v741, %v740
      %v796 = vpack.c.bf16 %v743, %v742
      %v797 = vpack.c.bf16 %v745, %v744
      %v798 = vpack.c.bf16 %v747, %v746
      %v799 = vpack.c.bf16 %v749, %v748
      %v800 = vpack.c.bf16 %v751, %v750
      %v801 = vpack.c.bf16 %v753, %v752
      %v802 = vpack.c.bf16 %v755, %v754
      %v803 = vpack.c.bf16 %v757, %v756
      %v804 = vpack.c.bf16 %v759, %v758
      %v805 = vpack.c.bf16 %v761, %v760
      %v806 = vpack.c.bf16 %v763, %v762
      %v807 = vpack.c.bf16 %v765, %v764
      %v808 = vpack.c.bf16 %v767, %v766
      %v809 = vpack.c.bf16 %v769, %v768
      %v810 = vpack.c.bf16 %v771, %v770
      %v811 = vpack.c.bf16 %v773, %v772
      %v812 = vpack.c.bf16 %v775, %v774
      %v813 = vpack.c.bf16 %v777, %v776
      %v814 = vpack.c.bf16 %v779, %v778
      %v815 = vpack.c.bf16 %v781, %v780
      %v816 = vpack.c.bf16 %v783, %v782
      %v817 = vpack.c.bf16 %v785, %v784
      %v818 = vpack.c.bf16 %v787, %v786
      %v819 = vpack.c.bf16 %v789, %v788
      %v820 = vpack.c.bf16 %v791, %v790
      %v821 = vpack.c.bf16 %v793, %v792
      %822 = vst [vmem:[#allocation2] sm:$0xff] %v795
      %823 = vst [vmem:[#allocation2 + $0x18] sm:$0xff] %v796
      %824 = vst [vmem:[#allocation2 + $0x30] sm:$0xff] %v797
      %825 = vst [vmem:[#allocation2 + $0x48] sm:$0xff] %v798
      %826 = vst [vmem:[#allocation2 + $0x60] sm:$0xff] %v799
      %827 = vst [vmem:[#allocation2 + $0x78] sm:$0xff] %v800
      %828 = vst [vmem:[#allocation2 + $0x90] sm:$0xff] %v801
      %829 = vst [vmem:[#allocation2 + $0xa8] sm:$0xff] %v802
      %830 = vst [vmem:[#allocation2 + $0xc0] sm:$0xff] %v803
      %831 = vst [vmem:[#allocation2 + $0xd8] sm:$0xff] %v804
      %832 = vst [vmem:[#allocation2 + $0xf0] sm:$0xff] %v805
      %833 = vst [vmem:[#allocation2 + $0x108] sm:$0xff] %v806
      %834 = vst [vmem:[#allocation2 + $0x120] sm:$0xff] %v807
      %835 = vst [vmem:[#allocation2 + $0x138] sm:$0xff] %v808
      %836 = vst [vmem:[#allocation2 + $0x150] sm:$0xff] %v809
      %837 = vst [vmem:[#allocation2 + $0x168] sm:$0xff] %v810
      %838 = vst [vmem:[#allocation2 + $0x180] sm:$0xff] %v811
      %839 = vst [vmem:[#allocation2 + $0x198] sm:$0xff] %v812
      %840 = vst [vmem:[#allocation2 + $0x1b0] sm:$0xff] %v813
      %841 = vst [vmem:[#allocation2 + $0x1c8] sm:$0xff] %v814
      %842 = vst [vmem:[#allocation2 + $0x1e0] sm:$0xff] %v815
      %843 = vst [vmem:[#allocation2 + $0x1f8] sm:$0xff] %v816
      %844 = vst [vmem:[#allocation2 + $0x210] sm:$0xff] %v817
      %845 = vst [vmem:[#allocation2 + $0x228] sm:$0xff] %v818
      %846 = vst [vmem:[#allocation2 + $0x240] sm:$0xff] %v819
      %847 = vst [vmem:[#allocation2 + $0x258] sm:$0xff] %v820
      %848 = vst [vmem:[#allocation2 + $0x270] sm:$0xff] %v821
      %v849 = vpack.c.bf16 %v794, %v794
      %vm850 = vsmask.f32 7424
      %v852 = vshrl.u32 %v795, 16
      %v854 = vshll.u32 %v795, 16
      %v856 = vrot.slane %v854, 1
      %v857 = vor.u32 %v852, %v856
      %v859 = vshll.u32 %v796, 16
      %v861 = vrot.slane %v859, 1
      %v862 = vsel %vm850, %v857, %v861
      %v863 = vshrl.u32 %v796, 16
      %v865 = vor.u32 %v863, %v861
      %v867 = vshll.u32 %v797, 16
      %v869 = vrot.slane %v867, 1
      %v870 = vsel %vm850, %v865, %v869
      %v871 = vshrl.u32 %v797, 16
      %v873 = vor.u32 %v871, %v869
      %v875 = vshll.u32 %v798, 16
      %v877 = vrot.slane %v875, 1
      %v878 = vsel %vm850, %v873, %v877
      %v879 = vshrl.u32 %v798, 16
      %v881 = vor.u32 %v879, %v877
      %v883 = vshll.u32 %v799, 16
      %v885 = vrot.slane %v883, 1
      %v886 = vsel %vm850, %v881, %v885
      %v887 = vshrl.u32 %v799, 16
      %v889 = vor.u32 %v887, %v885
      %v891 = vshll.u32 %v800, 16
      %v893 = vrot.slane %v891, 1
      %v894 = vsel %vm850, %v889, %v893
      %v895 = vshrl.u32 %v800, 16
      %v897 = vor.u32 %v895, %v893
      %v899 = vshll.u32 %v801, 16
      %v901 = vrot.slane %v899, 1
      %v902 = vsel %vm850, %v897, %v901
      %v903 = vshrl.u32 %v801, 16
      %v905 = vor.u32 %v903, %v901
      %v907 = vshll.u32 %v802, 16
      %v909 = vrot.slane %v907, 1
      %v910 = vsel %vm850, %v905, %v909
      %v911 = vshrl.u32 %v802, 16
      %v913 = vor.u32 %v911, %v909
      %v915 = vshll.u32 %v803, 16
      %v917 = vrot.slane %v915, 1
      %v918 = vsel %vm850, %v913, %v917
      %v919 = vshrl.u32 %v803, 16
      %v921 = vor.u32 %v919, %v917
      %v923 = vshll.u32 %v804, 16
      %v925 = vrot.slane %v923, 1
      %v926 = vsel %vm850, %v921, %v925
      %v927 = vshrl.u32 %v804, 16
      %v929 = vor.u32 %v927, %v925
      %v931 = vshll.u32 %v805, 16
      %v933 = vrot.slane %v931, 1
      %v934 = vsel %vm850, %v929, %v933
      %v935 = vshrl.u32 %v805, 16
      %v937 = vor.u32 %v935, %v933
      %v939 = vshll.u32 %v806, 16
      %v941 = vrot.slane %v939, 1
      %v942 = vsel %vm850, %v937, %v941
      %v943 = vshrl.u32 %v806, 16
      %v945 = vor.u32 %v943, %v941
      %v947 = vshll.u32 %v807, 16
      %v949 = vrot.slane %v947, 1
      %v950 = vsel %vm850, %v945, %v949
      %v951 = vshrl.u32 %v807, 16
      %v953 = vor.u32 %v951, %v949
      %v955 = vshll.u32 %v808, 16
      %v957 = vrot.slane %v955, 1
      %v958 = vsel %vm850, %v953, %v957
      %v959 = vshrl.u32 %v808, 16
      %v961 = vor.u32 %v959, %v957
      %v963 = vshll.u32 %v809, 16
      %v965 = vrot.slane %v963, 1
      %v966 = vsel %vm850, %v961, %v965
      %v967 = vshrl.u32 %v809, 16
      %v969 = vor.u32 %v967, %v965
      %v971 = vshll.u32 %v810, 16
      %v973 = vrot.slane %v971, 1
      %v974 = vsel %vm850, %v969, %v973
      %v975 = vshrl.u32 %v810, 16
      %v977 = vor.u32 %v975, %v973
      %v979 = vshll.u32 %v811, 16
      %v981 = vrot.slane %v979, 1
      %v982 = vsel %vm850, %v977, %v981
      %v983 = vshrl.u32 %v811, 16
      %v985 = vor.u32 %v983, %v981
      %v987 = vshll.u32 %v812, 16
      %v989 = vrot.slane %v987, 1
      %v990 = vsel %vm850, %v985, %v989
      %v991 = vshrl.u32 %v812, 16
      %v993 = vor.u32 %v991, %v989
      %v995 = vshll.u32 %v813, 16
      %v997 = vrot.slane %v995, 1
      %v998 = vsel %vm850, %v993, %v997
      %v999 = vshrl.u32 %v813, 16
      %v1001 = vor.u32 %v999, %v997
      %v1003 = vshll.u32 %v814, 16
      %v1005 = vrot.slane %v1003, 1
      %v1006 = vsel %vm850, %v1001, %v1005
      %v1007 = vshrl.u32 %v814, 16
      %v1009 = vor.u32 %v1007, %v1005
      %v1011 = vshll.u32 %v815, 16
      %v1013 = vrot.slane %v1011, 1
      %v1014 = vsel %vm850, %v1009, %v1013
      %v1015 = vshrl.u32 %v815, 16
      %v1017 = vor.u32 %v1015, %v1013
      %v1019 = vshll.u32 %v816, 16
      %v1021 = vrot.slane %v1019, 1
      %v1022 = vsel %vm850, %v1017, %v1021
      %v1023 = vshrl.u32 %v816, 16
      %v1025 = vor.u32 %v1023, %v1021
      %v1027 = vshll.u32 %v817, 16
      %v1029 = vrot.slane %v1027, 1
      %v1030 = vsel %vm850, %v1025, %v1029
      %v1031 = vshrl.u32 %v817, 16
      %v1033 = vor.u32 %v1031, %v1029
      %v1035 = vshll.u32 %v818, 16
      %v1037 = vrot.slane %v1035, 1
      %v1038 = vsel %vm850, %v1033, %v1037
      %v1039 = vshrl.u32 %v818, 16
      %v1041 = vor.u32 %v1039, %v1037
      %v1043 = vshll.u32 %v819, 16
      %v1045 = vrot.slane %v1043, 1
      %v1046 = vsel %vm850, %v1041, %v1045
      %v1047 = vshrl.u32 %v819, 16
      %v1049 = vor.u32 %v1047, %v1045
      %v1051 = vshll.u32 %v820, 16
      %v1053 = vrot.slane %v1051, 1
      %v1054 = vsel %vm850, %v1049, %v1053
      %v1055 = vshrl.u32 %v820, 16
      %v1057 = vor.u32 %v1055, %v1053
      %v1059 = vshll.u32 %v821, 16
      %v1061 = vrot.slane %v1059, 1
      %v1062 = vsel %vm850, %v1057, %v1061
      %v1063 = vshrl.u32 %v821, 16
      %v1065 = vor.u32 %v1063, %v1061
      %v1067 = vshll.u32 %v849, 16
      %v1069 = vrot.slane %v1067, 1
      %v1070 = vsel %vm850, %v1065, %v1069
      %1098 = vst [vmem:[#allocation2 + $0x8] sm:$0xff] %v862
      %1099 = vst [vmem:[#allocation2 + $0x20] sm:$0xff] %v870
      %1100 = vst [vmem:[#allocation2 + $0x38] sm:$0xff] %v878
      %1101 = vst [vmem:[#allocation2 + $0x50] sm:$0xff] %v886
      %1102 = vst [vmem:[#allocation2 + $0x68] sm:$0xff] %v894
      %1103 = vst [vmem:[#allocation2 + $0x80] sm:$0xff] %v902
      %1104 = vst [vmem:[#allocation2 + $0x98] sm:$0xff] %v910
      %1105 = vst [vmem:[#allocation2 + $0xb0] sm:$0xff] %v918
      %1106 = vst [vmem:[#allocation2 + $0xc8] sm:$0xff] %v926
      %1107 = vst [vmem:[#allocation2 + $0xe0] sm:$0xff] %v934
      %1108 = vst [vmem:[#allocation2 + $0xf8] sm:$0xff] %v942
      %1109 = vst [vmem:[#allocation2 + $0x110] sm:$0xff] %v950
      %1110 = vst [vmem:[#allocation2 + $0x128] sm:$0xff] %v958
      %1111 = vst [vmem:[#allocation2 + $0x140] sm:$0xff] %v966
      %1112 = vst [vmem:[#allocation2 + $0x158] sm:$0xff] %v974
      %1113 = vst [vmem:[#allocation2 + $0x170] sm:$0xff] %v982
      %1114 = vst [vmem:[#allocation2 + $0x188] sm:$0xff] %v990
      %1115 = vst [vmem:[#allocation2 + $0x1a0] sm:$0xff] %v998
      %1116 = vst [vmem:[#allocation2 + $0x1b8] sm:$0xff] %v1006
      %1117 = vst [vmem:[#allocation2 + $0x1d0] sm:$0xff] %v1014
      %1118 = vst [vmem:[#allocation2 + $0x1e8] sm:$0xff] %v1022
      %1119 = vst [vmem:[#allocation2 + $0x200] sm:$0xff] %v1030
      %1120 = vst [vmem:[#allocation2 + $0x218] sm:$0xff] %v1038
      %1121 = vst [vmem:[#allocation2 + $0x230] sm:$0xff] %v1046
      %1122 = vst [vmem:[#allocation2 + $0x248] sm:$0xff] %v1054
      %1123 = vst [vmem:[#allocation2 + $0x260] sm:$0xff] %v1062
      %1124 = vst [vmem:[#allocation2 + $0x278] sm:$0xff] %v1070
      %vm1153 = vcmask 1046528
      %v1154 = vrot.slane %v795, 1
      %v1155 = vrot.slane %v796, 1
      %v1156 = vsel %vm1153, %v1154, %v1155
      %v1157 = vrot.slane %v797, 1
      %v1158 = vsel %vm1153, %v1155, %v1157
      %v1159 = vrot.slane %v798, 1
      %v1160 = vsel %vm1153, %v1157, %v1159
      %v1161 = vrot.slane %v799, 1
      %v1162 = vsel %vm1153, %v1159, %v1161
      %v1163 = vrot.slane %v800, 1
      %v1164 = vsel %vm1153, %v1161, %v1163
      %v1165 = vrot.slane %v801, 1
      %v1166 = vsel %vm1153, %v1163, %v1165
      %v1167 = vrot.slane %v802, 1
      %v1168 = vsel %vm1153, %v1165, %v1167
      %v1169 = vrot.slane %v803, 1
      %v1170 = vsel %vm1153, %v1167, %v1169
      %v1171 = vrot.slane %v804, 1
      %v1172 = vsel %vm1153, %v1169, %v1171
      %v1173 = vrot.slane %v805, 1
      %v1174 = vsel %vm1153, %v1171, %v1173
      %v1175 = vrot.slane %v806, 1
      %v1176 = vsel %vm1153, %v1173, %v1175
      %v1177 = vrot.slane %v807, 1
      %v1178 = vsel %vm1153, %v1175, %v1177
      %v1179 = vrot.slane %v808, 1
      %v1180 = vsel %vm1153, %v1177, %v1179
      %v1181 = vrot.slane %v809, 1
      %v1182 = vsel %vm1153, %v1179, %v1181
      %v1183 = vrot.slane %v810, 1
      %v1184 = vsel %vm1153, %v1181, %v1183
      %v1185 = vrot.slane %v811, 1
      %v1186 = vsel %vm1153, %v1183, %v1185
      %v1187 = vrot.slane %v812, 1
      %v1188 = vsel %vm1153, %v1185, %v1187
      %v1189 = vrot.slane %v813, 1
      %v1190 = vsel %vm1153, %v1187, %v1189
      %v1191 = vrot.slane %v814, 1
      %v1192 = vsel %vm1153, %v1189, %v1191
      %v1193 = vrot.slane %v815, 1
      %v1194 = vsel %vm1153, %v1191, %v1193
      %v1195 = vrot.slane %v816, 1
      %v1196 = vsel %vm1153, %v1193, %v1195
      %v1197 = vrot.slane %v817, 1
      %v1198 = vsel %vm1153, %v1195, %v1197
      %v1199 = vrot.slane %v818, 1
      %v1200 = vsel %vm1153, %v1197, %v1199
      %v1201 = vrot.slane %v819, 1
      %v1202 = vsel %vm1153, %v1199, %v1201
      %v1203 = vrot.slane %v820, 1
      %v1204 = vsel %vm1153, %v1201, %v1203
      %v1205 = vrot.slane %v821, 1
      %v1206 = vsel %vm1153, %v1203, %v1205
      %v1207 = vrot.slane %v849, 1
      %v1208 = vsel %vm1153, %v1205, %v1207
      %1236 = vst [vmem:[#allocation2 + $0x10] sm:$0xff] %v1156
      %1237 = vst [vmem:[#allocation2 + $0x28] sm:$0xff] %v1158
      %1238 = vst [vmem:[#allocation2 + $0x40] sm:$0xff] %v1160
      %1239 = vst [vmem:[#allocation2 + $0x58] sm:$0xff] %v1162
      %1240 = vst [vmem:[#allocation2 + $0x70] sm:$0xff] %v1164
      %1241 = vst [vmem:[#allocation2 + $0x88] sm:$0xff] %v1166
      %1242 = vst [vmem:[#allocation2 + $0xa0] sm:$0xff] %v1168
      %1243 = vst [vmem:[#allocation2 + $0xb8] sm:$0xff] %v1170
      %1244 = vst [vmem:[#allocation2 + $0xd0] sm:$0xff] %v1172
      %1245 = vst [vmem:[#allocation2 + $0xe8] sm:$0xff] %v1174
      %1246 = vst [vmem:[#allocation2 + $0x100] sm:$0xff] %v1176
      %1247 = vst [vmem:[#allocation2 + $0x118] sm:$0xff] %v1178
      %1248 = vst [vmem:[#allocation2 + $0x130] sm:$0xff] %v1180
      %1249 = vst [vmem:[#allocation2 + $0x148] sm:$0xff] %v1182
      %1250 = vst [vmem:[#allocation2 + $0x160] sm:$0xff] %v1184
      %1251 = vst [vmem:[#allocation2 + $0x178] sm:$0xff] %v1186
      %1252 = vst [vmem:[#allocation2 + $0x190] sm:$0xff] %v1188
      %1253 = vst [vmem:[#allocation2 + $0x1a8] sm:$0xff] %v1190
      %1254 = vst [vmem:[#allocation2 + $0x1c0] sm:$0xff] %v1192
      %1255 = vst [vmem:[#allocation2 + $0x1d8] sm:$0xff] %v1194
      %1256 = vst [vmem:[#allocation2 + $0x1f0] sm:$0xff] %v1196
      %1257 = vst [vmem:[#allocation2 + $0x208] sm:$0xff] %v1198
      %1258 = vst [vmem:[#allocation2 + $0x220] sm:$0xff] %v1200
      %1259 = vst [vmem:[#allocation2 + $0x238] sm:$0xff] %v1202
      %1260 = vst [vmem:[#allocation2 + $0x250] sm:$0xff] %v1204
      %1261 = vst [vmem:[#allocation2 + $0x268] sm:$0xff] %v1206
      %1262 = vst [vmem:[#allocation2 + $0x280] sm:$0xff] %v1208
      %v1263 = vld [vmem:[#allocation2] sm:$0xff]
      %v1264 = vld [vmem:[#allocation2 + $0x8] sm:$0xff]
      %v1265 = vld [vmem:[#allocation2 + $0x10] sm:$0xff]
      %v1266 = vld [vmem:[#allocation2 + $0x18] sm:$0xff]
      %v1267 = vld [vmem:[#allocation2 + $0x20] sm:$0xff]
      %v1268 = vld [vmem:[#allocation2 + $0x28] sm:$0xff]
      %v1269 = vld [vmem:[#allocation2 + $0x30] sm:$0xff]
      %v1270 = vld [vmem:[#allocation2 + $0x38] sm:$0xff]
      %v1271 = vld [vmem:[#allocation2 + $0x40] sm:$0xff]
      %v1272 = vld [vmem:[#allocation2 + $0x48] sm:$0xff]
      %v1273 = vld [vmem:[#allocation2 + $0x50] sm:$0xff]
      %v1274 = vld [vmem:[#allocation2 + $0x58] sm:$0xff]
      %v1275 = vld [vmem:[#allocation2 + $0x60] sm:$0xff]
      %v1276 = vld [vmem:[#allocation2 + $0x68] sm:$0xff]
      %v1277 = vld [vmem:[#allocation2 + $0x70] sm:$0xff]
      %v1278 = vld [vmem:[#allocation2 + $0x78] sm:$0xff]
      %v1279 = vld [vmem:[#allocation2 + $0x80] sm:$0xff]
      %v1280 = vld [vmem:[#allocation2 + $0x88] sm:$0xff]
      %v1281 = vld [vmem:[#allocation2 + $0x90] sm:$0xff]
      %v1282 = vld [vmem:[#allocation2 + $0x98] sm:$0xff]
      %v1283 = vld [vmem:[#allocation2 + $0xa0] sm:$0xff]
      %v1284 = vld [vmem:[#allocation2 + $0xa8] sm:$0xff]
      %v1285 = vld [vmem:[#allocation2 + $0xb0] sm:$0xff]
      %v1286 = vld [vmem:[#allocation2 + $0xb8] sm:$0xff]
      %v1287 = vld [vmem:[#allocation2 + $0xc0] sm:$0xff]
      %v1288 = vld [vmem:[#allocation2 + $0xc8] sm:$0xff]
      %v1289 = vld [vmem:[#allocation2 + $0xd0] sm:$0xff]
      %v1290 = vld [vmem:[#allocation2 + $0xd8] sm:$0xff]
      %v1291 = vld [vmem:[#allocation2 + $0xe0] sm:$0xff]
      %v1292 = vld [vmem:[#allocation2 + $0xe8] sm:$0xff]
      %v1293 = vld [vmem:[#allocation2 + $0xf0] sm:$0xff]
      %v1294 = vld [vmem:[#allocation2 + $0xf8] sm:$0xff]
      %v1295 = vld [vmem:[#allocation2 + $0x100] sm:$0xff]
      %v1296 = vld [vmem:[#allocation2 + $0x108] sm:$0xff]
      %v1297 = vld [vmem:[#allocation2 + $0x110] sm:$0xff]
      %v1298 = vld [vmem:[#allocation2 + $0x118] sm:$0xff]
      %v1299 = vld [vmem:[#allocation2 + $0x120] sm:$0xff]
      %v1300 = vld [vmem:[#allocation2 + $0x128] sm:$0xff]
      %v1301 = vld [vmem:[#allocation2 + $0x130] sm:$0xff]
      %v1302 = vld [vmem:[#allocation2 + $0x138] sm:$0xff]
      %v1303 = vld [vmem:[#allocation2 + $0x140] sm:$0xff]
      %v1304 = vld [vmem:[#allocation2 + $0x148] sm:$0xff]
      %v1305 = vld [vmem:[#allocation2 + $0x150] sm:$0xff]
      %v1306 = vld [vmem:[#allocation2 + $0x158] sm:$0xff]
      %v1307 = vld [vmem:[#allocation2 + $0x160] sm:$0xff]
      %v1308 = vld [vmem:[#allocation2 + $0x168] sm:$0xff]
      %v1309 = vld [vmem:[#allocation2 + $0x170] sm:$0xff]
      %v1310 = vld [vmem:[#allocation2 + $0x178] sm:$0xff]
      %v1311 = vld [vmem:[#allocation2 + $0x180] sm:$0xff]
      %v1312 = vld [vmem:[#allocation2 + $0x188] sm:$0xff]
      %v1313 = vld [vmem:[#allocation2 + $0x190] sm:$0xff]
      %v1314 = vld [vmem:[#allocation2 + $0x198] sm:$0xff]
      %v1315 = vld [vmem:[#allocation2 + $0x1a0] sm:$0xff]
      %v1316 = vld [vmem:[#allocation2 + $0x1a8] sm:$0xff]
      %v1317 = vld [vmem:[#allocation2 + $0x1b0] sm:$0xff]
      %v1318 = vld [vmem:[#allocation2 + $0x1b8] sm:$0xff]
      %v1319 = vld [vmem:[#allocation2 + $0x1c0] sm:$0xff]
      %v1320 = vld [vmem:[#allocation2 + $0x1c8] sm:$0xff]
      %v1321 = vld [vmem:[#allocation2 + $0x1d0] sm:$0xff]
      %v1322 = vld [vmem:[#allocation2 + $0x1d8] sm:$0xff]
      %v1323 = vld [vmem:[#allocation2 + $0x1e0] sm:$0xff]
      %v1324 = vld [vmem:[#allocation2 + $0x1e8] sm:$0xff]
      %v1325 = vld [vmem:[#allocation2 + $0x1f0] sm:$0xff]
      %v1326 = vld [vmem:[#allocation2 + $0x1f8] sm:$0xff]
      %v1327 = vld [vmem:[#allocation2 + $0x200] sm:$0xff]
      %v1328 = vld [vmem:[#allocation2 + $0x208] sm:$0xff]
      %v1329 = vld [vmem:[#allocation2 + $0x210] sm:$0xff]
      %v1330 = vld [vmem:[#allocation2 + $0x218] sm:$0xff]
      %v1331 = vld [vmem:[#allocation2 + $0x220] sm:$0xff]
      %v1332 = vld [vmem:[#allocation2 + $0x228] sm:$0xff]
      %v1333 = vld [vmem:[#allocation2 + $0x230] sm:$0xff]
      %v1334 = vld [vmem:[#allocation2 + $0x238] sm:$0xff]
      %v1335 = vld [vmem:[%s2] sm:$0xf]
      %v1336 = vld [vmem:[%s2 + $0x4] sm:$0xf]
      %v1337 = vld [vmem:[%s2 + $0x8] sm:$0xf]
      %v1338 = vld [vmem:[%s2 + $0xc] sm:$0xf]
      %v1339 = vld [vmem:[%s2 + $0x10] sm:$0xf]
      %v1340 = vld [vmem:[%s2 + $0x14] sm:$0xf]
      %v1341 = vld [vmem:[%s2 + $0x18] sm:$0xf]
      %v1342 = vld [vmem:[%s2 + $0x1c] sm:$0xf]
      %v1343 = vld [vmem:[%s2 + $0x20] sm:$0xf]
      %v1344 = vld [vmem:[%s2 + $0x24] sm:$0xf]
      %v1345 = vld [vmem:[%s2 + $0x28] sm:$0xf]
      %v1346 = vld [vmem:[%s2 + $0x2c] sm:$0xf]
      %v1347 = vld [vmem:[%s2 + $0x30] sm:$0xf]
      %v1348 = vld [vmem:[%s2 + $0x34] sm:$0xf]
      %v1349 = vld [vmem:[%s2 + $0x38] sm:$0xf]
      %v1350 = vld [vmem:[%s2 + $0x3c] sm:$0xf]
      %v1351 = vld [vmem:[%s2 + $0x40] sm:$0xf]
      %v1352 = vld [vmem:[%s2 + $0x44] sm:$0xf]
      %v1353 = vld [vmem:[%s2 + $0x48] sm:$0xf]
      %v1354 = vld [vmem:[%s2 + $0x4c] sm:$0xf]
      %v1355 = vld [vmem:[%s2 + $0x50] sm:$0xf]
      %v1356 = vld [vmem:[%s2 + $0x54] sm:$0xf]
      %v1357 = vld [vmem:[%s2 + $0x58] sm:$0xf]
      %v1358 = vld [vmem:[%s2 + $0x5c] sm:$0xf]
      %v1359 = vld [vmem:[%s2 + $0x60] sm:$0xf]
      %v1360 = vld [vmem:[%s2 + $0x64] sm:$0xf]
      %v1361 = vld [vmem:[%s2 + $0x68] sm:$0xf]
      %v1362 = vld [vmem:[%s2 + $0x6c] sm:$0xf]
      %v1363 = vld [vmem:[%s2 + $0x70] sm:$0xf]
      %v1364 = vld [vmem:[%s2 + $0x74] sm:$0xf]
      %v1365 = vld [vmem:[%s2 + $0x78] sm:$0xf]
      %v1366 = vld [vmem:[%s2 + $0x7c] sm:$0xf]
      %v1367 = vld [vmem:[%s2 + $0x80] sm:$0xf]
      %v1368 = vld [vmem:[%s2 + $0x84] sm:$0xf]
      %v1369 = vld [vmem:[%s2 + $0x88] sm:$0xf]
      %v1370 = vld [vmem:[%s2 + $0x8c] sm:$0xf]
      %v1371 = vld [vmem:[%s2 + $0x90] sm:$0xf]
      %v1372 = vld [vmem:[%s2 + $0x94] sm:$0xf]
      %v1373 = vld [vmem:[%s2 + $0x98] sm:$0xf]
      %v1374 = vld [vmem:[%s2 + $0x9c] sm:$0xf]
      %v1375 = vld [vmem:[%s2 + $0xa0] sm:$0xf]
      %v1376 = vld [vmem:[%s2 + $0xa4] sm:$0xf]
      %v1377 = vld [vmem:[%s2 + $0xa8] sm:$0xf]
      %v1378 = vld [vmem:[%s2 + $0xac] sm:$0xf]
      %v1379 = vld [vmem:[%s2 + $0xb0] sm:$0xf]
      %v1380 = vld [vmem:[%s2 + $0xb4] sm:$0xf]
      %v1381 = vld [vmem:[%s2 + $0xb8] sm:$0xf]
      %v1382 = vld [vmem:[%s2 + $0xbc] sm:$0xf]
      %v1383 = vld [vmem:[#allocation2 + $0x18] sm:$0xf0]
      %v1384 = vld [vmem:[#allocation2 + $0x20] sm:$0xf0]
      %v1385 = vld [vmem:[#allocation2 + $0x28] sm:$0xf0]
      %v1386 = vld [vmem:[#allocation2 + $0x240] sm:$0xff]
      %v1387 = vld [vmem:[#allocation2 + $0x248] sm:$0xff]
      %v1388 = vld [vmem:[#allocation2 + $0x250] sm:$0xff]
      %v1389 = vld [vmem:[#allocation2 + $0x258] sm:$0xf]
      %v1390 = vld [vmem:[#allocation2 + $0x260] sm:$0xf]
      %v1391 = vld [vmem:[#allocation2 + $0x268] sm:$0xf]
      %v1392 = vld [vmem:[%s2 + $0xc0] sm:$0xf]
      %v1393 = vld [vmem:[%s2 + $0xc4] sm:$0xf]
      %v1394 = vld [vmem:[%s2 + $0xc8] sm:$0xf]
      %v1395 = vld [vmem:[%s2 + $0xcc] sm:$0xf]
      %v1396 = vld [vmem:[%s2 + $0xd0] sm:$0xf]
      %v1397 = vld [vmem:[%s2 + $0xd4] sm:$0xf]
      %v1398 = vld [vmem:[%s2 + $0xd8] sm:$0xf]
      %v1399 = vld [vmem:[%s2 + $0xdc] sm:$0xf]
      %v1400 = vld [vmem:[%s2 + $0xe0] sm:$0xf]
      %v1401 = vld [vmem:[%s2 + $0xe4] sm:$0xf]
      %v1402 = vld [vmem:[%s2 + $0xe8] sm:$0xf]
      %v1403 = vld [vmem:[%s2 + $0xec] sm:$0xf]
      %v1404 = vld [vmem:[%s2 + $0xf0] sm:$0xf]
      %v1405 = vld [vmem:[%s2 + $0xf4] sm:$0xf]
      %v1406 = vld [vmem:[%s2 + $0xf8] sm:$0xf]
      %v1407 = vld [vmem:[%s2 + $0xfc] sm:$0xf]
      %v1408 = vld [vmem:[%s2 + $0x100] sm:$0xf]
      %v1409 = vld [vmem:[%s2 + $0x104] sm:$0xf]
      %v1410 = vld [vmem:[%s2 + $0x108] sm:$0xf]
      %v1411 = vld [vmem:[%s2 + $0x10c] sm:$0xf]
      %v1412 = vld [vmem:[%s2 + $0x110] sm:$0xf]
      %v1413 = vld [vmem:[%s2 + $0x114] sm:$0xf]
      %v1414 = vld [vmem:[%s2 + $0x118] sm:$0xf]
      %v1415 = vld [vmem:[%s2 + $0x11c] sm:$0xf]
      %v1416 = vld [vmem:[%s2 + $0x120] sm:$0xf]
      %v1417 = vld [vmem:[%s2 + $0x124] sm:$0xf]
      %v1418 = vld [vmem:[%s2 + $0x128] sm:$0xf]
      %v1419 = vld [vmem:[%s2 + $0x12c] sm:$0xf]
      %v1420 = vld [vmem:[%s2 + $0x130] sm:$0xf]
      %v1421 = vld [vmem:[%s2 + $0x134] sm:$0xf]
      %v1422 = vld [vmem:[%s2 + $0x138] sm:$0xf]
      %v1423 = vld [vmem:[%s2 + $0x13c] sm:$0xf]
      %v1424 = vld [vmem:[%s2 + $0x140] sm:$0xf]
      %v1425 = vld [vmem:[%s2 + $0x144] sm:$0xf]
      %v1426 = vld [vmem:[%s2 + $0x148] sm:$0xf]
      %v1427 = vld [vmem:[%s2 + $0x14c] sm:$0xf]
      %v1428 = vld [vmem:[%s2 + $0x150] sm:$0xf]
      %v1429 = vld [vmem:[%s2 + $0x154] sm:$0xf]
      %v1430 = vld [vmem:[%s2 + $0x158] sm:$0xf]
      %v1431 = vld [vmem:[%s2 + $0x15c] sm:$0xf]
      %v1432 = vld [vmem:[%s2 + $0x160] sm:$0xf]
      %v1433 = vld [vmem:[%s2 + $0x164] sm:$0xf]
      %v1434 = vld [vmem:[%s2 + $0x168] sm:$0xf]
      %v1435 = vld [vmem:[%s2 + $0x16c] sm:$0xf]
      %v1436 = vld [vmem:[%s2 + $0x170] sm:$0xf]
      %v1437 = vld [vmem:[%s2 + $0x174] sm:$0xf]
      %v1438 = vld [vmem:[%s2 + $0x178] sm:$0xf]
      %v1439 = vld [vmem:[%s2 + $0x17c] sm:$0xf]
      %vm1515 = vcmask 1043456
      %v1516 = vrot.slane %v1383, 4
      %v1517 = vrot.slane %v1269, 4
      %v1518 = vsel %vm1515, %v1516, %v1517
      %v1519 = vrot.slane %v1384, 4
      %v1520 = vrot.slane %v1270, 4
      %v1521 = vsel %vm1515, %v1519, %v1520
      %v1522 = vrot.slane %v1385, 4
      %v1523 = vrot.slane %v1271, 4
      %v1524 = vsel %vm1515, %v1522, %v1523
      %v1525 = vrot.slane %v1272, 4
      %v1526 = vsel %vm1515, %v1517, %v1525
      %v1527 = vrot.slane %v1273, 4
      %v1528 = vsel %vm1515, %v1520, %v1527
      %v1529 = vrot.slane %v1274, 4
      %v1530 = vsel %vm1515, %v1523, %v1529
      %v1531 = vrot.slane %v1275, 4
      %v1532 = vsel %vm1515, %v1525, %v1531
      %v1533 = vrot.slane %v1276, 4
      %v1534 = vsel %vm1515, %v1527, %v1533
      %v1535 = vrot.slane %v1277, 4
      %v1536 = vsel %vm1515, %v1529, %v1535
      %v1537 = vrot.slane %v1278, 4
      %v1538 = vsel %vm1515, %v1531, %v1537
      %v1539 = vrot.slane %v1279, 4
      %v1540 = vsel %vm1515, %v1533, %v1539
      %v1541 = vrot.slane %v1280, 4
      %v1542 = vsel %vm1515, %v1535, %v1541
      %v1543 = vrot.slane %v1281, 4
      %v1544 = vsel %vm1515, %v1537, %v1543
      %v1545 = vrot.slane %v1282, 4
      %v1546 = vsel %vm1515, %v1539, %v1545
      %v1547 = vrot.slane %v1283, 4
      %v1548 = vsel %vm1515, %v1541, %v1547
      %v1549 = vrot.slane %v1284, 4
      %v1550 = vsel %vm1515, %v1543, %v1549
      %v1551 = vrot.slane %v1285, 4
      %v1552 = vsel %vm1515, %v1545, %v1551
      %v1553 = vrot.slane %v1286, 4
      %v1554 = vsel %vm1515, %v1547, %v1553
      %v1555 = vrot.slane %v1287, 4
      %v1556 = vsel %vm1515, %v1549, %v1555
      %v1557 = vrot.slane %v1288, 4
      %v1558 = vsel %vm1515, %v1551, %v1557
      %v1559 = vrot.slane %v1289, 4
      %v1560 = vsel %vm1515, %v1553, %v1559
      %v1561 = vrot.slane %v1290, 4
      %v1562 = vsel %vm1515, %v1555, %v1561
      %v1563 = vrot.slane %v1291, 4
      %v1564 = vsel %vm1515, %v1557, %v1563
      %v1565 = vrot.slane %v1292, 4
      %v1566 = vsel %vm1515, %v1559, %v1565
      %v1567 = vrot.slane %v1293, 4
      %v1568 = vsel %vm1515, %v1561, %v1567
      %v1569 = vrot.slane %v1294, 4
      %v1570 = vsel %vm1515, %v1563, %v1569
      %v1571 = vrot.slane %v1295, 4
      %v1572 = vsel %vm1515, %v1565, %v1571
      %v1573 = vrot.slane %v1296, 4
      %v1574 = vsel %vm1515, %v1567, %v1573
      %v1575 = vrot.slane %v1297, 4
      %v1576 = vsel %vm1515, %v1569, %v1575
      %v1577 = vrot.slane %v1298, 4
      %v1578 = vsel %vm1515, %v1571, %v1577
      %v1579 = vrot.slane %v1299, 4
      %v1580 = vsel %vm1515, %v1573, %v1579
      %v1581 = vrot.slane %v1300, 4
      %v1582 = vsel %vm1515, %v1575, %v1581
      %v1583 = vrot.slane %v1301, 4
      %v1584 = vsel %vm1515, %v1577, %v1583
      %v1585 = vrot.slane %v1302, 4
      %v1586 = vsel %vm1515, %v1579, %v1585
      %v1587 = vrot.slane %v1303, 4
      %v1588 = vsel %vm1515, %v1581, %v1587
      %v1589 = vrot.slane %v1304, 4
      %v1590 = vsel %vm1515, %v1583, %v1589
      %v1591 = vrot.slane %v1305, 4
      %v1592 = vsel %vm1515, %v1585, %v1591
      %v1593 = vrot.slane %v1306, 4
      %v1594 = vsel %vm1515, %v1587, %v1593
      %v1595 = vrot.slane %v1307, 4
      %v1596 = vsel %vm1515, %v1589, %v1595
      %v1597 = vrot.slane %v1308, 4
      %v1598 = vsel %vm1515, %v1591, %v1597
      %v1599 = vrot.slane %v1309, 4
      %v1600 = vsel %vm1515, %v1593, %v1599
      %v1601 = vrot.slane %v1310, 4
      %v1602 = vsel %vm1515, %v1595, %v1601
      %v1603 = vrot.slane %v1311, 4
      %v1604 = vsel %vm1515, %v1597, %v1603
      %v1605 = vrot.slane %v1312, 4
      %v1606 = vsel %vm1515, %v1599, %v1605
      %v1607 = vrot.slane %v1313, 4
      %v1608 = vsel %vm1515, %v1601, %v1607
      %v1609 = vrot.slane %v1314, 4
      %v1610 = vsel %vm1515, %v1603, %v1609
      %v1611 = vrot.slane %v1315, 4
      %v1612 = vsel %vm1515, %v1605, %v1611
      %v1613 = vrot.slane %v1316, 4
      %v1614 = vsel %vm1515, %v1607, %v1613
      %v1615 = vrot.slane %v1317, 4
      %v1616 = vsel %vm1515, %v1609, %v1615
      %v1617 = vrot.slane %v1318, 4
      %v1618 = vsel %vm1515, %v1611, %v1617
      %v1619 = vrot.slane %v1319, 4
      %v1620 = vsel %vm1515, %v1613, %v1619
      %v1621 = vrot.slane %v1320, 4
      %v1622 = vsel %vm1515, %v1615, %v1621
      %v1623 = vrot.slane %v1321, 4
      %v1624 = vsel %vm1515, %v1617, %v1623
      %v1625 = vrot.slane %v1322, 4
      %v1626 = vsel %vm1515, %v1619, %v1625
      %v1627 = vrot.slane %v1323, 4
      %v1628 = vsel %vm1515, %v1621, %v1627
      %v1629 = vrot.slane %v1324, 4
      %v1630 = vsel %vm1515, %v1623, %v1629
      %v1631 = vrot.slane %v1325, 4
      %v1632 = vsel %vm1515, %v1625, %v1631
      %v1633 = vrot.slane %v1326, 4
      %v1634 = vsel %vm1515, %v1627, %v1633
      %v1635 = vrot.slane %v1327, 4
      %v1636 = vsel %vm1515, %v1629, %v1635
      %v1637 = vrot.slane %v1328, 4
      %v1638 = vsel %vm1515, %v1631, %v1637
      %v1639 = vrot.slane %v1329, 4
      %v1640 = vsel %vm1515, %v1633, %v1639
      %v1641 = vrot.slane %v1330, 4
      %v1642 = vsel %vm1515, %v1635, %v1641
      %v1643 = vrot.slane %v1331, 4
      %v1644 = vsel %vm1515, %v1637, %v1643
      %v1645 = vrot.slane %v1332, 4
      %v1646 = vsel %vm1515, %v1639, %v1645
      %v1647 = vrot.slane %v1333, 4
      %v1648 = vsel %vm1515, %v1641, %v1647
      %v1649 = vrot.slane %v1334, 4
      %v1650 = vsel %vm1515, %v1643, %v1649
      %v1651 = vrot.slane %v1386, 4
      %v1652 = vsel %vm1515, %v1645, %v1651
      %v1653 = vrot.slane %v1387, 4
      %v1654 = vsel %vm1515, %v1647, %v1653
      %v1655 = vrot.slane %v1388, 4
      %v1656 = vsel %vm1515, %v1649, %v1655
      %v1657 = vrot.slane %v1389, 4
      %v1658 = vsel %vm1515, %v1651, %v1657
      %v1659 = vrot.slane %v1390, 4
      %v1660 = vsel %vm1515, %v1653, %v1659
      %v1661 = vrot.slane %v1391, 4
      %v1662 = vsel %vm1515, %v1655, %v1661
      %v1783 = vunpack.c.l.b16 %v1392
      %v1784 = vunpack.c.l.b16 %v1393
      %v1785 = vunpack.c.l.b16 %v1394
      %v1786 = vunpack.c.l.b16 %v1395
      %v1787 = vunpack.c.l.b16 %v1396
      %v1788 = vunpack.c.l.b16 %v1397
      %v1789 = vunpack.c.l.b16 %v1398
      %v1790 = vunpack.c.l.b16 %v1399
      %v1791 = vunpack.c.l.b16 %v1400
      %v1792 = vunpack.c.l.b16 %v1401
      %v1793 = vunpack.c.l.b16 %v1402
      %v1794 = vunpack.c.l.b16 %v1403
      %v1795 = vunpack.c.l.b16 %v1404
      %v1796 = vunpack.c.l.b16 %v1405
      %v1797 = vunpack.c.l.b16 %v1406
      %v1798 = vunpack.c.l.b16 %v1407
      %v1799 = vunpack.c.l.b16 %v1408
      %v1800 = vunpack.c.l.b16 %v1409
      %v1801 = vunpack.c.l.b16 %v1410
      %v1802 = vunpack.c.l.b16 %v1411
      %v1803 = vunpack.c.l.b16 %v1412
      %v1804 = vunpack.c.l.b16 %v1413
      %v1805 = vunpack.c.l.b16 %v1414
      %v1806 = vunpack.c.l.b16 %v1415
      %v1807 = vunpack.c.l.b16 %v1416
      %v1808 = vunpack.c.l.b16 %v1417
      %v1809 = vunpack.c.l.b16 %v1418
      %v1810 = vunpack.c.l.b16 %v1419
      %v1811 = vunpack.c.l.b16 %v1420
      %v1812 = vunpack.c.l.b16 %v1421
      %v1813 = vunpack.c.l.b16 %v1422
      %v1814 = vunpack.c.l.b16 %v1423
      %v1815 = vunpack.c.l.b16 %v1424
      %v1816 = vunpack.c.l.b16 %v1425
      %v1817 = vunpack.c.l.b16 %v1426
      %v1818 = vunpack.c.l.b16 %v1427
      %v1819 = vunpack.c.l.b16 %v1428
      %v1820 = vunpack.c.l.b16 %v1429
      %v1821 = vunpack.c.l.b16 %v1430
      %v1822 = vunpack.c.l.b16 %v1431
      %v1823 = vunpack.c.l.b16 %v1432
      %v1824 = vunpack.c.l.b16 %v1433
      %v1825 = vunpack.c.l.b16 %v1434
      %v1826 = vunpack.c.l.b16 %v1435
      %v1827 = vunpack.c.l.b16 %v1436
      %v1828 = vunpack.c.l.b16 %v1437
      %v1829 = vunpack.c.l.b16 %v1438
      %v1830 = vunpack.c.l.b16 %v1439
      %v1831 = vpack.c.b16 %v1784, %v1783
      %v1832 = vpack.c.b16 %v1786, %v1785
      %v1833 = vpack.c.b16 %v1788, %v1787
      %v1834 = vpack.c.b16 %v1790, %v1789
      %v1835 = vpack.c.b16 %v1792, %v1791
      %v1836 = vpack.c.b16 %v1794, %v1793
      %v1837 = vpack.c.b16 %v1796, %v1795
      %v1838 = vpack.c.b16 %v1798, %v1797
      %v1839 = vpack.c.b16 %v1800, %v1799
      %v1840 = vpack.c.b16 %v1802, %v1801
      %v1841 = vpack.c.b16 %v1804, %v1803
      %v1842 = vpack.c.b16 %v1806, %v1805
      %v1843 = vpack.c.b16 %v1808, %v1807
      %v1844 = vpack.c.b16 %v1810, %v1809
      %v1845 = vpack.c.b16 %v1812, %v1811
      %v1846 = vpack.c.b16 %v1814, %v1813
      %v1847 = vpack.c.b16 %v1816, %v1815
      %v1848 = vpack.c.b16 %v1818, %v1817
      %v1849 = vpack.c.b16 %v1820, %v1819
      %v1850 = vpack.c.b16 %v1822, %v1821
      %v1851 = vpack.c.b16 %v1824, %v1823
      %v1852 = vpack.c.b16 %v1826, %v1825
      %v1853 = vpack.c.b16 %v1828, %v1827
      %v1854 = vpack.c.b16 %v1830, %v1829
      %1879 = vmatprep.subr.bf16.mxu0 0
      %1880 = vmatpush1.bf16.msra.mxu0 %v1831
      %1881 = vmatprep.subr.bf16.mxu0 0
      %1882 = vmatpush1.bf16.msra.mxu0 %v1832
      %1883 = vmatprep.subr.bf16.mxu0 0
      %1884 = vmatpush1.bf16.msra.mxu0 %v1833
      %1885 = vmatprep.subr.bf16.mxu0 0
      %1886 = vmatpush1.bf16.msra.mxu0 %v1834
      %1887 = vmatprep.subr.bf16.mxu0 0
      %1888 = vmatpush1.bf16.msra.mxu0 %v1835
      %1889 = vmatprep.subr.bf16.mxu0 0
      %1890 = vmatpush1.bf16.msra.mxu0 %v1836
      %1891 = vmatprep.subr.bf16.mxu0 0
      %1892 = vmatpush1.bf16.msra.mxu0 %v1837
      %1893 = vmatprep.subr.bf16.mxu0 0
      %1894 = vmatpush1.bf16.msra.mxu0 %v1838
      %1895 = vmatprep.subr.bf16.mxu0 0
      %1896 = vmatpush1.bf16.msra.mxu0 %v1839
      %1897 = vmatprep.subr.bf16.mxu0 0
      %1898 = vmatpush1.bf16.msra.mxu0 %v1840
      %1899 = vmatprep.subr.bf16.mxu0 0
      %1900 = vmatpush1.bf16.msra.mxu0 %v1841
      %1901 = vmatprep.subr.bf16.mxu0 0
      %1902 = vmatpush1.bf16.msra.mxu0 %v1842
      %1903 = vmatprep.subr.bf16.mxu0 0
      %1904 = vmatpush1.bf16.msra.mxu0 %v1843
      %1905 = vmatprep.subr.bf16.mxu0 0
      %1906 = vmatpush1.bf16.msra.mxu0 %v1844
      %1907 = vmatprep.subr.bf16.mxu0 0
      %1908 = vmatpush1.bf16.msra.mxu0 %v1845
      %1909 = vmatprep.subr.bf16.mxu0 0
      %1910 = vmatpush1.bf16.msra.mxu0 %v1846
      %1911 = vmatprep.mubr.bf16.mxu0 %v1521
      %1912 = vmatmul.mubr.bf16.gmra.mrb[0].mxu0 %v1518
      %v1913 = vpop.f32.mrb[0].mxu0
      %v1914 = vadd.f32 0.0, %v1913
      %v1915 = vpop.f32.mrb[0].mxu0
      %v1916 = vpop.f32.mrb[0].mxu0
      %v1917 = vadd.f32 0.0, %v1916
      %v1918 = vpop.f32.mrb[0].mxu0
      %1919 = vmatprep.mubr.bf16.mxu0 %v1528
      %1920 = vmatmul.mubr.bf16.gmra.mrb[0].mxu0 %v1526
      %v1921 = vpop.f32.mrb[0].mxu0
      %v1922 = vadd.f32 0.0, %v1921
      %v1923 = vpop.f32.mrb[0].mxu0
      %v1924 = vpop.f32.mrb[0].mxu0
      %v1925 = vadd.f32 0.0, %v1924
      %v1926 = vpop.f32.mrb[0].mxu0
      %1927 = vmatprep.mubr.bf16.mxu0 %v1534
      %1928 = vmatmul.mubr.bf16.gmra.mrb[0].mxu0 %v1532
      %v1929 = vpop.f32.mrb[0].mxu0
      %v1930 = vadd.f32 0.0, %v1929
      %v1931 = vpop.f32.mrb[0].mxu0
      %v1932 = vpop.f32.mrb[0].mxu0
      %v1933 = vadd.f32 0.0, %v1932
      %v1934 = vpop.f32.mrb[0].mxu0
      %1935 = vmatprep.mubr.bf16.mxu0 %v1540
      %1936 = vmatmul.mubr.bf16.gmra.mrb[0].mxu0 %v1538
      %v1937 = vpop.f32.mrb[0].mxu0
      %v1938 = vadd.f32 0.0, %v1937
      %v1939 = vpop.f32.mrb[0].mxu0
      %v1940 = vpop.f32.mrb[0].mxu0
      %v1941 = vadd.f32 0.0, %v1940
      %v1942 = vpop.f32.mrb[0].mxu0
      %1943 = vmatprep.mubr.bf16.mxu0 %v1546
      %1944 = vmatmul.mubr.bf16.gmra.mrb[0].mxu0 %v1544
      %v1945 = vpop.f32.mrb[0].mxu0
      %v1946 = vadd.f32 0.0, %v1945
      %v1947 = vpop.f32.mrb[0].mxu0
      %v1948 = vpop.f32.mrb[0].mxu0
      %v1949 = vadd.f32 0.0, %v1948
      %v1950 = vpop.f32.mrb[0].mxu0
      %1951 = vmatprep.mubr.bf16.mxu0 %v1552
      %1952 = vmatmul.mubr.bf16.gmra.mrb[0].mxu0 %v1550
      %v1953 = vpop.f32.mrb[0].mxu0
      %v1954 = vadd.f32 0.0, %v1953
      %v1955 = vpop.f32.mrb[0].mxu0
      %v1956 = vpop.f32.mrb[0].mxu0
      %v1957 = vadd.f32 0.0, %v1956
      %v1958 = vpop.f32.mrb[0].mxu0
      %1959 = vmatprep.mubr.bf16.mxu0 %v1558
      %1960 = vmatmul.mubr.bf16.gmra.mrb[0].mxu0 %v1556
      %v1961 = vpop.f32.mrb[0].mxu0
      %v1962 = vadd.f32 0.0, %v1961
      %v1963 = vpop.f32.mrb[0].mxu0
      %v1964 = vpop.f32.mrb[0].mxu0
      %v1965 = vadd.f32 0.0, %v1964
      %v1966 = vpop.f32.mrb[0].mxu0
      %1967 = vmatprep.mubr.bf16.mxu0 %v1564
      %1968 = vmatmul.mubr.bf16.gmra.mrb[0].mxu0 %v1562
      %v1969 = vpop.f32.mrb[0].mxu0
      %v1970 = vadd.f32 0.0, %v1969
      %v1971 = vpop.f32.mrb[0].mxu0
      %v1972 = vpop.f32.mrb[0].mxu0
      %v1973 = vadd.f32 0.0, %v1972
      %v1974 = vpop.f32.mrb[0].mxu0
      %1975 = vmatprep.mubr.bf16.mxu0 %v1570
      %1976 = vmatmul.mubr.bf16.gmra.mrb[0].mxu0 %v1568
      %v1977 = vpop.f32.mrb[0].mxu0
      %v1978 = vadd.f32 0.0, %v1977
      %v1979 = vpop.f32.mrb[0].mxu0
      %v1980 = vpop.f32.mrb[0].mxu0
      %v1981 = vadd.f32 0.0, %v1980
      %v1982 = vpop.f32.mrb[0].mxu0
      %1983 = vmatprep.mubr.bf16.mxu0 %v1576
      %1984 = vmatmul.mubr.bf16.gmra.mrb[0].mxu0 %v1574
      %v1985 = vpop.f32.mrb[0].mxu0
      %v1986 = vadd.f32 0.0, %v1985
      %v1987 = vpop.f32.mrb[0].mxu0
      %v1988 = vpop.f32.mrb[0].mxu0
      %v1989 = vadd.f32 0.0, %v1988
      %v1990 = vpop.f32.mrb[0].mxu0
      %1991 = vmatprep.mubr.bf16.mxu0 %v1582
      %1992 = vmatmul.mubr.bf16.gmra.mrb[0].mxu0 %v1580
      %v1993 = vpop.f32.mrb[0].mxu0
      %v1994 = vadd.f32 0.0, %v1993
      %v1995 = vpop.f32.mrb[0].mxu0
      %v1996 = vpop.f32.mrb[0].mxu0
      %v1997 = vadd.f32 0.0, %v1996
      %v1998 = vpop.f32.mrb[0].mxu0
      %1999 = vmatprep.mubr.bf16.mxu0 %v1588
      %2000 = vmatmul.mubr.bf16.gmra.mrb[0].mxu0 %v1586
      %v2001 = vpop.f32.mrb[0].mxu0
      %v2002 = vadd.f32 0.0, %v2001
      %v2003 = vpop.f32.mrb[0].mxu0
      %v2004 = vpop.f32.mrb[0].mxu0
      %v2005 = vadd.f32 0.0, %v2004
      %v2006 = vpop.f32.mrb[0].mxu0
      %2007 = vmatprep.mubr.bf16.mxu0 %v1594
      %2008 = vmatmul.mubr.bf16.gmra.mrb[0].mxu0 %v1592
      %v2009 = vpop.f32.mrb[0].mxu0
      %v2010 = vadd.f32 0.0, %v2009
      %v2011 = vpop.f32.mrb[0].mxu0
      %v2012 = vpop.f32.mrb[0].mxu0
      %v2013 = vadd.f32 0.0, %v2012
      %v2014 = vpop.f32.mrb[0].mxu0
      %2015 = vmatprep.mubr.bf16.mxu0 %v1600
      %2016 = vmatmul.mubr.bf16.gmra.mrb[0].mxu0 %v1598
      %v2017 = vpop.f32.mrb[0].mxu0
      %v2018 = vadd.f32 0.0, %v2017
      %v2019 = vpop.f32.mrb[0].mxu0
      %v2020 = vpop.f32.mrb[0].mxu0
      %v2021 = vadd.f32 0.0, %v2020
      %v2022 = vpop.f32.mrb[0].mxu0
      %2023 = vmatprep.mubr.bf16.mxu0 %v1606
      %2024 = vmatmul.mubr.bf16.gmra.mrb[0].mxu0 %v1604
      %v2025 = vpop.f32.mrb[0].mxu0
      %v2026 = vadd.f32 0.0, %v2025
      %v2027 = vpop.f32.mrb[0].mxu0
      %v2028 = vpop.f32.mrb[0].mxu0
      %v2029 = vadd.f32 0.0, %v2028
      %v2030 = vpop.f32.mrb[0].mxu0
      %2031 = vmatprep.mubr.bf16.mxu0 %v1612
      %2032 = vmatmul.mubr.bf16.gmra.mrb[0].mxu0 %v1610
      %v2033 = vpop.f32.mrb[0].mxu0
      %v2034 = vadd.f32 0.0, %v2033
      %v2035 = vpop.f32.mrb[0].mxu0
      %v2036 = vpop.f32.mrb[0].mxu0
      %v2037 = vadd.f32 0.0, %v2036
      %v2038 = vpop.f32.mrb[0].mxu0
      %2039 = vmatprep.mubr.bf16.mxu0 %v1618
      %2040 = vmatmul.mubr.bf16.gmra.mrb[0].mxu0 %v1616
      %v2041 = vpop.f32.mrb[0].mxu0
      %v2042 = vadd.f32 0.0, %v2041
      %v2043 = vpop.f32.mrb[0].mxu0
      %v2044 = vpop.f32.mrb[0].mxu0
      %v2045 = vadd.f32 0.0, %v2044
      %v2046 = vpop.f32.mrb[0].mxu0
      %2047 = vmatprep.mubr.bf16.mxu0 %v1624
      %2048 = vmatmul.mubr.bf16.gmra.mrb[0].mxu0 %v1622
      %v2049 = vpop.f32.mrb[0].mxu0
      %v2050 = vadd.f32 0.0, %v2049
      %v2051 = vpop.f32.mrb[0].mxu0
      %v2052 = vpop.f32.mrb[0].mxu0
      %v2053 = vadd.f32 0.0, %v2052
      %v2054 = vpop.f32.mrb[0].mxu0
      %2055 = vmatprep.mubr.bf16.mxu0 %v1630
      %2056 = vmatmul.mubr.bf16.gmra.mrb[0].mxu0 %v1628
      %v2057 = vpop.f32.mrb[0].mxu0
      %v2058 = vadd.f32 0.0, %v2057
      %v2059 = vpop.f32.mrb[0].mxu0
      %v2060 = vpop.f32.mrb[0].mxu0
      %v2061 = vadd.f32 0.0, %v2060
      %v2062 = vpop.f32.mrb[0].mxu0
      %2063 = vmatprep.mubr.bf16.mxu0 %v1636
      %2064 = vmatmul.mubr.bf16.gmra.mrb[0].mxu0 %v1634
      %v2065 = vpop.f32.mrb[0].mxu0
      %v2066 = vadd.f32 0.0, %v2065
      %v2067 = vpop.f32.mrb[0].mxu0
      %v2068 = vpop.f32.mrb[0].mxu0
      %v2069 = vadd.f32 0.0, %v2068
      %v2070 = vpop.f32.mrb[0].mxu0
      %2071 = vmatprep.mubr.bf16.mxu0 %v1642
      %2072 = vmatmul.mubr.bf16.gmra.mrb[0].mxu0 %v1640
      %v2073 = vpop.f32.mrb[0].mxu0
      %v2074 = vadd.f32 0.0, %v2073
      %v2075 = vpop.f32.mrb[0].mxu0
      %v2076 = vpop.f32.mrb[0].mxu0
      %v2077 = vadd.f32 0.0, %v2076
      %v2078 = vpop.f32.mrb[0].mxu0
      %2079 = vmatprep.mubr.bf16.mxu0 %v1648
      %2080 = vmatmul.mubr.bf16.gmra.mrb[0].mxu0 %v1646
      %v2081 = vpop.f32.mrb[0].mxu0
      %v2082 = vadd.f32 0.0, %v2081
      %v2083 = vpop.f32.mrb[0].mxu0
      %v2084 = vpop.f32.mrb[0].mxu0
      %v2085 = vadd.f32 0.0, %v2084
      %v2086 = vpop.f32.mrb[0].mxu0
      %2087 = vmatprep.mubr.bf16.mxu0 %v1654
      %2088 = vmatmul.mubr.bf16.gmra.mrb[0].mxu0 %v1652
      %v2089 = vpop.f32.mrb[0].mxu0
      %v2090 = vadd.f32 0.0, %v2089
      %v2091 = vpop.f32.mrb[0].mxu0
      %v2092 = vpop.f32.mrb[0].mxu0
      %v2093 = vadd.f32 0.0, %v2092
      %v2094 = vpop.f32.mrb[0].mxu0
      %2095 = vmatprep.mubr.bf16.mxu0 %v1660
      %2096 = vmatmul.mubr.bf16.gmra.mrb[0].mxu0 %v1658
      %v2097 = vpop.f32.mrb[0].mxu0
      %v2098 = vadd.f32 0.0, %v2097
      %v2099 = vpop.f32.mrb[0].mxu0
      %v2100 = vpop.f32.mrb[0].mxu0
      %v2101 = vadd.f32 0.0, %v2100
      %v2102 = vpop.f32.mrb[0].mxu0
      %2103 = vdwg.mxu0
      %2104 = vmatprep.subr.bf16.mxu0 0
      %2105 = vmatpush1.bf16.msra.mxu0 %v1847
      %2106 = vmatprep.subr.bf16.mxu0 0
      %2107 = vmatpush1.bf16.msra.mxu0 %v1848
      %2108 = vmatprep.subr.bf16.mxu0 0
      %2109 = vmatpush1.bf16.msra.mxu0 %v1849
      %2110 = vmatprep.subr.bf16.mxu0 0
      %2111 = vmatpush1.bf16.msra.mxu0 %v1850
      %2112 = vmatprep.subr.bf16.mxu0 0
      %2113 = vmatpush1.bf16.msra.mxu0 %v1851
      %2114 = vmatprep.subr.bf16.mxu0 0
      %2115 = vmatpush1.bf16.msra.mxu0 %v1852
      %2116 = vmatprep.subr.bf16.mxu0 0
      %2117 = vmatpush1.bf16.msra.mxu0 %v1853
      %2118 = vmatprep.subr.bf16.mxu0 0
      %2119 = vmatpush1.bf16.msra.mxu0 %v1854
      %2120 = vmatprep.subr.bf16.mxu0 0
      %2121 = vmatpush1.bf16.msra.mxu0 0
      %2122 = vmatprep.subr.bf16.mxu0 0
      %2123 = vmatpush1.bf16.msra.mxu0 0
      %2124 = vmatprep.subr.bf16.mxu0 0
      %2125 = vmatpush1.bf16.msra.mxu0 0
      %2126 = vmatprep.subr.bf16.mxu0 0
      %2127 = vmatpush1.bf16.msra.mxu0 0
      %2128 = vmatprep.subr.bf16.mxu0 0
      %2129 = vmatpush1.bf16.msra.mxu0 0
      %2130 = vmatprep.subr.bf16.mxu0 0
      %2131 = vmatpush1.bf16.msra.mxu0 0
      %2132 = vmatprep.subr.bf16.mxu0 0
      %2133 = vmatpush1.bf16.msra.mxu0 0
      %2134 = vmatprep.subr.bf16.mxu0 0
      %2135 = vmatpush1.bf16.msra.mxu0 0
      %2136 = vmatprep.mubr.bf16.mxu0 0
      %2137 = vmatmul.mubr.bf16.gmra.mrb[0].mxu0 %v1524
      %v2138 = vpop.f32.mrb[0].mxu0
      %v2139 = vadd.f32 %v1914, %v2138
      %v2140 = vpop.f32.mrb[0].mxu0
      %v2141 = vpop.f32.mrb[0].mxu0
      %v2142 = vadd.f32 %v1917, %v2141
      %v2143 = vpop.f32.mrb[0].mxu0
      %2144 = vmatprep.mubr.bf16.mxu0 0
      %2145 = vmatmul.mubr.bf16.gmra.mrb[0].mxu0 %v1530
      %v2146 = vpop.f32.mrb[0].mxu0
      %v2147 = vadd.f32 %v1922, %v2146
      %v2148 = vpop.f32.mrb[0].mxu0
      %v2149 = vpop.f32.mrb[0].mxu0
      %v2150 = vadd.f32 %v1925, %v2149
      %v2151 = vpop.f32.mrb[0].mxu0
      %2152 = vmatprep.mubr.bf16.mxu0 0
      %2153 = vmatmul.mubr.bf16.gmra.mrb[0].mxu0 %v1536
      %v2154 = vpop.f32.mrb[0].mxu0
      %v2155 = vadd.f32 %v1930, %v2154
      %v2156 = vpop.f32.mrb[0].mxu0
      %v2157 = vpop.f32.mrb[0].mxu0
      %v2158 = vadd.f32 %v1933, %v2157
      %v2159 = vpop.f32.mrb[0].mxu0
      %2160 = vmatprep.mubr.bf16.mxu0 0
      %2161 = vmatmul.mubr.bf16.gmra.mrb[0].mxu0 %v1542
      %v2162 = vpop.f32.mrb[0].mxu0
      %v2163 = vadd.f32 %v1938, %v2162
      %v2164 = vpop.f32.mrb[0].mxu0
      %v2165 = vpop.f32.mrb[0].mxu0
      %v2166 = vadd.f32 %v1941, %v2165
      %v2167 = vpop.f32.mrb[0].mxu0
      %2168 = vmatprep.mubr.bf16.mxu0 0
      %2169 = vmatmul.mubr.bf16.gmra.mrb[0].mxu0 %v1548
      %v2170 = vpop.f32.mrb[0].mxu0
      %v2171 = vadd.f32 %v1946, %v2170
      %v2172 = vpop.f32.mrb[0].mxu0
      %v2173 = vpop.f32.mrb[0].mxu0
      %v2174 = vadd.f32 %v1949, %v2173
      %v2175 = vpop.f32.mrb[0].mxu0
      %2176 = vmatprep.mubr.bf16.mxu0 0
      %2177 = vmatmul.mubr.bf16.gmra.mrb[0].mxu0 %v1554
      %v2178 = vpop.f32.mrb[0].mxu0
      %v2179 = vadd.f32 %v1954, %v2178
      %v2180 = vpop.f32.mrb[0].mxu0
      %v2181 = vpop.f32.mrb[0].mxu0
      %v2182 = vadd.f32 %v1957, %v2181
      %v2183 = vpop.f32.mrb[0].mxu0
      %2184 = vmatprep.mubr.bf16.mxu0 0
      %2185 = vmatmul.mubr.bf16.gmra.mrb[0].mxu0 %v1560
      %v2186 = vpop.f32.mrb[0].mxu0
      %v2187 = vadd.f32 %v1962, %v2186
      %v2188 = vpop.f32.mrb[0].mxu0
      %v2189 = vpop.f32.mrb[0].mxu0
      %v2190 = vadd.f32 %v1965, %v2189
      %v2191 = vpop.f32.mrb[0].mxu0
      %2192 = vmatprep.mubr.bf16.mxu0 0
      %2193 = vmatmul.mubr.bf16.gmra.mrb[0].mxu0 %v1566
      %v2194 = vpop.f32.mrb[0].mxu0
      %v2195 = vadd.f32 %v1970, %v2194
      %v2196 = vpop.f32.mrb[0].mxu0
      %v2197 = vpop.f32.mrb[0].mxu0
      %v2198 = vadd.f32 %v1973, %v2197
      %v2199 = vpop.f32.mrb[0].mxu0
      %2200 = vmatprep.mubr.bf16.mxu0 0
      %2201 = vmatmul.mubr.bf16.gmra.mrb[0].mxu0 %v1572
      %v2202 = vpop.f32.mrb[0].mxu0
      %v2203 = vadd.f32 %v1978, %v2202
      %v2204 = vpop.f32.mrb[0].mxu0
      %v2205 = vpop.f32.mrb[0].mxu0
      %v2206 = vadd.f32 %v1981, %v2205
      %v2207 = vpop.f32.mrb[0].mxu0
      %2208 = vmatprep.mubr.bf16.mxu0 0
      %2209 = vmatmul.mubr.bf16.gmra.mrb[0].mxu0 %v1578
      %v2210 = vpop.f32.mrb[0].mxu0
      %v2211 = vadd.f32 %v1986, %v2210
      %v2212 = vpop.f32.mrb[0].mxu0
      %v2213 = vpop.f32.mrb[0].mxu0
      %v2214 = vadd.f32 %v1989, %v2213
      %v2215 = vpop.f32.mrb[0].mxu0
      %2216 = vmatprep.mubr.bf16.mxu0 0
      %2217 = vmatmul.mubr.bf16.gmra.mrb[0].mxu0 %v1584
      %v2218 = vpop.f32.mrb[0].mxu0
      %v2219 = vadd.f32 %v1994, %v2218
      %v2220 = vpop.f32.mrb[0].mxu0
      %v2221 = vpop.f32.mrb[0].mxu0
      %v2222 = vadd.f32 %v1997, %v2221
      %v2223 = vpop.f32.mrb[0].mxu0
      %2224 = vmatprep.mubr.bf16.mxu0 0
      %2225 = vmatmul.mubr.bf16.gmra.mrb[0].mxu0 %v1590
      %v2226 = vpop.f32.mrb[0].mxu0
      %v2227 = vadd.f32 %v2002, %v2226
      %v2228 = vpop.f32.mrb[0].mxu0
      %v2229 = vpop.f32.mrb[0].mxu0
      %v2230 = vadd.f32 %v2005, %v2229
      %v2231 = vpop.f32.mrb[0].mxu0
      %2232 = vmatprep.mubr.bf16.mxu0 0
      %2233 = vmatmul.mubr.bf16.gmra.mrb[0].mxu0 %v1596
      %v2234 = vpop.f32.mrb[0].mxu0
      %v2235 = vadd.f32 %v2010, %v2234
      %v2236 = vpop.f32.mrb[0].mxu0
      %v2237 = vpop.f32.mrb[0].mxu0
      %v2238 = vadd.f32 %v2013, %v2237
      %v2239 = vpop.f32.mrb[0].mxu0
      %2240 = vmatprep.mubr.bf16.mxu0 0
      %2241 = vmatmul.mubr.bf16.gmra.mrb[0].mxu0 %v1602
      %v2242 = vpop.f32.mrb[0].mxu0
      %v2243 = vadd.f32 %v2018, %v2242
      %v2244 = vpop.f32.mrb[0].mxu0
      %v2245 = vpop.f32.mrb[0].mxu0
      %v2246 = vadd.f32 %v2021, %v2245
      %v2247 = vpop.f32.mrb[0].mxu0
      %2248 = vmatprep.mubr.bf16.mxu0 0
      %2249 = vmatmul.mubr.bf16.gmra.mrb[0].mxu0 %v1608
      %v2250 = vpop.f32.mrb[0].mxu0
      %v2251 = vadd.f32 %v2026, %v2250
      %v2252 = vpop.f32.mrb[0].mxu0
      %v2253 = vpop.f32.mrb[0].mxu0
      %v2254 = vadd.f32 %v2029, %v2253
      %v2255 = vpop.f32.mrb[0].mxu0
      %2256 = vmatprep.mubr.bf16.mxu0 0
      %2257 = vmatmul.mubr.bf16.gmra.mrb[0].mxu0 %v1614
      %v2258 = vpop.f32.mrb[0].mxu0
      %v2259 = vadd.f32 %v2034, %v2258
      %v2260 = vpop.f32.mrb[0].mxu0
      %v2261 = vpop.f32.mrb[0].mxu0
      %v2262 = vadd.f32 %v2037, %v2261
      %v2263 = vpop.f32.mrb[0].mxu0
      %2264 = vmatprep.mubr.bf16.mxu0 0
      %2265 = vmatmul.mubr.bf16.gmra.mrb[0].mxu0 %v1620
      %v2266 = vpop.f32.mrb[0].mxu0
      %v2267 = vadd.f32 %v2042, %v2266
      %v2268 = vpop.f32.mrb[0].mxu0
      %v2269 = vpop.f32.mrb[0].mxu0
      %v2270 = vadd.f32 %v2045, %v2269
      %v2271 = vpop.f32.mrb[0].mxu0
      %2272 = vmatprep.mubr.bf16.mxu0 0
      %2273 = vmatmul.mubr.bf16.gmra.mrb[0].mxu0 %v1626
      %v2274 = vpop.f32.mrb[0].mxu0
      %v2275 = vadd.f32 %v2050, %v2274
      %v2276 = vpop.f32.mrb[0].mxu0
      %v2277 = vpop.f32.mrb[0].mxu0
      %v2278 = vadd.f32 %v2053, %v2277
      %v2279 = vpop.f32.mrb[0].mxu0
      %2280 = vmatprep.mubr.bf16.mxu0 0
      %2281 = vmatmul.mubr.bf16.gmra.mrb[0].mxu0 %v1632
      %v2282 = vpop.f32.mrb[0].mxu0
      %v2283 = vadd.f32 %v2058, %v2282
      %v2284 = vpop.f32.mrb[0].mxu0
      %v2285 = vpop.f32.mrb[0].mxu0
      %v2286 = vadd.f32 %v2061, %v2285
      %v2287 = vpop.f32.mrb[0].mxu0
      %2288 = vmatprep.mubr.bf16.mxu0 0
      %2289 = vmatmul.mubr.bf16.gmra.mrb[0].mxu0 %v1638
      %v2290 = vpop.f32.mrb[0].mxu0
      %v2291 = vadd.f32 %v2066, %v2290
      %v2292 = vpop.f32.mrb[0].mxu0
      %v2293 = vpop.f32.mrb[0].mxu0
      %v2294 = vadd.f32 %v2069, %v2293
      %v2295 = vpop.f32.mrb[0].mxu0
      %2296 = vmatprep.mubr.bf16.mxu0 0
      %2297 = vmatmul.mubr.bf16.gmra.mrb[0].mxu0 %v1644
      %v2298 = vpop.f32.mrb[0].mxu0
      %v2299 = vadd.f32 %v2074, %v2298
      %v2300 = vpop.f32.mrb[0].mxu0
      %v2301 = vpop.f32.mrb[0].mxu0
      %v2302 = vadd.f32 %v2077, %v2301
      %v2303 = vpop.f32.mrb[0].mxu0
      %2304 = vmatprep.mubr.bf16.mxu0 0
      %2305 = vmatmul.mubr.bf16.gmra.mrb[0].mxu0 %v1650
      %v2306 = vpop.f32.mrb[0].mxu0
      %v2307 = vadd.f32 %v2082, %v2306
      %v2308 = vpop.f32.mrb[0].mxu0
      %v2309 = vpop.f32.mrb[0].mxu0
      %v2310 = vadd.f32 %v2085, %v2309
      %v2311 = vpop.f32.mrb[0].mxu0
      %2312 = vmatprep.mubr.bf16.mxu0 0
      %2313 = vmatmul.mubr.bf16.gmra.mrb[0].mxu0 %v1656
      %v2314 = vpop.f32.mrb[0].mxu0
      %v2315 = vadd.f32 %v2090, %v2314
      %v2316 = vpop.f32.mrb[0].mxu0
      %v2317 = vpop.f32.mrb[0].mxu0
      %v2318 = vadd.f32 %v2093, %v2317
      %v2319 = vpop.f32.mrb[0].mxu0
      %2320 = vmatprep.mubr.bf16.mxu0 0
      %2321 = vmatmul.mubr.bf16.gmra.mrb[0].mxu0 %v1662
      %v2322 = vpop.f32.mrb[0].mxu0
      %v2323 = vadd.f32 %v2098, %v2322
      %v2324 = vpop.f32.mrb[0].mxu0
      %v2325 = vpop.f32.mrb[0].mxu0
      %v2326 = vadd.f32 %v2101, %v2325
      %v2327 = vpop.f32.mrb[0].mxu0
      %2328 = vdwg.mxu0
      %v2377 = vunpack.c.l.b16 %v1335
      %v2378 = vunpack.c.l.b16 %v1336
      %v2379 = vunpack.c.l.b16 %v1337
      %v2380 = vunpack.c.l.b16 %v1338
      %v2381 = vunpack.c.l.b16 %v1339
      %v2382 = vunpack.c.l.b16 %v1340
      %v2383 = vunpack.c.l.b16 %v1341
      %v2384 = vunpack.c.l.b16 %v1342
      %v2385 = vunpack.c.l.b16 %v1343
      %v2386 = vunpack.c.l.b16 %v1344
      %v2387 = vunpack.c.l.b16 %v1345
      %v2388 = vunpack.c.l.b16 %v1346
      %v2389 = vunpack.c.l.b16 %v1347
      %v2390 = vunpack.c.l.b16 %v1348
      %v2391 = vunpack.c.l.b16 %v1349
      %v2392 = vunpack.c.l.b16 %v1350
      %v2393 = vunpack.c.l.b16 %v1351
      %v2394 = vunpack.c.l.b16 %v1352
      %v2395 = vunpack.c.l.b16 %v1353
      %v2396 = vunpack.c.l.b16 %v1354
      %v2397 = vunpack.c.l.b16 %v1355
      %v2398 = vunpack.c.l.b16 %v1356
      %v2399 = vunpack.c.l.b16 %v1357
      %v2400 = vunpack.c.l.b16 %v1358
      %v2401 = vunpack.c.l.b16 %v1359
      %v2402 = vunpack.c.l.b16 %v1360
      %v2403 = vunpack.c.l.b16 %v1361
      %v2404 = vunpack.c.l.b16 %v1362
      %v2405 = vunpack.c.l.b16 %v1363
      %v2406 = vunpack.c.l.b16 %v1364
      %v2407 = vunpack.c.l.b16 %v1365
      %v2408 = vunpack.c.l.b16 %v1366
      %v2409 = vunpack.c.l.b16 %v1367
      %v2410 = vunpack.c.l.b16 %v1368
      %v2411 = vunpack.c.l.b16 %v1369
      %v2412 = vunpack.c.l.b16 %v1370
      %v2413 = vunpack.c.l.b16 %v1371
      %v2414 = vunpack.c.l.b16 %v1372
      %v2415 = vunpack.c.l.b16 %v1373
      %v2416 = vunpack.c.l.b16 %v1374
      %v2417 = vunpack.c.l.b16 %v1375
      %v2418 = vunpack.c.l.b16 %v1376
      %v2419 = vunpack.c.l.b16 %v1377
      %v2420 = vunpack.c.l.b16 %v1378
      %v2421 = vunpack.c.l.b16 %v1379
      %v2422 = vunpack.c.l.b16 %v1380
      %v2423 = vunpack.c.l.b16 %v1381
      %v2424 = vunpack.c.l.b16 %v1382
      %v2425 = vpack.c.b16 %v2378, %v2377
      %v2426 = vpack.c.b16 %v2380, %v2379
      %v2427 = vpack.c.b16 %v2382, %v2381
      %v2428 = vpack.c.b16 %v2384, %v2383
      %v2429 = vpack.c.b16 %v2386, %v2385
      %v2430 = vpack.c.b16 %v2388, %v2387
      %v2431 = vpack.c.b16 %v2390, %v2389
      %v2432 = vpack.c.b16 %v2392, %v2391
      %v2433 = vpack.c.b16 %v2394, %v2393
      %v2434 = vpack.c.b16 %v2396, %v2395
      %v2435 = vpack.c.b16 %v2398, %v2397
      %v2436 = vpack.c.b16 %v2400, %v2399
      %v2437 = vpack.c.b16 %v2402, %v2401
      %v2438 = vpack.c.b16 %v2404, %v2403
      %v2439 = vpack.c.b16 %v2406, %v2405
      %v2440 = vpack.c.b16 %v2408, %v2407
      %v2441 = vpack.c.b16 %v2410, %v2409
      %v2442 = vpack.c.b16 %v2412, %v2411
      %v2443 = vpack.c.b16 %v2414, %v2413
      %v2444 = vpack.c.b16 %v2416, %v2415
      %v2445 = vpack.c.b16 %v2418, %v2417
      %v2446 = vpack.c.b16 %v2420, %v2419
      %v2447 = vpack.c.b16 %v2422, %v2421
      %v2448 = vpack.c.b16 %v2424, %v2423
      %2473 = vmatprep.subr.bf16.mxu0 0
      %2474 = vmatpush1.bf16.msra.mxu0 %v2425
      %2475 = vmatprep.subr.bf16.mxu0 0
      %2476 = vmatpush1.bf16.msra.mxu0 %v2426
      %2477 = vmatprep.subr.bf16.mxu0 0
      %2478 = vmatpush1.bf16.msra.mxu0 %v2427
      %2479 = vmatprep.subr.bf16.mxu0 0
      %2480 = vmatpush1.bf16.msra.mxu0 %v2428
      %2481 = vmatprep.subr.bf16.mxu0 0
      %2482 = vmatpush1.bf16.msra.mxu0 %v2429
      %2483 = vmatprep.subr.bf16.mxu0 0
      %2484 = vmatpush1.bf16.msra.mxu0 %v2430
      %2485 = vmatprep.subr.bf16.mxu0 0
      %2486 = vmatpush1.bf16.msra.mxu0 %v2431
      %2487 = vmatprep.subr.bf16.mxu0 0
      %2488 = vmatpush1.bf16.msra.mxu0 %v2432
      %2489 = vmatprep.subr.bf16.mxu0 0
      %2490 = vmatpush1.bf16.msra.mxu0 %v2433
      %2491 = vmatprep.subr.bf16.mxu0 0
      %2492 = vmatpush1.bf16.msra.mxu0 %v2434
      %2493 = vmatprep.subr.bf16.mxu0 0
      %2494 = vmatpush1.bf16.msra.mxu0 %v2435
      %2495 = vmatprep.subr.bf16.mxu0 0
      %2496 = vmatpush1.bf16.msra.mxu0 %v2436
      %2497 = vmatprep.subr.bf16.mxu0 0
      %2498 = vmatpush1.bf16.msra.mxu0 %v2437
      %2499 = vmatprep.subr.bf16.mxu0 0
      %2500 = vmatpush1.bf16.msra.mxu0 %v2438
      %2501 = vmatprep.subr.bf16.mxu0 0
      %2502 = vmatpush1.bf16.msra.mxu0 %v2439
      %2503 = vmatprep.subr.bf16.mxu0 0
      %2504 = vmatpush1.bf16.msra.mxu0 %v2440
      %2505 = vmatprep.mubr.bf16.mxu0 %v1264
      %2506 = vmatmul.mubr.bf16.gmra.mrb[0].mxu0 %v1263
      %v2507 = vpop.f32.mrb[0].mxu0
      %v2508 = vadd.f32 %v2139, %v2507
      %v2509 = vpop.f32.mrb[0].mxu0
      %v2510 = vpop.f32.mrb[0].mxu0
      %v2511 = vadd.f32 %v2142, %v2510
      %v2512 = vpop.f32.mrb[0].mxu0
      %2513 = vmatprep.mubr.bf16.mxu0 %v1267
      %2514 = vmatmul.mubr.bf16.gmra.mrb[0].mxu0 %v1266
      %v2515 = vpop.f32.mrb[0].mxu0
      %v2516 = vadd.f32 %v2147, %v2515
      %v2517 = vpop.f32.mrb[0].mxu0
      %v2518 = vpop.f32.mrb[0].mxu0
      %v2519 = vadd.f32 %v2150, %v2518
      %v2520 = vpop.f32.mrb[0].mxu0
      %2521 = vmatprep.mubr.bf16.mxu0 %v1270
      %2522 = vmatmul.mubr.bf16.gmra.mrb[0].mxu0 %v1269
      %v2523 = vpop.f32.mrb[0].mxu0
      %v2524 = vadd.f32 %v2155, %v2523
      %v2525 = vpop.f32.mrb[0].mxu0
      %v2526 = vpop.f32.mrb[0].mxu0
      %v2527 = vadd.f32 %v2158, %v2526
      %v2528 = vpop.f32.mrb[0].mxu0
      %2529 = vmatprep.mubr.bf16.mxu0 %v1273
      %2530 = vmatmul.mubr.bf16.gmra.mrb[0].mxu0 %v1272
      %v2531 = vpop.f32.mrb[0].mxu0
      %v2532 = vadd.f32 %v2163, %v2531
      %v2533 = vpop.f32.mrb[0].mxu0
      %v2534 = vpop.f32.mrb[0].mxu0
      %v2535 = vadd.f32 %v2166, %v2534
      %v2536 = vpop.f32.mrb[0].mxu0
      %2537 = vmatprep.mubr.bf16.mxu0 %v1276
      %2538 = vmatmul.mubr.bf16.gmra.mrb[0].mxu0 %v1275
      %v2539 = vpop.f32.mrb[0].mxu0
      %v2540 = vadd.f32 %v2171, %v2539
      %v2541 = vpop.f32.mrb[0].mxu0
      %v2542 = vpop.f32.mrb[0].mxu0
      %v2543 = vadd.f32 %v2174, %v2542
      %v2544 = vpop.f32.mrb[0].mxu0
      %2545 = vmatprep.mubr.bf16.mxu0 %v1279
      %2546 = vmatmul.mubr.bf16.gmra.mrb[0].mxu0 %v1278
      %v2547 = vpop.f32.mrb[0].mxu0
      %v2548 = vadd.f32 %v2179, %v2547
      %v2549 = vpop.f32.mrb[0].mxu0
      %v2550 = vpop.f32.mrb[0].mxu0
      %v2551 = vadd.f32 %v2182, %v2550
      %v2552 = vpop.f32.mrb[0].mxu0
      %2553 = vmatprep.mubr.bf16.mxu0 %v1282
      %2554 = vmatmul.mubr.bf16.gmra.mrb[0].mxu0 %v1281
      %v2555 = vpop.f32.mrb[0].mxu0
      %v2556 = vadd.f32 %v2187, %v2555
      %v2557 = vpop.f32.mrb[0].mxu0
      %v2558 = vpop.f32.mrb[0].mxu0
      %v2559 = vadd.f32 %v2190, %v2558
      %v2560 = vpop.f32.mrb[0].mxu0
      %2561 = vmatprep.mubr.bf16.mxu0 %v1285
      %2562 = vmatmul.mubr.bf16.gmra.mrb[0].mxu0 %v1284
      %v2563 = vpop.f32.mrb[0].mxu0
      %v2564 = vadd.f32 %v2195, %v2563
      %v2565 = vpop.f32.mrb[0].mxu0
      %v2566 = vpop.f32.mrb[0].mxu0
      %v2567 = vadd.f32 %v2198, %v2566
      %v2568 = vpop.f32.mrb[0].mxu0
      %2569 = vmatprep.mubr.bf16.mxu0 %v1288
      %2570 = vmatmul.mubr.bf16.gmra.mrb[0].mxu0 %v1287
      %v2571 = vpop.f32.mrb[0].mxu0
      %v2572 = vadd.f32 %v2203, %v2571
      %v2573 = vpop.f32.mrb[0].mxu0
      %v2574 = vpop.f32.mrb[0].mxu0
      %v2575 = vadd.f32 %v2206, %v2574
      %v2576 = vpop.f32.mrb[0].mxu0
      %2577 = vmatprep.mubr.bf16.mxu0 %v1291
      %2578 = vmatmul.mubr.bf16.gmra.mrb[0].mxu0 %v1290
      %v2579 = vpop.f32.mrb[0].mxu0
      %v2580 = vadd.f32 %v2211, %v2579
      %v2581 = vpop.f32.mrb[0].mxu0
      %v2582 = vpop.f32.mrb[0].mxu0
      %v2583 = vadd.f32 %v2214, %v2582
      %v2584 = vpop.f32.mrb[0].mxu0
      %2585 = vmatprep.mubr.bf16.mxu0 %v1294
      %2586 = vmatmul.mubr.bf16.gmra.mrb[0].mxu0 %v1293
      %v2587 = vpop.f32.mrb[0].mxu0
      %v2588 = vadd.f32 %v2219, %v2587
      %v2589 = vpop.f32.mrb[0].mxu0
      %v2590 = vpop.f32.mrb[0].mxu0
      %v2591 = vadd.f32 %v2222, %v2590
      %v2592 = vpop.f32.mrb[0].mxu0
      %2593 = vmatprep.mubr.bf16.mxu0 %v1297
      %2594 = vmatmul.mubr.bf16.gmra.mrb[0].mxu0 %v1296
      %v2595 = vpop.f32.mrb[0].mxu0
      %v2596 = vadd.f32 %v2227, %v2595
      %v2597 = vpop.f32.mrb[0].mxu0
      %v2598 = vpop.f32.mrb[0].mxu0
      %v2599 = vadd.f32 %v2230, %v2598
      %v2600 = vpop.f32.mrb[0].mxu0
      %2601 = vmatprep.mubr.bf16.mxu0 %v1300
      %2602 = vmatmul.mubr.bf16.gmra.mrb[0].mxu0 %v1299
      %v2603 = vpop.f32.mrb[0].mxu0
      %v2604 = vadd.f32 %v2235, %v2603
      %v2605 = vpop.f32.mrb[0].mxu0
      %v2606 = vpop.f32.mrb[0].mxu0
      %v2607 = vadd.f32 %v2238, %v2606
      %v2608 = vpop.f32.mrb[0].mxu0
      %2609 = vmatprep.mubr.bf16.mxu0 %v1303
      %2610 = vmatmul.mubr.bf16.gmra.mrb[0].mxu0 %v1302
      %v2611 = vpop.f32.mrb[0].mxu0
      %v2612 = vadd.f32 %v2243, %v2611
      %v2613 = vpop.f32.mrb[0].mxu0
      %v2614 = vpop.f32.mrb[0].mxu0
      %v2615 = vadd.f32 %v2246, %v2614
      %v2616 = vpop.f32.mrb[0].mxu0
      %2617 = vmatprep.mubr.bf16.mxu0 %v1306
      %2618 = vmatmul.mubr.bf16.gmra.mrb[0].mxu0 %v1305
      %v2619 = vpop.f32.mrb[0].mxu0
      %v2620 = vadd.f32 %v2251, %v2619
      %v2621 = vpop.f32.mrb[0].mxu0
      %v2622 = vpop.f32.mrb[0].mxu0
      %v2623 = vadd.f32 %v2254, %v2622
      %v2624 = vpop.f32.mrb[0].mxu0
      %2625 = vmatprep.mubr.bf16.mxu0 %v1309
      %2626 = vmatmul.mubr.bf16.gmra.mrb[0].mxu0 %v1308
      %v2627 = vpop.f32.mrb[0].mxu0
      %v2628 = vadd.f32 %v2259, %v2627
      %v2629 = vpop.f32.mrb[0].mxu0
      %v2630 = vpop.f32.mrb[0].mxu0
      %v2631 = vadd.f32 %v2262, %v2630
      %v2632 = vpop.f32.mrb[0].mxu0
      %2633 = vmatprep.mubr.bf16.mxu0 %v1312
      %2634 = vmatmul.mubr.bf16.gmra.mrb[0].mxu0 %v1311
      %v2635 = vpop.f32.mrb[0].mxu0
      %v2636 = vadd.f32 %v2267, %v2635
      %v2637 = vpop.f32.mrb[0].mxu0
      %v2638 = vpop.f32.mrb[0].mxu0
      %v2639 = vadd.f32 %v2270, %v2638
      %v2640 = vpop.f32.mrb[0].mxu0
      %2641 = vmatprep.mubr.bf16.mxu0 %v1315
      %2642 = vmatmul.mubr.bf16.gmra.mrb[0].mxu0 %v1314
      %v2643 = vpop.f32.mrb[0].mxu0
      %v2644 = vadd.f32 %v2275, %v2643
      %v2645 = vpop.f32.mrb[0].mxu0
      %v2646 = vpop.f32.mrb[0].mxu0
      %v2647 = vadd.f32 %v2278, %v2646
      %v2648 = vpop.f32.mrb[0].mxu0
      %2649 = vmatprep.mubr.bf16.mxu0 %v1318
      %2650 = vmatmul.mubr.bf16.gmra.mrb[0].mxu0 %v1317
      %v2651 = vpop.f32.mrb[0].mxu0
      %v2652 = vadd.f32 %v2283, %v2651
      %v2653 = vpop.f32.mrb[0].mxu0
      %v2654 = vpop.f32.mrb[0].mxu0
      %v2655 = vadd.f32 %v2286, %v2654
      %v2656 = vpop.f32.mrb[0].mxu0
      %2657 = vmatprep.mubr.bf16.mxu0 %v1321
      %2658 = vmatmul.mubr.bf16.gmra.mrb[0].mxu0 %v1320
      %v2659 = vpop.f32.mrb[0].mxu0
      %v2660 = vadd.f32 %v2291, %v2659
      %v2661 = vpop.f32.mrb[0].mxu0
      %v2662 = vpop.f32.mrb[0].mxu0
      %v2663 = vadd.f32 %v2294, %v2662
      %v2664 = vpop.f32.mrb[0].mxu0
      %2665 = vmatprep.mubr.bf16.mxu0 %v1324
      %2666 = vmatmul.mubr.bf16.gmra.mrb[0].mxu0 %v1323
      %v2667 = vpop.f32.mrb[0].mxu0
      %v2668 = vadd.f32 %v2299, %v2667
      %v2669 = vpop.f32.mrb[0].mxu0
      %v2670 = vpop.f32.mrb[0].mxu0
      %v2671 = vadd.f32 %v2302, %v2670
      %v2672 = vpop.f32.mrb[0].mxu0
      %2673 = vmatprep.mubr.bf16.mxu0 %v1327
      %2674 = vmatmul.mubr.bf16.gmra.mrb[0].mxu0 %v1326
      %v2675 = vpop.f32.mrb[0].mxu0
      %v2676 = vadd.f32 %v2307, %v2675
      %v2677 = vpop.f32.mrb[0].mxu0
      %v2678 = vpop.f32.mrb[0].mxu0
      %v2679 = vadd.f32 %v2310, %v2678
      %v2680 = vpop.f32.mrb[0].mxu0
      %2681 = vmatprep.mubr.bf16.mxu0 %v1330
      %2682 = vmatmul.mubr.bf16.gmra.mrb[0].mxu0 %v1329
      %v2683 = vpop.f32.mrb[0].mxu0
      %v2684 = vadd.f32 %v2315, %v2683
      %v2685 = vpop.f32.mrb[0].mxu0
      %v2686 = vpop.f32.mrb[0].mxu0
      %v2687 = vadd.f32 %v2318, %v2686
      %v2688 = vpop.f32.mrb[0].mxu0
      %2689 = vmatprep.mubr.bf16.mxu0 %v1333
      %2690 = vmatmul.mubr.bf16.gmra.mrb[0].mxu0 %v1332
      %v2691 = vpop.f32.mrb[0].mxu0
      %v2692 = vadd.f32 %v2323, %v2691
      %v2693 = vpop.f32.mrb[0].mxu0
      %v2694 = vpop.f32.mrb[0].mxu0
      %v2695 = vadd.f32 %v2326, %v2694
      %v2696 = vpop.f32.mrb[0].mxu0
      %2697 = vdwg.mxu0
      %2698 = vmatprep.subr.bf16.mxu0 0
      %2699 = vmatpush1.bf16.msra.mxu0 %v2441
      %2700 = vmatprep.subr.bf16.mxu0 0
      %2701 = vmatpush1.bf16.msra.mxu0 %v2442
      %2702 = vmatprep.subr.bf16.mxu0 0
      %2703 = vmatpush1.bf16.msra.mxu0 %v2443
      %2704 = vmatprep.subr.bf16.mxu0 0
      %2705 = vmatpush1.bf16.msra.mxu0 %v2444
      %2706 = vmatprep.subr.bf16.mxu0 0
      %2707 = vmatpush1.bf16.msra.mxu0 %v2445
      %2708 = vmatprep.subr.bf16.mxu0 0
      %2709 = vmatpush1.bf16.msra.mxu0 %v2446
      %2710 = vmatprep.subr.bf16.mxu0 0
      %2711 = vmatpush1.bf16.msra.mxu0 %v2447
      %2712 = vmatprep.subr.bf16.mxu0 0
      %2713 = vmatpush1.bf16.msra.mxu0 %v2448
      %2714 = vmatprep.subr.bf16.mxu0 0
      %2715 = vmatpush1.bf16.msra.mxu0 0
      %2716 = vmatprep.subr.bf16.mxu0 0
      %2717 = vmatpush1.bf16.msra.mxu0 0
      %2718 = vmatprep.subr.bf16.mxu0 0
      %2719 = vmatpush1.bf16.msra.mxu0 0
      %2720 = vmatprep.subr.bf16.mxu0 0
      %2721 = vmatpush1.bf16.msra.mxu0 0
      %2722 = vmatprep.subr.bf16.mxu0 0
      %2723 = vmatpush1.bf16.msra.mxu0 0
      %2724 = vmatprep.subr.bf16.mxu0 0
      %2725 = vmatpush1.bf16.msra.mxu0 0
      %2726 = vmatprep.subr.bf16.mxu0 0
      %2727 = vmatpush1.bf16.msra.mxu0 0
      %2728 = vmatprep.subr.bf16.mxu0 0
      %2729 = vmatpush1.bf16.msra.mxu0 0
      %2730 = vmatprep.mubr.bf16.mxu0 0
      %2731 = vmatmul.mubr.bf16.gmra.mrb[0].mxu0 %v1265
      %v2732 = vpop.f32.mrb[0].mxu0
      %v2733 = vadd.f32 %v2508, %v2732
      %v2734 = vpop.f32.mrb[0].mxu0
      %v2735 = vpop.f32.mrb[0].mxu0
      %v2736 = vadd.f32 %v2511, %v2735
      %v2737 = vpop.f32.mrb[0].mxu0
      %2738 = vmatprep.mubr.bf16.mxu0 0
      %2739 = vmatmul.mubr.bf16.gmra.mrb[0].mxu0 %v1268
      %v2740 = vpop.f32.mrb[0].mxu0
      %v2741 = vadd.f32 %v2516, %v2740
      %v2742 = vpop.f32.mrb[0].mxu0
      %v2743 = vpop.f32.mrb[0].mxu0
      %v2744 = vadd.f32 %v2519, %v2743
      %v2745 = vpop.f32.mrb[0].mxu0
      %2746 = vmatprep.mubr.bf16.mxu0 0
      %2747 = vmatmul.mubr.bf16.gmra.mrb[0].mxu0 %v1271
      %v2748 = vpop.f32.mrb[0].mxu0
      %v2749 = vadd.f32 %v2524, %v2748
      %v2750 = vpop.f32.mrb[0].mxu0
      %v2751 = vpop.f32.mrb[0].mxu0
      %v2752 = vadd.f32 %v2527, %v2751
      %v2753 = vpop.f32.mrb[0].mxu0
      %2754 = vmatprep.mubr.bf16.mxu0 0
      %2755 = vmatmul.mubr.bf16.gmra.mrb[0].mxu0 %v1274
      %v2756 = vpop.f32.mrb[0].mxu0
      %v2757 = vadd.f32 %v2532, %v2756
      %v2758 = vpop.f32.mrb[0].mxu0
      %v2759 = vpop.f32.mrb[0].mxu0
      %v2760 = vadd.f32 %v2535, %v2759
      %v2761 = vpop.f32.mrb[0].mxu0
      %2762 = vmatprep.mubr.bf16.mxu0 0
      %2763 = vmatmul.mubr.bf16.gmra.mrb[0].mxu0 %v1277
      %v2764 = vpop.f32.mrb[0].mxu0
      %v2765 = vadd.f32 %v2540, %v2764
      %v2766 = vpop.f32.mrb[0].mxu0
      %v2767 = vpop.f32.mrb[0].mxu0
      %v2768 = vadd.f32 %v2543, %v2767
      %v2769 = vpop.f32.mrb[0].mxu0
      %2770 = vmatprep.mubr.bf16.mxu0 0
      %2771 = vmatmul.mubr.bf16.gmra.mrb[0].mxu0 %v1280
      %v2772 = vpop.f32.mrb[0].mxu0
      %v2773 = vadd.f32 %v2548, %v2772
      %v2774 = vpop.f32.mrb[0].mxu0
      %v2775 = vpop.f32.mrb[0].mxu0
      %v2776 = vadd.f32 %v2551, %v2775
      %v2777 = vpop.f32.mrb[0].mxu0
      %2778 = vmatprep.mubr.bf16.mxu0 0
      %2779 = vmatmul.mubr.bf16.gmra.mrb[0].mxu0 %v1283
      %v2780 = vpop.f32.mrb[0].mxu0
      %v2781 = vadd.f32 %v2556, %v2780
      %v2782 = vpop.f32.mrb[0].mxu0
      %v2783 = vpop.f32.mrb[0].mxu0
      %v2784 = vadd.f32 %v2559, %v2783
      %v2785 = vpop.f32.mrb[0].mxu0
      %2786 = vmatprep.mubr.bf16.mxu0 0
      %2787 = vmatmul.mubr.bf16.gmra.mrb[0].mxu0 %v1286
      %v2788 = vpop.f32.mrb[0].mxu0
      %v2789 = vadd.f32 %v2564, %v2788
      %v2790 = vpop.f32.mrb[0].mxu0
      %v2791 = vpop.f32.mrb[0].mxu0
      %v2792 = vadd.f32 %v2567, %v2791
      %v2793 = vpop.f32.mrb[0].mxu0
      %2794 = vmatprep.mubr.bf16.mxu0 0
      %2795 = vmatmul.mubr.bf16.gmra.mrb[0].mxu0 %v1289
      %v2796 = vpop.f32.mrb[0].mxu0
      %v2797 = vadd.f32 %v2572, %v2796
      %v2798 = vpop.f32.mrb[0].mxu0
      %v2799 = vpop.f32.mrb[0].mxu0
      %v2800 = vadd.f32 %v2575, %v2799
      %v2801 = vpop.f32.mrb[0].mxu0
      %2802 = vmatprep.mubr.bf16.mxu0 0
      %2803 = vmatmul.mubr.bf16.gmra.mrb[0].mxu0 %v1292
      %v2804 = vpop.f32.mrb[0].mxu0
      %v2805 = vadd.f32 %v2580, %v2804
      %v2806 = vpop.f32.mrb[0].mxu0
      %v2807 = vpop.f32.mrb[0].mxu0
      %v2808 = vadd.f32 %v2583, %v2807
      %v2809 = vpop.f32.mrb[0].mxu0
      %2810 = vmatprep.mubr.bf16.mxu0 0
      %2811 = vmatmul.mubr.bf16.gmra.mrb[0].mxu0 %v1295
      %v2812 = vpop.f32.mrb[0].mxu0
      %v2813 = vadd.f32 %v2588, %v2812
      %v2814 = vpop.f32.mrb[0].mxu0
      %v2815 = vpop.f32.mrb[0].mxu0
      %v2816 = vadd.f32 %v2591, %v2815
      %v2817 = vpop.f32.mrb[0].mxu0
      %2818 = vmatprep.mubr.bf16.mxu0 0
      %2819 = vmatmul.mubr.bf16.gmra.mrb[0].mxu0 %v1298
      %v2820 = vpop.f32.mrb[0].mxu0
      %v2821 = vadd.f32 %v2596, %v2820
      %v2822 = vpop.f32.mrb[0].mxu0
      %v2823 = vpop.f32.mrb[0].mxu0
      %v2824 = vadd.f32 %v2599, %v2823
      %v2825 = vpop.f32.mrb[0].mxu0
      %2826 = vmatprep.mubr.bf16.mxu0 0
      %2827 = vmatmul.mubr.bf16.gmra.mrb[0].mxu0 %v1301
      %v2828 = vpop.f32.mrb[0].mxu0
      %v2829 = vadd.f32 %v2604, %v2828
      %v2830 = vpop.f32.mrb[0].mxu0
      %v2831 = vpop.f32.mrb[0].mxu0
      %v2832 = vadd.f32 %v2607, %v2831
      %v2833 = vpop.f32.mrb[0].mxu0
      %2834 = vmatprep.mubr.bf16.mxu0 0
      %2835 = vmatmul.mubr.bf16.gmra.mrb[0].mxu0 %v1304
      %v2836 = vpop.f32.mrb[0].mxu0
      %v2837 = vadd.f32 %v2612, %v2836
      %v2838 = vpop.f32.mrb[0].mxu0
      %v2839 = vpop.f32.mrb[0].mxu0
      %v2840 = vadd.f32 %v2615, %v2839
      %v2841 = vpop.f32.mrb[0].mxu0
      %2842 = vmatprep.mubr.bf16.mxu0 0
      %2843 = vmatmul.mubr.bf16.gmra.mrb[0].mxu0 %v1307
      %v2844 = vpop.f32.mrb[0].mxu0
      %v2845 = vadd.f32 %v2620, %v2844
      %v2846 = vpop.f32.mrb[0].mxu0
      %v2847 = vpop.f32.mrb[0].mxu0
      %v2848 = vadd.f32 %v2623, %v2847
      %v2849 = vpop.f32.mrb[0].mxu0
      %2850 = vmatprep.mubr.bf16.mxu0 0
      %2851 = vmatmul.mubr.bf16.gmra.mrb[0].mxu0 %v1310
      %v2852 = vpop.f32.mrb[0].mxu0
      %v2853 = vadd.f32 %v2628, %v2852
      %v2854 = vpop.f32.mrb[0].mxu0
      %v2855 = vpop.f32.mrb[0].mxu0
      %v2856 = vadd.f32 %v2631, %v2855
      %v2857 = vpop.f32.mrb[0].mxu0
      %2858 = vmatprep.mubr.bf16.mxu0 0
      %2859 = vmatmul.mubr.bf16.gmra.mrb[0].mxu0 %v1313
      %v2860 = vpop.f32.mrb[0].mxu0
      %v2861 = vadd.f32 %v2636, %v2860
      %v2862 = vpop.f32.mrb[0].mxu0
      %v2863 = vpop.f32.mrb[0].mxu0
      %v2864 = vadd.f32 %v2639, %v2863
      %v2865 = vpop.f32.mrb[0].mxu0
      %2866 = vmatprep.mubr.bf16.mxu0 0
      %2867 = vmatmul.mubr.bf16.gmra.mrb[0].mxu0 %v1316
      %v2868 = vpop.f32.mrb[0].mxu0
      %v2869 = vadd.f32 %v2644, %v2868
      %v2870 = vpop.f32.mrb[0].mxu0
      %v2871 = vpop.f32.mrb[0].mxu0
      %v2872 = vadd.f32 %v2647, %v2871
      %v2873 = vpop.f32.mrb[0].mxu0
      %2874 = vmatprep.mubr.bf16.mxu0 0
      %2875 = vmatmul.mubr.bf16.gmra.mrb[0].mxu0 %v1319
      %v2876 = vpop.f32.mrb[0].mxu0
      %v2877 = vadd.f32 %v2652, %v2876
      %v2878 = vpop.f32.mrb[0].mxu0
      %v2879 = vpop.f32.mrb[0].mxu0
      %v2880 = vadd.f32 %v2655, %v2879
      %v2881 = vpop.f32.mrb[0].mxu0
      %2882 = vmatprep.mubr.bf16.mxu0 0
      %2883 = vmatmul.mubr.bf16.gmra.mrb[0].mxu0 %v1322
      %v2884 = vpop.f32.mrb[0].mxu0
      %v2885 = vadd.f32 %v2660, %v2884
      %v2886 = vpop.f32.mrb[0].mxu0
      %v2887 = vpop.f32.mrb[0].mxu0
      %v2888 = vadd.f32 %v2663, %v2887
      %v2889 = vpop.f32.mrb[0].mxu0
      %2890 = vmatprep.mubr.bf16.mxu0 0
      %2891 = vmatmul.mubr.bf16.gmra.mrb[0].mxu0 %v1325
      %v2892 = vpop.f32.mrb[0].mxu0
      %v2893 = vadd.f32 %v2668, %v2892
      %v2894 = vpop.f32.mrb[0].mxu0
      %v2895 = vpop.f32.mrb[0].mxu0
      %v2896 = vadd.f32 %v2671, %v2895
      %v2897 = vpop.f32.mrb[0].mxu0
      %2898 = vmatprep.mubr.bf16.mxu0 0
      %2899 = vmatmul.mubr.bf16.gmra.mrb[0].mxu0 %v1328
      %v2900 = vpop.f32.mrb[0].mxu0
      %v2901 = vadd.f32 %v2676, %v2900
      %v2902 = vpop.f32.mrb[0].mxu0
      %v2903 = vpop.f32.mrb[0].mxu0
      %v2904 = vadd.f32 %v2679, %v2903
      %v2905 = vpop.f32.mrb[0].mxu0
      %2906 = vmatprep.mubr.bf16.mxu0 0
      %2907 = vmatmul.mubr.bf16.gmra.mrb[0].mxu0 %v1331
      %v2908 = vpop.f32.mrb[0].mxu0
      %v2909 = vadd.f32 %v2684, %v2908
      %v2910 = vpop.f32.mrb[0].mxu0
      %v2911 = vpop.f32.mrb[0].mxu0
      %v2912 = vadd.f32 %v2687, %v2911
      %v2913 = vpop.f32.mrb[0].mxu0
      %2914 = vmatprep.mubr.bf16.mxu0 0
      %2915 = vmatmul.mubr.bf16.gmra.mrb[0].mxu0 %v1334
      %v2916 = vpop.f32.mrb[0].mxu0
      %v2917 = vadd.f32 %v2692, %v2916
      %v2918 = vpop.f32.mrb[0].mxu0
      %v2919 = vpop.f32.mrb[0].mxu0
      %v2920 = vadd.f32 %v2695, %v2919
      %v2921 = vpop.f32.mrb[0].mxu0
      %2922 = vdwg.mxu0
      %v2923 = vld [vmem:[#allocation2 + $0x48] sm:$0xff]
      %v2924 = vld [vmem:[#allocation2 + $0x50] sm:$0xff]
      %v2925 = vld [vmem:[#allocation2 + $0x58] sm:$0xff]
      %v2926 = vld [vmem:[#allocation2 + $0x60] sm:$0xff]
      %v2927 = vld [vmem:[#allocation2 + $0x68] sm:$0xff]
      %v2928 = vld [vmem:[#allocation2 + $0x70] sm:$0xff]
      %v2929 = vld [vmem:[#allocation2 + $0x78] sm:$0xff]
      %v2930 = vld [vmem:[#allocation2 + $0x80] sm:$0xff]
      %v2931 = vld [vmem:[#allocation2 + $0x88] sm:$0xff]
      %v2932 = vld [vmem:[#allocation2 + $0x90] sm:$0xff]
      %v2933 = vld [vmem:[#allocation2 + $0x98] sm:$0xff]
      %v2934 = vld [vmem:[#allocation2 + $0xa0] sm:$0xff]
      %v2935 = vld [vmem:[#allocation2 + $0xa8] sm:$0xff]
      %v2936 = vld [vmem:[#allocation2 + $0xb0] sm:$0xff]
      %v2937 = vld [vmem:[#allocation2 + $0xb8] sm:$0xff]
      %v2938 = vld [vmem:[#allocation2 + $0xc0] sm:$0xff]
      %v2939 = vld [vmem:[#allocation2 + $0xc8] sm:$0xff]
      %v2940 = vld [vmem:[#allocation2 + $0xd0] sm:$0xff]
      %v2941 = vld [vmem:[#allocation2 + $0xd8] sm:$0xff]
      %v2942 = vld [vmem:[#allocation2 + $0xe0] sm:$0xff]
      %v2943 = vld [vmem:[#allocation2 + $0xe8] sm:$0xff]
      %v2944 = vld [vmem:[#allocation2 + $0xf0] sm:$0xff]
      %v2945 = vld [vmem:[#allocation2 + $0xf8] sm:$0xff]
      %v2946 = vld [vmem:[#allocation2 + $0x100] sm:$0xff]
      %v2947 = vld [vmem:[#allocation2 + $0x108] sm:$0xff]
      %v2948 = vld [vmem:[#allocation2 + $0x110] sm:$0xff]
      %v2949 = vld [vmem:[#allocation2 + $0x118] sm:$0xff]
      %v2950 = vld [vmem:[#allocation2 + $0x120] sm:$0xff]
      %v2951 = vld [vmem:[#allocation2 + $0x128] sm:$0xff]
      %v2952 = vld [vmem:[#allocation2 + $0x130] sm:$0xff]
      %v2953 = vld [vmem:[#allocation2 + $0x138] sm:$0xff]
      %v2954 = vld [vmem:[#allocation2 + $0x140] sm:$0xff]
      %v2955 = vld [vmem:[#allocation2 + $0x148] sm:$0xff]
      %v2956 = vld [vmem:[#allocation2 + $0x150] sm:$0xff]
      %v2957 = vld [vmem:[#allocation2 + $0x158] sm:$0xff]
      %v2958 = vld [vmem:[#allocation2 + $0x160] sm:$0xff]
      %v2959 = vld [vmem:[#allocation2 + $0x168] sm:$0xff]
      %v2960 = vld [vmem:[#allocation2 + $0x170] sm:$0xff]
      %v2961 = vld [vmem:[#allocation2 + $0x178] sm:$0xff]
      %v2962 = vld [vmem:[#allocation2 + $0x180] sm:$0xff]
      %v2963 = vld [vmem:[#allocation2 + $0x188] sm:$0xff]
      %v2964 = vld [vmem:[#allocation2 + $0x190] sm:$0xff]
      %v2965 = vld [vmem:[#allocation2 + $0x198] sm:$0xff]
      %v2966 = vld [vmem:[#allocation2 + $0x1a0] sm:$0xff]
      %v2967 = vld [vmem:[#allocation2 + $0x1a8] sm:$0xff]
      %v2968 = vld [vmem:[#allocation2 + $0x1b0] sm:$0xff]
      %v2969 = vld [vmem:[#allocation2 + $0x1b8] sm:$0xff]
      %v2970 = vld [vmem:[#allocation2 + $0x1c0] sm:$0xff]
      %v2971 = vld [vmem:[#allocation2 + $0x1c8] sm:$0xff]
      %v2972 = vld [vmem:[#allocation2 + $0x1d0] sm:$0xff]
      %v2973 = vld [vmem:[#allocation2 + $0x1d8] sm:$0xff]
      %v2974 = vld [vmem:[#allocation2 + $0x1e0] sm:$0xff]
      %v2975 = vld [vmem:[#allocation2 + $0x1e8] sm:$0xff]
      %v2976 = vld [vmem:[#allocation2 + $0x1f0] sm:$0xff]
      %v2977 = vld [vmem:[#allocation2 + $0x1f8] sm:$0xff]
      %v2978 = vld [vmem:[#allocation2 + $0x200] sm:$0xff]
      %v2979 = vld [vmem:[#allocation2 + $0x208] sm:$0xff]
      %v2980 = vld [vmem:[#allocation2 + $0x210] sm:$0xff]
      %v2981 = vld [vmem:[#allocation2 + $0x218] sm:$0xff]
      %v2982 = vld [vmem:[#allocation2 + $0x220] sm:$0xff]
      %v2983 = vld [vmem:[#allocation2 + $0x228] sm:$0xff]
      %v2984 = vld [vmem:[#allocation2 + $0x230] sm:$0xff]
      %v2985 = vld [vmem:[#allocation2 + $0x238] sm:$0xff]
      %v2986 = vld [vmem:[#allocation2 + $0x240] sm:$0xff]
      %v2987 = vld [vmem:[#allocation2 + $0x248] sm:$0xff]
      %v2988 = vld [vmem:[#allocation2 + $0x250] sm:$0xff]
      %v2989 = vld [vmem:[#allocation2 + $0x258] sm:$0xff]
      %v2990 = vld [vmem:[#allocation2 + $0x260] sm:$0xff]
      %v2991 = vld [vmem:[#allocation2 + $0x268] sm:$0xff]
      %v2992 = vld [vmem:[#allocation2 + $0x270] sm:$0xff]
      %v2993 = vld [vmem:[#allocation2 + $0x278] sm:$0xff]
      %v2994 = vld [vmem:[#allocation2 + $0x280] sm:$0xff]
      %v2995 = vld [vmem:[%s2 + $0x180] sm:$0xf]
      %v2996 = vld [vmem:[%s2 + $0x184] sm:$0xf]
      %v2997 = vld [vmem:[%s2 + $0x188] sm:$0xf]
      %v2998 = vld [vmem:[%s2 + $0x18c] sm:$0xf]
      %v2999 = vld [vmem:[%s2 + $0x190] sm:$0xf]
      %v3000 = vld [vmem:[%s2 + $0x194] sm:$0xf]
      %v3001 = vld [vmem:[%s2 + $0x198] sm:$0xf]
      %v3002 = vld [vmem:[%s2 + $0x19c] sm:$0xf]
      %v3003 = vld [vmem:[%s2 + $0x1a0] sm:$0xf]
      %v3004 = vld [vmem:[%s2 + $0x1a4] sm:$0xf]
      %v3005 = vld [vmem:[%s2 + $0x1a8] sm:$0xf]
      %v3006 = vld [vmem:[%s2 + $0x1ac] sm:$0xf]
      %v3007 = vld [vmem:[%s2 + $0x1b0] sm:$0xf]
      %v3008 = vld [vmem:[%s2 + $0x1b4] sm:$0xf]
      %v3009 = vld [vmem:[%s2 + $0x1b8] sm:$0xf]
      %v3010 = vld [vmem:[%s2 + $0x1bc] sm:$0xf]
      %v3011 = vld [vmem:[%s2 + $0x1c0] sm:$0xf]
      %v3012 = vld [vmem:[%s2 + $0x1c4] sm:$0xf]
      %v3013 = vld [vmem:[%s2 + $0x1c8] sm:$0xf]
      %v3014 = vld [vmem:[%s2 + $0x1cc] sm:$0xf]
      %v3015 = vld [vmem:[%s2 + $0x1d0] sm:$0xf]
      %v3016 = vld [vmem:[%s2 + $0x1d4] sm:$0xf]
      %v3017 = vld [vmem:[%s2 + $0x1d8] sm:$0xf]
      %v3018 = vld [vmem:[%s2 + $0x1dc] sm:$0xf]
      %v3019 = vld [vmem:[%s2 + $0x1e0] sm:$0xf]
      %v3020 = vld [vmem:[%s2 + $0x1e4] sm:$0xf]
      %v3021 = vld [vmem:[%s2 + $0x1e8] sm:$0xf]
      %v3022 = vld [vmem:[%s2 + $0x1ec] sm:$0xf]
      %v3023 = vld [vmem:[%s2 + $0x1f0] sm:$0xf]
      %v3024 = vld [vmem:[%s2 + $0x1f4] sm:$0xf]
      %v3025 = vld [vmem:[%s2 + $0x1f8] sm:$0xf]
      %v3026 = vld [vmem:[%s2 + $0x1fc] sm:$0xf]
      %v3027 = vld [vmem:[%s2 + $0x200] sm:$0xf]
      %v3028 = vld [vmem:[%s2 + $0x204] sm:$0xf]
      %v3029 = vld [vmem:[%s2 + $0x208] sm:$0xf]
      %v3030 = vld [vmem:[%s2 + $0x20c] sm:$0xf]
      %v3031 = vld [vmem:[%s2 + $0x210] sm:$0xf]
      %v3032 = vld [vmem:[%s2 + $0x214] sm:$0xf]
      %v3033 = vld [vmem:[%s2 + $0x218] sm:$0xf]
      %v3034 = vld [vmem:[%s2 + $0x21c] sm:$0xf]
      %v3035 = vld [vmem:[%s2 + $0x220] sm:$0xf]
      %v3036 = vld [vmem:[%s2 + $0x224] sm:$0xf]
      %v3037 = vld [vmem:[%s2 + $0x228] sm:$0xf]
      %v3038 = vld [vmem:[%s2 + $0x22c] sm:$0xf]
      %v3039 = vld [vmem:[%s2 + $0x230] sm:$0xf]
      %v3040 = vld [vmem:[%s2 + $0x234] sm:$0xf]
      %v3041 = vld [vmem:[%s2 + $0x238] sm:$0xf]
      %v3042 = vld [vmem:[%s2 + $0x23c] sm:$0xf]
      %v3091 = vunpack.c.l.b16 %v2995
      %v3092 = vunpack.c.l.b16 %v2996
      %v3093 = vunpack.c.l.b16 %v2997
      %v3094 = vunpack.c.l.b16 %v2998
      %v3095 = vunpack.c.l.b16 %v2999
      %v3096 = vunpack.c.l.b16 %v3000
      %v3097 = vunpack.c.l.b16 %v3001
      %v3098 = vunpack.c.l.b16 %v3002
      %v3099 = vunpack.c.l.b16 %v3003
      %v3100 = vunpack.c.l.b16 %v3004
      %v3101 = vunpack.c.l.b16 %v3005
      %v3102 = vunpack.c.l.b16 %v3006
      %v3103 = vunpack.c.l.b16 %v3007
      %v3104 = vunpack.c.l.b16 %v3008
      %v3105 = vunpack.c.l.b16 %v3009
      %v3106 = vunpack.c.l.b16 %v3010
      %v3107 = vunpack.c.l.b16 %v3011
      %v3108 = vunpack.c.l.b16 %v3012
      %v3109 = vunpack.c.l.b16 %v3013
      %v3110 = vunpack.c.l.b16 %v3014
      %v3111 = vunpack.c.l.b16 %v3015
      %v3112 = vunpack.c.l.b16 %v3016
      %v3113 = vunpack.c.l.b16 %v3017
      %v3114 = vunpack.c.l.b16 %v3018
      %v3115 = vunpack.c.l.b16 %v3019
      %v3116 = vunpack.c.l.b16 %v3020
      %v3117 = vunpack.c.l.b16 %v3021
      %v3118 = vunpack.c.l.b16 %v3022
      %v3119 = vunpack.c.l.b16 %v3023
      %v3120 = vunpack.c.l.b16 %v3024
      %v3121 = vunpack.c.l.b16 %v3025
      %v3122 = vunpack.c.l.b16 %v3026
      %v3123 = vunpack.c.l.b16 %v3027
      %v3124 = vunpack.c.l.b16 %v3028
      %v3125 = vunpack.c.l.b16 %v3029
      %v3126 = vunpack.c.l.b16 %v3030
      %v3127 = vunpack.c.l.b16 %v3031
      %v3128 = vunpack.c.l.b16 %v3032
      %v3129 = vunpack.c.l.b16 %v3033
      %v3130 = vunpack.c.l.b16 %v3034
      %v3131 = vunpack.c.l.b16 %v3035
      %v3132 = vunpack.c.l.b16 %v3036
      %v3133 = vunpack.c.l.b16 %v3037
      %v3134 = vunpack.c.l.b16 %v3038
      %v3135 = vunpack.c.l.b16 %v3039
      %v3136 = vunpack.c.l.b16 %v3040
      %v3137 = vunpack.c.l.b16 %v3041
      %v3138 = vunpack.c.l.b16 %v3042
      %v3139 = vpack.c.b16 %v3092, %v3091
      %v3140 = vpack.c.b16 %v3094, %v3093
      %v3141 = vpack.c.b16 %v3096, %v3095
      %v3142 = vpack.c.b16 %v3098, %v3097
      %v3143 = vpack.c.b16 %v3100, %v3099
      %v3144 = vpack.c.b16 %v3102, %v3101
      %v3145 = vpack.c.b16 %v3104, %v3103
      %v3146 = vpack.c.b16 %v3106, %v3105
      %v3147 = vpack.c.b16 %v3108, %v3107
      %v3148 = vpack.c.b16 %v3110, %v3109
      %v3149 = vpack.c.b16 %v3112, %v3111
      %v3150 = vpack.c.b16 %v3114, %v3113
      %v3151 = vpack.c.b16 %v3116, %v3115
      %v3152 = vpack.c.b16 %v3118, %v3117
      %v3153 = vpack.c.b16 %v3120, %v3119
      %v3154 = vpack.c.b16 %v3122, %v3121
      %v3155 = vpack.c.b16 %v3124, %v3123
      %v3156 = vpack.c.b16 %v3126, %v3125
      %v3157 = vpack.c.b16 %v3128, %v3127
      %v3158 = vpack.c.b16 %v3130, %v3129
      %v3159 = vpack.c.b16 %v3132, %v3131
      %v3160 = vpack.c.b16 %v3134, %v3133
      %v3161 = vpack.c.b16 %v3136, %v3135
      %v3162 = vpack.c.b16 %v3138, %v3137
      %3187 = vmatprep.subr.bf16.mxu0 0
      %3188 = vmatpush1.bf16.msra.mxu0 %v3139
      %3189 = vmatprep.subr.bf16.mxu0 0
      %3190 = vmatpush1.bf16.msra.mxu0 %v3140
      %3191 = vmatprep.subr.bf16.mxu0 0
      %3192 = vmatpush1.bf16.msra.mxu0 %v3141
      %3193 = vmatprep.subr.bf16.mxu0 0
      %3194 = vmatpush1.bf16.msra.mxu0 %v3142
      %3195 = vmatprep.subr.bf16.mxu0 0
      %3196 = vmatpush1.bf16.msra.mxu0 %v3143
      %3197 = vmatprep.subr.bf16.mxu0 0
      %3198 = vmatpush1.bf16.msra.mxu0 %v3144
      %3199 = vmatprep.subr.bf16.mxu0 0
      %3200 = vmatpush1.bf16.msra.mxu0 %v3145
      %3201 = vmatprep.subr.bf16.mxu0 0
      %3202 = vmatpush1.bf16.msra.mxu0 %v3146
      %3203 = vmatprep.subr.bf16.mxu0 0
      %3204 = vmatpush1.bf16.msra.mxu0 %v3147
      %3205 = vmatprep.subr.bf16.mxu0 0
      %3206 = vmatpush1.bf16.msra.mxu0 %v3148
      %3207 = vmatprep.subr.bf16.mxu0 0
      %3208 = vmatpush1.bf16.msra.mxu0 %v3149
      %3209 = vmatprep.subr.bf16.mxu0 0
      %3210 = vmatpush1.bf16.msra.mxu0 %v3150
      %3211 = vmatprep.subr.bf16.mxu0 0
      %3212 = vmatpush1.bf16.msra.mxu0 %v3151
      %3213 = vmatprep.subr.bf16.mxu0 0
      %3214 = vmatpush1.bf16.msra.mxu0 %v3152
      %3215 = vmatprep.subr.bf16.mxu0 0
      %3216 = vmatpush1.bf16.msra.mxu0 %v3153
      %3217 = vmatprep.subr.bf16.mxu0 0
      %3218 = vmatpush1.bf16.msra.mxu0 %v3154
      %3219 = vmatprep.mubr.bf16.mxu0 %v2924
      %3220 = vmatmul.mubr.bf16.gmra.mrb[0].mxu0 %v2923
      %v3221 = vpop.f32.mrb[0].mxu0
      %v3222 = vadd.f32 0.0, %v3221
      %v3223 = vpop.f32.mrb[0].mxu0
      %v3224 = vpop.f32.mrb[0].mxu0
      %v3225 = vadd.f32 0.0, %v3224
      %v3226 = vpop.f32.mrb[0].mxu0
      %3227 = vmatprep.mubr.bf16.mxu0 %v2927
      %3228 = vmatmul.mubr.bf16.gmra.mrb[0].mxu0 %v2926
      %v3229 = vpop.f32.mrb[0].mxu0
      %v3230 = vadd.f32 0.0, %v3229
      %v3231 = vpop.f32.mrb[0].mxu0
      %v3232 = vpop.f32.mrb[0].mxu0
      %v3233 = vadd.f32 0.0, %v3232
      %v3234 = vpop.f32.mrb[0].mxu0
      %3235 = vmatprep.mubr.bf16.mxu0 %v2930
      %3236 = vmatmul.mubr.bf16.gmra.mrb[0].mxu0 %v2929
      %v3237 = vpop.f32.mrb[0].mxu0
      %v3238 = vadd.f32 0.0, %v3237
      %v3239 = vpop.f32.mrb[0].mxu0
      %v3240 = vpop.f32.mrb[0].mxu0
      %v3241 = vadd.f32 0.0, %v3240
      %v3242 = vpop.f32.mrb[0].mxu0
      %3243 = vmatprep.mubr.bf16.mxu0 %v2933
      %3244 = vmatmul.mubr.bf16.gmra.mrb[0].mxu0 %v2932
      %v3245 = vpop.f32.mrb[0].mxu0
      %v3246 = vadd.f32 0.0, %v3245
      %v3247 = vpop.f32.mrb[0].mxu0
      %v3248 = vpop.f32.mrb[0].mxu0
      %v3249 = vadd.f32 0.0, %v3248
      %v3250 = vpop.f32.mrb[0].mxu0
      %3251 = vmatprep.mubr.bf16.mxu0 %v2936
      %3252 = vmatmul.mubr.bf16.gmra.mrb[0].mxu0 %v2935
      %v3253 = vpop.f32.mrb[0].mxu0
      %v3254 = vadd.f32 0.0, %v3253
      %v3255 = vpop.f32.mrb[0].mxu0
      %v3256 = vpop.f32.mrb[0].mxu0
      %v3257 = vadd.f32 0.0, %v3256
      %v3258 = vpop.f32.mrb[0].mxu0
      %3259 = vmatprep.mubr.bf16.mxu0 %v2939
      %3260 = vmatmul.mubr.bf16.gmra.mrb[0].mxu0 %v2938
      %v3261 = vpop.f32.mrb[0].mxu0
      %v3262 = vadd.f32 0.0, %v3261
      %v3263 = vpop.f32.mrb[0].mxu0
      %v3264 = vpop.f32.mrb[0].mxu0
      %v3265 = vadd.f32 0.0, %v3264
      %v3266 = vpop.f32.mrb[0].mxu0
      %3267 = vmatprep.mubr.bf16.mxu0 %v2942
      %3268 = vmatmul.mubr.bf16.gmra.mrb[0].mxu0 %v2941
      %v3269 = vpop.f32.mrb[0].mxu0
      %v3270 = vadd.f32 0.0, %v3269
      %v3271 = vpop.f32.mrb[0].mxu0
      %v3272 = vpop.f32.mrb[0].mxu0
      %v3273 = vadd.f32 0.0, %v3272
      %v3274 = vpop.f32.mrb[0].mxu0
      %3275 = vmatprep.mubr.bf16.mxu0 %v2945
      %3276 = vmatmul.mubr.bf16.gmra.mrb[0].mxu0 %v2944
      %v3277 = vpop.f32.mrb[0].mxu0
      %v3278 = vadd.f32 0.0, %v3277
      %v3279 = vpop.f32.mrb[0].mxu0
      %v3280 = vpop.f32.mrb[0].mxu0
      %v3281 = vadd.f32 0.0, %v3280
      %v3282 = vpop.f32.mrb[0].mxu0
      %3283 = vmatprep.mubr.bf16.mxu0 %v2948
      %3284 = vmatmul.mubr.bf16.gmra.mrb[0].mxu0 %v2947
      %v3285 = vpop.f32.mrb[0].mxu0
      %v3286 = vadd.f32 0.0, %v3285
      %v3287 = vpop.f32.mrb[0].mxu0
      %v3288 = vpop.f32.mrb[0].mxu0
      %v3289 = vadd.f32 0.0, %v3288
      %v3290 = vpop.f32.mrb[0].mxu0
      %3291 = vmatprep.mubr.bf16.mxu0 %v2951
      %3292 = vmatmul.mubr.bf16.gmra.mrb[0].mxu0 %v2950
      %v3293 = vpop.f32.mrb[0].mxu0
      %v3294 = vadd.f32 0.0, %v3293
      %v3295 = vpop.f32.mrb[0].mxu0
      %v3296 = vpop.f32.mrb[0].mxu0
      %v3297 = vadd.f32 0.0, %v3296
      %v3298 = vpop.f32.mrb[0].mxu0
      %3299 = vmatprep.mubr.bf16.mxu0 %v2954
      %3300 = vmatmul.mubr.bf16.gmra.mrb[0].mxu0 %v2953
      %v3301 = vpop.f32.mrb[0].mxu0
      %v3302 = vadd.f32 0.0, %v3301
      %v3303 = vpop.f32.mrb[0].mxu0
      %v3304 = vpop.f32.mrb[0].mxu0
      %v3305 = vadd.f32 0.0, %v3304
      %v3306 = vpop.f32.mrb[0].mxu0
      %3307 = vmatprep.mubr.bf16.mxu0 %v2957
      %3308 = vmatmul.mubr.bf16.gmra.mrb[0].mxu0 %v2956
      %v3309 = vpop.f32.mrb[0].mxu0
      %v3310 = vadd.f32 0.0, %v3309
      %v3311 = vpop.f32.mrb[0].mxu0
      %v3312 = vpop.f32.mrb[0].mxu0
      %v3313 = vadd.f32 0.0, %v3312
      %v3314 = vpop.f32.mrb[0].mxu0
      %3315 = vmatprep.mubr.bf16.mxu0 %v2960
      %3316 = vmatmul.mubr.bf16.gmra.mrb[0].mxu0 %v2959
      %v3317 = vpop.f32.mrb[0].mxu0
      %v3318 = vadd.f32 0.0, %v3317
      %v3319 = vpop.f32.mrb[0].mxu0
      %v3320 = vpop.f32.mrb[0].mxu0
      %v3321 = vadd.f32 0.0, %v3320
      %v3322 = vpop.f32.mrb[0].mxu0
      %3323 = vmatprep.mubr.bf16.mxu0 %v2963
      %3324 = vmatmul.mubr.bf16.gmra.mrb[0].mxu0 %v2962
      %v3325 = vpop.f32.mrb[0].mxu0
      %v3326 = vadd.f32 0.0, %v3325
      %v3327 = vpop.f32.mrb[0].mxu0
      %v3328 = vpop.f32.mrb[0].mxu0
      %v3329 = vadd.f32 0.0, %v3328
      %v3330 = vpop.f32.mrb[0].mxu0
      %3331 = vmatprep.mubr.bf16.mxu0 %v2966
      %3332 = vmatmul.mubr.bf16.gmra.mrb[0].mxu0 %v2965
      %v3333 = vpop.f32.mrb[0].mxu0
      %v3334 = vadd.f32 0.0, %v3333
      %v3335 = vpop.f32.mrb[0].mxu0
      %v3336 = vpop.f32.mrb[0].mxu0
      %v3337 = vadd.f32 0.0, %v3336
      %v3338 = vpop.f32.mrb[0].mxu0
      %3339 = vmatprep.mubr.bf16.mxu0 %v2969
      %3340 = vmatmul.mubr.bf16.gmra.mrb[0].mxu0 %v2968
      %v3341 = vpop.f32.mrb[0].mxu0
      %v3342 = vadd.f32 0.0, %v3341
      %v3343 = vpop.f32.mrb[0].mxu0
      %v3344 = vpop.f32.mrb[0].mxu0
      %v3345 = vadd.f32 0.0, %v3344
      %v3346 = vpop.f32.mrb[0].mxu0
      %3347 = vmatprep.mubr.bf16.mxu0 %v2972
      %3348 = vmatmul.mubr.bf16.gmra.mrb[0].mxu0 %v2971
      %v3349 = vpop.f32.mrb[0].mxu0
      %v3350 = vadd.f32 0.0, %v3349
      %v3351 = vpop.f32.mrb[0].mxu0
      %v3352 = vpop.f32.mrb[0].mxu0
      %v3353 = vadd.f32 0.0, %v3352
      %v3354 = vpop.f32.mrb[0].mxu0
      %3355 = vmatprep.mubr.bf16.mxu0 %v2975
      %3356 = vmatmul.mubr.bf16.gmra.mrb[0].mxu0 %v2974
      %v3357 = vpop.f32.mrb[0].mxu0
      %v3358 = vadd.f32 0.0, %v3357
      %v3359 = vpop.f32.mrb[0].mxu0
      %v3360 = vpop.f32.mrb[0].mxu0
      %v3361 = vadd.f32 0.0, %v3360
      %v3362 = vpop.f32.mrb[0].mxu0
      %3363 = vmatprep.mubr.bf16.mxu0 %v2978
      %3364 = vmatmul.mubr.bf16.gmra.mrb[0].mxu0 %v2977
      %v3365 = vpop.f32.mrb[0].mxu0
      %v3366 = vadd.f32 0.0, %v3365
      %v3367 = vpop.f32.mrb[0].mxu0
      %v3368 = vpop.f32.mrb[0].mxu0
      %v3369 = vadd.f32 0.0, %v3368
      %v3370 = vpop.f32.mrb[0].mxu0
      %3371 = vmatprep.mubr.bf16.mxu0 %v2981
      %3372 = vmatmul.mubr.bf16.gmra.mrb[0].mxu0 %v2980
      %v3373 = vpop.f32.mrb[0].mxu0
      %v3374 = vadd.f32 0.0, %v3373
      %v3375 = vpop.f32.mrb[0].mxu0
      %v3376 = vpop.f32.mrb[0].mxu0
      %v3377 = vadd.f32 0.0, %v3376
      %v3378 = vpop.f32.mrb[0].mxu0
      %3379 = vmatprep.mubr.bf16.mxu0 %v2984
      %3380 = vmatmul.mubr.bf16.gmra.mrb[0].mxu0 %v2983
      %v3381 = vpop.f32.mrb[0].mxu0
      %v3382 = vadd.f32 0.0, %v3381
      %v3383 = vpop.f32.mrb[0].mxu0
      %v3384 = vpop.f32.mrb[0].mxu0
      %v3385 = vadd.f32 0.0, %v3384
      %v3386 = vpop.f32.mrb[0].mxu0
      %3387 = vmatprep.mubr.bf16.mxu0 %v2987
      %3388 = vmatmul.mubr.bf16.gmra.mrb[0].mxu0 %v2986
      %v3389 = vpop.f32.mrb[0].mxu0
      %v3390 = vadd.f32 0.0, %v3389
      %v3391 = vpop.f32.mrb[0].mxu0
      %v3392 = vpop.f32.mrb[0].mxu0
      %v3393 = vadd.f32 0.0, %v3392
      %v3394 = vpop.f32.mrb[0].mxu0
      %3395 = vmatprep.mubr.bf16.mxu0 %v2990
      %3396 = vmatmul.mubr.bf16.gmra.mrb[0].mxu0 %v2989
      %v3397 = vpop.f32.mrb[0].mxu0
      %v3398 = vadd.f32 0.0, %v3397
      %v3399 = vpop.f32.mrb[0].mxu0
      %v3400 = vpop.f32.mrb[0].mxu0
      %v3401 = vadd.f32 0.0, %v3400
      %v3402 = vpop.f32.mrb[0].mxu0
      %3403 = vmatprep.mubr.bf16.mxu0 %v2993
      %3404 = vmatmul.mubr.bf16.gmra.mrb[0].mxu0 %v2992
      %v3405 = vpop.f32.mrb[0].mxu0
      %v3406 = vadd.f32 0.0, %v3405
      %v3407 = vpop.f32.mrb[0].mxu0
      %v3408 = vpop.f32.mrb[0].mxu0
      %v3409 = vadd.f32 0.0, %v3408
      %v3410 = vpop.f32.mrb[0].mxu0
      %3411 = vdwg.mxu0
      %3412 = vmatprep.subr.bf16.mxu0 0
      %3413 = vmatpush1.bf16.msra.mxu0 %v3155
      %3414 = vmatprep.subr.bf16.mxu0 0
      %3415 = vmatpush1.bf16.msra.mxu0 %v3156
      %3416 = vmatprep.subr.bf16.mxu0 0
      %3417 = vmatpush1.bf16.msra.mxu0 %v3157
      %3418 = vmatprep.subr.bf16.mxu0 0
      %3419 = vmatpush1.bf16.msra.mxu0 %v3158
      %3420 = vmatprep.subr.bf16.mxu0 0
      %3421 = vmatpush1.bf16.msra.mxu0 %v3159
      %3422 = vmatprep.subr.bf16.mxu0 0
      %3423 = vmatpush1.bf16.msra.mxu0 %v3160
      %3424 = vmatprep.subr.bf16.mxu0 0
      %3425 = vmatpush1.bf16.msra.mxu0 %v3161
      %3426 = vmatprep.subr.bf16.mxu0 0
      %3427 = vmatpush1.bf16.msra.mxu0 %v3162
      %3428 = vmatprep.subr.bf16.mxu0 0
      %3429 = vmatpush1.bf16.msra.mxu0 0
      %3430 = vmatprep.subr.bf16.mxu0 0
      %3431 = vmatpush1.bf16.msra.mxu0 0
      %3432 = vmatprep.subr.bf16.mxu0 0
      %3433 = vmatpush1.bf16.msra.mxu0 0
      %3434 = vmatprep.subr.bf16.mxu0 0
      %3435 = vmatpush1.bf16.msra.mxu0 0
      %3436 = vmatprep.subr.bf16.mxu0 0
      %3437 = vmatpush1.bf16.msra.mxu0 0
      %3438 = vmatprep.subr.bf16.mxu0 0
      %3439 = vmatpush1.bf16.msra.mxu0 0
      %3440 = vmatprep.subr.bf16.mxu0 0
      %3441 = vmatpush1.bf16.msra.mxu0 0
      %3442 = vmatprep.subr.bf16.mxu0 0
      %3443 = vmatpush1.bf16.msra.mxu0 0
      %3444 = vmatprep.mubr.bf16.mxu0 0
      %3445 = vmatmul.mubr.bf16.gmra.mrb[0].mxu0 %v2925
      %v3446 = vpop.f32.mrb[0].mxu0
      %v3447 = vadd.f32 %v3222, %v3446
      %v3448 = vpop.f32.mrb[0].mxu0
      %v3449 = vpop.f32.mrb[0].mxu0
      %v3450 = vadd.f32 %v3225, %v3449
      %v3451 = vpop.f32.mrb[0].mxu0
      %3452 = vmatprep.mubr.bf16.mxu0 0
      %3453 = vmatmul.mubr.bf16.gmra.mrb[0].mxu0 %v2928
      %v3454 = vpop.f32.mrb[0].mxu0
      %v3455 = vadd.f32 %v3230, %v3454
      %v3456 = vpop.f32.mrb[0].mxu0
      %v3457 = vpop.f32.mrb[0].mxu0
      %v3458 = vadd.f32 %v3233, %v3457
      %v3459 = vpop.f32.mrb[0].mxu0
      %3460 = vmatprep.mubr.bf16.mxu0 0
      %3461 = vmatmul.mubr.bf16.gmra.mrb[0].mxu0 %v2931
      %v3462 = vpop.f32.mrb[0].mxu0
      %v3463 = vadd.f32 %v3238, %v3462
      %v3464 = vpop.f32.mrb[0].mxu0
      %v3465 = vpop.f32.mrb[0].mxu0
      %v3466 = vadd.f32 %v3241, %v3465
      %v3467 = vpop.f32.mrb[0].mxu0
      %3468 = vmatprep.mubr.bf16.mxu0 0
      %3469 = vmatmul.mubr.bf16.gmra.mrb[0].mxu0 %v2934
      %v3470 = vpop.f32.mrb[0].mxu0
      %v3471 = vadd.f32 %v3246, %v3470
      %v3472 = vpop.f32.mrb[0].mxu0
      %v3473 = vpop.f32.mrb[0].mxu0
      %v3474 = vadd.f32 %v3249, %v3473
      %v3475 = vpop.f32.mrb[0].mxu0
      %3476 = vmatprep.mubr.bf16.mxu0 0
      %3477 = vmatmul.mubr.bf16.gmra.mrb[0].mxu0 %v2937
      %v3478 = vpop.f32.mrb[0].mxu0
      %v3479 = vadd.f32 %v3254, %v3478
      %v3480 = vpop.f32.mrb[0].mxu0
      %v3481 = vpop.f32.mrb[0].mxu0
      %v3482 = vadd.f32 %v3257, %v3481
      %v3483 = vpop.f32.mrb[0].mxu0
      %3484 = vmatprep.mubr.bf16.mxu0 0
      %3485 = vmatmul.mubr.bf16.gmra.mrb[0].mxu0 %v2940
      %v3486 = vpop.f32.mrb[0].mxu0
      %v3487 = vadd.f32 %v3262, %v3486
      %v3488 = vpop.f32.mrb[0].mxu0
      %v3489 = vpop.f32.mrb[0].mxu0
      %v3490 = vadd.f32 %v3265, %v3489
      %v3491 = vpop.f32.mrb[0].mxu0
      %3492 = vmatprep.mubr.bf16.mxu0 0
      %3493 = vmatmul.mubr.bf16.gmra.mrb[0].mxu0 %v2943
      %v3494 = vpop.f32.mrb[0].mxu0
      %v3495 = vadd.f32 %v3270, %v3494
      %v3496 = vpop.f32.mrb[0].mxu0
      %v3497 = vpop.f32.mrb[0].mxu0
      %v3498 = vadd.f32 %v3273, %v3497
      %v3499 = vpop.f32.mrb[0].mxu0
      %3500 = vmatprep.mubr.bf16.mxu0 0
      %3501 = vmatmul.mubr.bf16.gmra.mrb[0].mxu0 %v2946
      %v3502 = vpop.f32.mrb[0].mxu0
      %v3503 = vadd.f32 %v3278, %v3502
      %v3504 = vpop.f32.mrb[0].mxu0
      %v3505 = vpop.f32.mrb[0].mxu0
      %v3506 = vadd.f32 %v3281, %v3505
      %v3507 = vpop.f32.mrb[0].mxu0
      %3508 = vmatprep.mubr.bf16.mxu0 0
      %3509 = vmatmul.mubr.bf16.gmra.mrb[0].mxu0 %v2949
      %v3510 = vpop.f32.mrb[0].mxu0
      %v3511 = vadd.f32 %v3286, %v3510
      %v3512 = vpop.f32.mrb[0].mxu0
      %v3513 = vpop.f32.mrb[0].mxu0
      %v3514 = vadd.f32 %v3289, %v3513
      %v3515 = vpop.f32.mrb[0].mxu0
      %3516 = vmatprep.mubr.bf16.mxu0 0
      %3517 = vmatmul.mubr.bf16.gmra.mrb[0].mxu0 %v2952
      %v3518 = vpop.f32.mrb[0].mxu0
      %v3519 = vadd.f32 %v3294, %v3518
      %v3520 = vpop.f32.mrb[0].mxu0
      %v3521 = vpop.f32.mrb[0].mxu0
      %v3522 = vadd.f32 %v3297, %v3521
      %v3523 = vpop.f32.mrb[0].mxu0
      %3524 = vmatprep.mubr.bf16.mxu0 0
      %3525 = vmatmul.mubr.bf16.gmra.mrb[0].mxu0 %v2955
      %v3526 = vpop.f32.mrb[0].mxu0
      %v3527 = vadd.f32 %v3302, %v3526
      %v3528 = vpop.f32.mrb[0].mxu0
      %v3529 = vpop.f32.mrb[0].mxu0
      %v3530 = vadd.f32 %v3305, %v3529
      %v3531 = vpop.f32.mrb[0].mxu0
      %3532 = vmatprep.mubr.bf16.mxu0 0
      %3533 = vmatmul.mubr.bf16.gmra.mrb[0].mxu0 %v2958
      %v3534 = vpop.f32.mrb[0].mxu0
      %v3535 = vadd.f32 %v3310, %v3534
      %v3536 = vpop.f32.mrb[0].mxu0
      %v3537 = vpop.f32.mrb[0].mxu0
      %v3538 = vadd.f32 %v3313, %v3537
      %v3539 = vpop.f32.mrb[0].mxu0
      %3540 = vmatprep.mubr.bf16.mxu0 0
      %3541 = vmatmul.mubr.bf16.gmra.mrb[0].mxu0 %v2961
      %v3542 = vpop.f32.mrb[0].mxu0
      %v3543 = vadd.f32 %v3318, %v3542
      %v3544 = vpop.f32.mrb[0].mxu0
      %v3545 = vpop.f32.mrb[0].mxu0
      %v3546 = vadd.f32 %v3321, %v3545
      %v3547 = vpop.f32.mrb[0].mxu0
      %3548 = vmatprep.mubr.bf16.mxu0 0
      %3549 = vmatmul.mubr.bf16.gmra.mrb[0].mxu0 %v2964
      %v3550 = vpop.f32.mrb[0].mxu0
      %v3551 = vadd.f32 %v3326, %v3550
      %v3552 = vpop.f32.mrb[0].mxu0
      %v3553 = vpop.f32.mrb[0].mxu0
      %v3554 = vadd.f32 %v3329, %v3553
      %v3555 = vpop.f32.mrb[0].mxu0
      %3556 = vmatprep.mubr.bf16.mxu0 0
      %3557 = vmatmul.mubr.bf16.gmra.mrb[0].mxu0 %v2967
      %v3558 = vpop.f32.mrb[0].mxu0
      %v3559 = vadd.f32 %v3334, %v3558
      %v3560 = vpop.f32.mrb[0].mxu0
      %v3561 = vpop.f32.mrb[0].mxu0
      %v3562 = vadd.f32 %v3337, %v3561
      %v3563 = vpop.f32.mrb[0].mxu0
      %3564 = vmatprep.mubr.bf16.mxu0 0
      %3565 = vmatmul.mubr.bf16.gmra.mrb[0].mxu0 %v2970
      %v3566 = vpop.f32.mrb[0].mxu0
      %v3567 = vadd.f32 %v3342, %v3566
      %v3568 = vpop.f32.mrb[0].mxu0
      %v3569 = vpop.f32.mrb[0].mxu0
      %v3570 = vadd.f32 %v3345, %v3569
      %v3571 = vpop.f32.mrb[0].mxu0
      %3572 = vmatprep.mubr.bf16.mxu0 0
      %3573 = vmatmul.mubr.bf16.gmra.mrb[0].mxu0 %v2973
      %v3574 = vpop.f32.mrb[0].mxu0
      %v3575 = vadd.f32 %v3350, %v3574
      %v3576 = vpop.f32.mrb[0].mxu0
      %v3577 = vpop.f32.mrb[0].mxu0
      %v3578 = vadd.f32 %v3353, %v3577
      %v3579 = vpop.f32.mrb[0].mxu0
      %3580 = vmatprep.mubr.bf16.mxu0 0
      %3581 = vmatmul.mubr.bf16.gmra.mrb[0].mxu0 %v2976
      %v3582 = vpop.f32.mrb[0].mxu0
      %v3583 = vadd.f32 %v3358, %v3582
      %v3584 = vpop.f32.mrb[0].mxu0
      %v3585 = vpop.f32.mrb[0].mxu0
      %v3586 = vadd.f32 %v3361, %v3585
      %v3587 = vpop.f32.mrb[0].mxu0
      %3588 = vmatprep.mubr.bf16.mxu0 0
      %3589 = vmatmul.mubr.bf16.gmra.mrb[0].mxu0 %v2979
      %v3590 = vpop.f32.mrb[0].mxu0
      %v3591 = vadd.f32 %v3366, %v3590
      %v3592 = vpop.f32.mrb[0].mxu0
      %v3593 = vpop.f32.mrb[0].mxu0
      %v3594 = vadd.f32 %v3369, %v3593
      %v3595 = vpop.f32.mrb[0].mxu0
      %3596 = vmatprep.mubr.bf16.mxu0 0
      %3597 = vmatmul.mubr.bf16.gmra.mrb[0].mxu0 %v2982
      %v3598 = vpop.f32.mrb[0].mxu0
      %v3599 = vadd.f32 %v3374, %v3598
      %v3600 = vpop.f32.mrb[0].mxu0
      %v3601 = vpop.f32.mrb[0].mxu0
      %v3602 = vadd.f32 %v3377, %v3601
      %v3603 = vpop.f32.mrb[0].mxu0
      %3604 = vmatprep.mubr.bf16.mxu0 0
      %3605 = vmatmul.mubr.bf16.gmra.mrb[0].mxu0 %v2985
      %v3606 = vpop.f32.mrb[0].mxu0
      %v3607 = vadd.f32 %v3382, %v3606
      %v3608 = vpop.f32.mrb[0].mxu0
      %v3609 = vpop.f32.mrb[0].mxu0
      %v3610 = vadd.f32 %v3385, %v3609
      %v3611 = vpop.f32.mrb[0].mxu0
      %3612 = vmatprep.mubr.bf16.mxu0 0
      %3613 = vmatmul.mubr.bf16.gmra.mrb[0].mxu0 %v2988
      %v3614 = vpop.f32.mrb[0].mxu0
      %v3615 = vadd.f32 %v3390, %v3614
      %v3616 = vpop.f32.mrb[0].mxu0
      %v3617 = vpop.f32.mrb[0].mxu0
      %v3618 = vadd.f32 %v3393, %v3617
      %v3619 = vpop.f32.mrb[0].mxu0
      %3620 = vmatprep.mubr.bf16.mxu0 0
      %3621 = vmatmul.mubr.bf16.gmra.mrb[0].mxu0 %v2991
      %v3622 = vpop.f32.mrb[0].mxu0
      %v3623 = vadd.f32 %v3398, %v3622
      %v3624 = vpop.f32.mrb[0].mxu0
      %v3625 = vpop.f32.mrb[0].mxu0
      %v3626 = vadd.f32 %v3401, %v3625
      %v3627 = vpop.f32.mrb[0].mxu0
      %3628 = vmatprep.mubr.bf16.mxu0 0
      %3629 = vmatmul.mubr.bf16.gmra.mrb[0].mxu0 %v2994
      %v3630 = vpop.f32.mrb[0].mxu0
      %v3631 = vadd.f32 %v3406, %v3630
      %v3632 = vpop.f32.mrb[0].mxu0
      %v3633 = vpop.f32.mrb[0].mxu0
      %v3634 = vadd.f32 %v3409, %v3633
      %v3635 = vpop.f32.mrb[0].mxu0
      %3636 = vdwg.mxu0
      %v3637 = vadd.f32 %v2733, %v3447
      %v3638 = vadd.f32 %v2736, %v3450
      %v3639 = vadd.f32 %v2741, %v3455
      %v3640 = vadd.f32 %v2744, %v3458
      %v3641 = vadd.f32 %v2749, %v3463
      %v3642 = vadd.f32 %v2752, %v3466
      %v3643 = vadd.f32 %v2757, %v3471
      %v3644 = vadd.f32 %v2760, %v3474
      %v3645 = vadd.f32 %v2765, %v3479
      %v3646 = vadd.f32 %v2768, %v3482
      %v3647 = vadd.f32 %v2773, %v3487
      %v3648 = vadd.f32 %v2776, %v3490
      %v3649 = vadd.f32 %v2781, %v3495
      %v3650 = vadd.f32 %v2784, %v3498
      %v3651 = vadd.f32 %v2789, %v3503
      %v3652 = vadd.f32 %v2792, %v3506
      %v3653 = vadd.f32 %v2797, %v3511
      %v3654 = vadd.f32 %v2800, %v3514
      %v3655 = vadd.f32 %v2805, %v3519
      %v3656 = vadd.f32 %v2808, %v3522
      %v3657 = vadd.f32 %v2813, %v3527
      %v3658 = vadd.f32 %v2816, %v3530
      %v3659 = vadd.f32 %v2821, %v3535
      %v3660 = vadd.f32 %v2824, %v3538
      %v3661 = vadd.f32 %v2829, %v3543
      %v3662 = vadd.f32 %v2832, %v3546
      %v3663 = vadd.f32 %v2837, %v3551
      %v3664 = vadd.f32 %v2840, %v3554
      %v3665 = vadd.f32 %v2845, %v3559
      %v3666 = vadd.f32 %v2848, %v3562
      %v3667 = vadd.f32 %v2853, %v3567
      %v3668 = vadd.f32 %v2856, %v3570
      %v3669 = vadd.f32 %v2861, %v3575
      %v3670 = vadd.f32 %v2864, %v3578
      %v3671 = vadd.f32 %v2869, %v3583
      %v3672 = vadd.f32 %v2872, %v3586
      %v3673 = vadd.f32 %v2877, %v3591
      %v3674 = vadd.f32 %v2880, %v3594
      %v3675 = vadd.f32 %v2885, %v3599
      %v3676 = vadd.f32 %v2888, %v3602
      %v3677 = vadd.f32 %v2893, %v3607
      %v3678 = vadd.f32 %v2896, %v3610
      %v3679 = vadd.f32 %v2901, %v3615
      %v3680 = vadd.f32 %v2904, %v3618
      %v3681 = vadd.f32 %v2909, %v3623
      %v3682 = vadd.f32 %v2912, %v3626
      %v3683 = vadd.f32 %v2917, %v3631
      %v3684 = vadd.f32 %v2920, %v3634
      %v3685 = vld [vmem:[%s3] sm:$0x1]
      %v3687 = vlaneseq
      %v3688 = vshrl.u32 %v3687, 7
      %v3689 = vsub.s32 0, %v3688
      %v3690 = vrot.slane %v3685, %v3689
      %v3692 = vadd.f32 %v3637, %v3690
      %v3693 = vadd.f32 %v3638, %v3690
      %v3694 = vadd.f32 %v3639, %v3690
      %v3695 = vadd.f32 %v3640, %v3690
      %v3696 = vadd.f32 %v3641, %v3690
      %v3697 = vadd.f32 %v3642, %v3690
      %v3698 = vadd.f32 %v3643, %v3690
      %v3699 = vadd.f32 %v3644, %v3690
      %v3700 = vadd.f32 %v3645, %v3690
      %v3701 = vadd.f32 %v3646, %v3690
      %v3702 = vadd.f32 %v3647, %v3690
      %v3703 = vadd.f32 %v3648, %v3690
      %v3704 = vadd.f32 %v3649, %v3690
      %v3705 = vadd.f32 %v3650, %v3690
      %v3706 = vadd.f32 %v3651, %v3690
      %v3707 = vadd.f32 %v3652, %v3690
      %v3708 = vadd.f32 %v3653, %v3690
      %v3709 = vadd.f32 %v3654, %v3690
      %v3710 = vadd.f32 %v3655, %v3690
      %v3711 = vadd.f32 %v3656, %v3690
      %v3712 = vadd.f32 %v3657, %v3690
      %v3713 = vadd.f32 %v3658, %v3690
      %v3714 = vadd.f32 %v3659, %v3690
      %v3715 = vadd.f32 %v3660, %v3690
      %v3716 = vadd.f32 %v3661, %v3690
      %v3717 = vadd.f32 %v3662, %v3690
      %v3718 = vadd.f32 %v3663, %v3690
      %v3719 = vadd.f32 %v3664, %v3690
      %v3720 = vadd.f32 %v3665, %v3690
      %v3721 = vadd.f32 %v3666, %v3690
      %v3722 = vadd.f32 %v3667, %v3690
      %v3723 = vadd.f32 %v3668, %v3690
      %v3724 = vadd.f32 %v3669, %v3690
      %v3725 = vadd.f32 %v3670, %v3690
      %v3726 = vadd.f32 %v3671, %v3690
      %v3727 = vadd.f32 %v3672, %v3690
      %v3728 = vadd.f32 %v3673, %v3690
      %v3729 = vadd.f32 %v3674, %v3690
      %v3730 = vadd.f32 %v3675, %v3690
      %v3731 = vadd.f32 %v3676, %v3690
      %v3732 = vadd.f32 %v3677, %v3690
      %v3733 = vadd.f32 %v3678, %v3690
      %v3734 = vadd.f32 %v3679, %v3690
      %v3735 = vadd.f32 %v3680, %v3690
      %v3736 = vadd.f32 %v3681, %v3690
      %v3737 = vadd.f32 %v3682, %v3690
      %v3738 = vadd.f32 %v3683, %v3690
      %v3739 = vadd.f32 %v3684, %v3690
      %v3740 = vmax.f32 %v3692, 0.0
      %v3741 = vmax.f32 %v3693, 0.0
      %v3742 = vmax.f32 %v3694, 0.0
      %v3743 = vmax.f32 %v3695, 0.0
      %v3744 = vmax.f32 %v3696, 0.0
      %v3745 = vmax.f32 %v3697, 0.0
      %v3746 = vmax.f32 %v3698, 0.0
      %v3747 = vmax.f32 %v3699, 0.0
      %v3748 = vmax.f32 %v3700, 0.0
      %v3749 = vmax.f32 %v3701, 0.0
      %v3750 = vmax.f32 %v3702, 0.0
      %v3751 = vmax.f32 %v3703, 0.0
      %v3752 = vmax.f32 %v3704, 0.0
      %v3753 = vmax.f32 %v3705, 0.0
      %v3754 = vmax.f32 %v3706, 0.0
      %v3755 = vmax.f32 %v3707, 0.0
      %v3756 = vmax.f32 %v3708, 0.0
      %v3757 = vmax.f32 %v3709, 0.0
      %v3758 = vmax.f32 %v3710, 0.0
      %v3759 = vmax.f32 %v3711, 0.0
      %v3760 = vmax.f32 %v3712, 0.0
      %v3761 = vmax.f32 %v3713, 0.0
      %v3762 = vmax.f32 %v3714, 0.0
      %v3763 = vmax.f32 %v3715, 0.0
      %v3764 = vmax.f32 %v3716, 0.0
      %v3765 = vmax.f32 %v3717, 0.0
      %v3766 = vmax.f32 %v3718, 0.0
      %v3767 = vmax.f32 %v3719, 0.0
      %v3768 = vmax.f32 %v3720, 0.0
      %v3769 = vmax.f32 %v3721, 0.0
      %v3770 = vmax.f32 %v3722, 0.0
      %v3771 = vmax.f32 %v3723, 0.0
      %v3772 = vmax.f32 %v3724, 0.0
      %v3773 = vmax.f32 %v3725, 0.0
      %v3774 = vmax.f32 %v3726, 0.0
      %v3775 = vmax.f32 %v3727, 0.0
      %v3776 = vmax.f32 %v3728, 0.0
      %v3777 = vmax.f32 %v3729, 0.0
      %v3778 = vmax.f32 %v3730, 0.0
      %v3779 = vmax.f32 %v3731, 0.0
      %v3780 = vmax.f32 %v3732, 0.0
      %v3781 = vmax.f32 %v3733, 0.0
      %v3782 = vmax.f32 %v3734, 0.0
      %v3783 = vmax.f32 %v3735, 0.0
      %v3784 = vmax.f32 %v3736, 0.0
      %v3785 = vmax.f32 %v3737, 0.0
      %v3786 = vmax.f32 %v3738, 0.0
      %v3787 = vmax.f32 %v3739, 0.0
      %3788 = vst [vmem:[%s197] sm:$0xff] %v3740
      %3789 = vst [vmem:[%s197 + $0x8] sm:$0xff] %v3741
      %3790 = vst [vmem:[%s197 + $0x10] sm:$0xff] %v3742
      %3791 = vst [vmem:[%s197 + $0x18] sm:$0xff] %v3743
      %3792 = vst [vmem:[%s197 + $0x20] sm:$0xff] %v3744
      %3793 = vst [vmem:[%s197 + $0x28] sm:$0xff] %v3745
      %3794 = vst [vmem:[%s197 + $0x30] sm:$0xff] %v3746
      %3795 = vst [vmem:[%s197 + $0x38] sm:$0xff] %v3747
      %3796 = vst [vmem:[%s197 + $0x40] sm:$0xff] %v3748
      %3797 = vst [vmem:[%s197 + $0x48] sm:$0xff] %v3749
      %3798 = vst [vmem:[%s197 + $0x50] sm:$0xff] %v3750
      %3799 = vst [vmem:[%s197 + $0x58] sm:$0xff] %v3751
      %3800 = vst [vmem:[%s197 + $0x60] sm:$0xff] %v3752
      %3801 = vst [vmem:[%s197 + $0x68] sm:$0xff] %v3753
      %3802 = vst [vmem:[%s197 + $0x70] sm:$0xff] %v3754
      %3803 = vst [vmem:[%s197 + $0x78] sm:$0xff] %v3755
      %3804 = vst [vmem:[%s197 + $0x80] sm:$0xff] %v3756
      %3805 = vst [vmem:[%s197 + $0x88] sm:$0xff] %v3757
      %3806 = vst [vmem:[%s197 + $0x90] sm:$0xff] %v3758
      %3807 = vst [vmem:[%s197 + $0x98] sm:$0xff] %v3759
      %3808 = vst [vmem:[%s197 + $0xa0] sm:$0xff] %v3760
      %3809 = vst [vmem:[%s197 + $0xa8] sm:$0xff] %v3761
      %3810 = vst [vmem:[%s197 + $0xb0] sm:$0xff] %v3762
      %3811 = vst [vmem:[%s197 + $0xb8] sm:$0xff] %v3763
      %3812 = vst [vmem:[%s197 + $0xc0] sm:$0xff] %v3764
      %3813 = vst [vmem:[%s197 + $0xc8] sm:$0xff] %v3765
      %3814 = vst [vmem:[%s197 + $0xd0] sm:$0xff] %v3766
      %3815 = vst [vmem:[%s197 + $0xd8] sm:$0xff] %v3767
      %3816 = vst [vmem:[%s197 + $0xe0] sm:$0xff] %v3768
      %3817 = vst [vmem:[%s197 + $0xe8] sm:$0xff] %v3769
      %3818 = vst [vmem:[%s197 + $0xf0] sm:$0xff] %v3770
      %3819 = vst [vmem:[%s197 + $0xf8] sm:$0xff] %v3771
      %3820 = vst [vmem:[%s197 + $0x100] sm:$0xff] %v3772
      %3821 = vst [vmem:[%s197 + $0x108] sm:$0xff] %v3773
      %3822 = vst [vmem:[%s197 + $0x110] sm:$0xff] %v3774
      %3823 = vst [vmem:[%s197 + $0x118] sm:$0xff] %v3775
      %3824 = vst [vmem:[%s197 + $0x120] sm:$0xff] %v3776
      %3825 = vst [vmem:[%s197 + $0x128] sm:$0xff] %v3777
      %3826 = vst [vmem:[%s197 + $0x130] sm:$0xff] %v3778
      %3827 = vst [vmem:[%s197 + $0x138] sm:$0xff] %v3779
      %3828 = vst [vmem:[%s197 + $0x140] sm:$0xff] %v3780
      %3829 = vst [vmem:[%s197 + $0x148] sm:$0xff] %v3781
      %3830 = vst [vmem:[%s197 + $0x150] sm:$0xff] %v3782
      %3831 = vst [vmem:[%s197 + $0x158] sm:$0xff] %v3783
      %3832 = vst [vmem:[%s197 + $0x160] sm:$0xff] %v3784
      %3833 = vst [vmem:[%s197 + $0x168] sm:$0xff] %v3785
      %3834 = vst [vmem:[%s197 + $0x170] sm:$0xff] %v3786
      %3835 = vst [vmem:[%s197 + $0x178] sm:$0xff] %v3787
      %p3836 = scmp.lt.s32.totalorder %s15, 1
      %s3837 = scalar_select %p3836, %s15, 1
      %s3838 = smul.addr %s3837, 48
      %s3839 = smul.addr %s3838, 8
      %s3840 = scalar_lea.vmem %s4, %s3839
      // Predicated region
      $region37: #{ava_backbone_forward.1} parent=35 // pred_check
        %p3841 = pneg %p122
      $region38: #{ava_backbone_forward.1} parent=35 // pred_check_branch
        %3843 = sbr.rel (%p3841) target = $region40
      $region39: #{ava_backbone_forward.1} parent=35 // pred_region
        _
      $region40: #{ava_backbone_forward.1} parent=35 // pred_fallthru
        _
    $region36: #{ava_backbone_forward.1} parent=5 // pred_fallthru
      _
    %p3844 = scmp.le.s32.totalorder 2, %s10
    // Predicated region
    $region41: #{ava_backbone_forward.1} parent=5 // pred_check
      %p3845 = pneg %p3844
    $region42: #{ava_backbone_forward.1} parent=5 // pred_check_branch
      %3847 = sbr.rel (%p3845) target = $region44
    $region43: #{ava_backbone_forward.1} parent=5 // pred_region
      %s3848 = ssub.s32 %s10, 2
      // Predicated region
      $region45: #{ava_backbone_forward.1} parent=43 // pred_check
        %p3849 = pneg %p128
      $region46: #{ava_backbone_forward.1} parent=43 // pred_check_branch
        %3851 = sbr.rel (%p3849) target = $region48
      $region47: #{ava_backbone_forward.1} parent=43 // pred_region
        %p3852 = scmp.lt.s32.totalorder %s16, 1
        %s3853 = scalar_select %p3852, %s16, 1
        %s3854 = smul.addr %s3853, 48
        %s3855 = smul.addr %s3854, 8
        %s3856 = scalar_lea.vmem %s4, %s3855
      $region48: #{ava_backbone_forward.1} parent=43 // pred_fallthru
        _
    $region44: #{ava_backbone_forward.1} parent=5 // pred_fallthru
      _
  $region6: #{ava_backbone_forward.1} parent=0 // loop_footer
    %s14 = sadd.s32 1, %s10
  $region7: #{ava_backbone_forward.1} parent=0 // loop_footer_branch
    %9 = sbr.rel target = $region3
  $region8: #{ava_backbone_forward.1} parent=0 // loop_exit
    _

</llo_original>
